<compile_context>
chip_gen: v7x
topology: tpu7x:2x2x1
jax: 0.10.0
libtpu: 0.0.40
codegen_flags: <defaults>
</compile_context>

<pallas_src>
import functools

import jax
import jax.numpy as jnp
from jax.experimental import pallas as pl
from jax.experimental.pallas import tpu as pltpu


# -----------------------------------------------------------------------------
# Fused Pallas kernel: both 2-layer bidirectional LSTM stacks + fc head.
# -----------------------------------------------------------------------------
def _aspect_lstm_kernel(
    x1_ref,
    wih1_ref, whh1_ref, b1_ref,
    wih2_ref, whh2_ref, b2_ref,
    fc1_w_ref, fc1_b_ref, fc2_w_ref, fc2_b_ref,
    out_ref,
    gih_sc, h1_sc,
    *, Ts, Ta, B, H, cdt,
):
    Tmax = max(Ts, Ta)
    H2, H3, H4 = 2 * H, 3 * H, 4 * H
    H12 = 12 * H

    # Zero-init the layer-1 hidden slab so every (row, column-group) the loop
    # below never writes stays a valid finite zero (the layer-2 projection is
    # block-diagonal, and 0-weight * garbage would only be safe if the garbage
    # is finite — uninitialized VMEM is not guaranteed to be).
    h1_sc[...] = jnp.zeros_like(h1_sc)

    def run_layer(x_in, wih_ref, whh_ref, b_ref, store_hidden):
        """One bidirectional layer of BOTH stacks, fused into one recurrence.

        x_in: (Tmax*B, Din) joint input slab.  Row block r holds, per the
        pack-time layout, the inputs of all four units at their OWN timestep
        (forward units read timestep r, backward units read the reversed
        timestep), so the hoisted projection yields one contiguous (B, 16H)
        pre-activation row block per step.
        Joint gate columns: [ i(4H) | f(4H) | o(4H) | g(4H) ], each 4H block in
        unit order [sent_fwd | asp_fwd | sent_bwd | asp_bwd].
        """
        gih = jnp.dot(x_in.astype(cdt), wih_ref[...],
                      preferred_element_type=jnp.float32) + b_ref[...]
        gih_sc[...] = gih                       # (Tmax*B, 16H), VMEM resident

        whh = whh_ref[...]                      # hoisted (4H, 16H) weight load
        h = jnp.zeros((B, H4), jnp.float32)     # [h_sf | h_af | h_sb | h_ab]
        c = jnp.zeros((B, H4), jnp.float32)
        sent_fin = asp_fin = None

        for t in range(Tmax):                   # small static T -> fully unrolled
            r = t * B
            # Single fused recurrent matmul (both stacks, both directions) and
            # one contiguous (B,16H) gate-slab load + full-width add.
            g = gih_sc[r:r + B, :] + jnp.dot(
                h.astype(cdt), whh, preferred_element_type=jnp.float32)
            # One wide sigmoid (12H lanes) + one wide tanh (4H lanes).
            sg = jax.nn.sigmoid(g[:, :H12])
            gg = jnp.tanh(g[:, H12:])
            c = sg[:, H4:2 * H4] * c + sg[:, :H4] * gg      # f*c + i*g, 4H wide
            h = sg[:, 2 * H4:] * jnp.tanh(c)                # o*tanh(c), 4H wide

            if store_hidden:
                rs = (Ts - 1 - t) * B
                ra = (Ta - 1 - t) * B
                # Forward-time slab (cols 0:4H): [sf(r) | af(r) | sb(r) | ab(r)]
                h1_sc[r:r + B, 0:H2] = h[:, 0:H2]
                if t < Ts:
                    h1_sc[rs:rs + B, H2:H3] = h[:, H2:H3]
                if t < Ta:
                    h1_sc[ra:ra + B, H3:H4] = h[:, H3:H4]
                # Reverse-time slab (cols 4H:8H):
                #   [sb(Ts-1-r) | ab(Ta-1-r) | sf(Ts-1-r) | af(Ta-1-r)]
                h1_sc[r:r + B, H4:H4 + H2] = h[:, H2:H4]
                if t < Ts:
                    h1_sc[rs:rs + B, H4 + H2:H4 + H3] = h[:, 0:H]
                if t < Ta:
                    h1_sc[ra:ra + B, H4 + H3:2 * H4] = h[:, H:H2]

            if t == Ts - 1:
                sent_fin = h    # h_sf(Ts-1) at cols 0:H, h_sb(t=0) at 2H:3H
            if t == Ta - 1:
                asp_fin = h     # h_af(Ta-1) at cols H:2H, h_ab(t=0) at 3H:4H
        return sent_fin, asp_fin

    # Layer 1: sentence + aspect stacks interleaved in one recurrence.
    run_layer(x1_ref[...], wih1_ref, whh1_ref, b1_ref, store_hidden=True)
    # Inter-layer dropout (p=0.5) is identity in eval mode.
    # Layer 2: consumes the layer-1 hidden slab directly; its packed W_ih row
    # order matches the slab column order exactly -> zero reshuffling.
    sent_fin, asp_fin = run_layer(h1_sc[...], wih2_ref, whh2_ref, b2_ref,
                                  store_hidden=False)

    # torch: cat([sent[:,-1,:H], sent[:,0,H:], asp[:,-1,:H], asp[:,0,H:]], dim=1)
    combined = jnp.concatenate(
        [sent_fin[:, 0:H], sent_fin[:, H2:H3],
         asp_fin[:, H:H2], asp_fin[:, H3:H4]], axis=-1)      # (B, 4H)
    # self.dropout(combined) -> identity in eval mode.
    hid = jnp.dot(combined.astype(cdt), fc1_w_ref[...],
                  preferred_element_type=jnp.float32) + fc1_b_ref[...]
    hid = jnp.maximum(hid, 0.0)
    logits = jnp.dot(hid.astype(cdt), fc2_w_ref[...],
                     preferred_element_type=jnp.float32) + fc2_b_ref[...]
    out_ref[...] = logits.astype(out_ref.dtype)


# -----------------------------------------------------------------------------
# Pack-time weight fusion.
# Unit order everywhere: [sent_fwd, asp_fwd, sent_bwd, asp_bwd].
# Per-direction params have gate column order [i, f, g, o] (PyTorch order).
# -----------------------------------------------------------------------------
_SRC_GATE = {"i": 0, "f": 1, "g": 2, "o": 3}   # column block in per-dir params
_DST_GATE = {"i": 0, "f": 1, "o": 2, "g": 3}   # joint layout: sigmoid gates first


def _pack_joint_layer(units, unit_in_rows, in_dim, H, cdt):
    """Fuse one bidirectional layer of BOTH stacks into joint weights.

    units:        4x (w_ih (Din_u,4H), w_hh (H,4H), b (1,4H)) in unit order.
    unit_in_rows: per unit, list of (dst_row, src_row, n) placements of its
                  w_ih rows inside the joint input-slab columns.
    Returns wih (in_dim, 16H), whh (4H, 16H) block-diagonal, b (1, 16H).
    """
    G = 16 * H
    wih = jnp.zeros((in_dim, G), jnp.float32)
    whh = jnp.zeros((4 * H, G), jnp.float32)
    b = jnp.zeros((1, G), jnp.float32)
    for u, (wih_u, whh_u, b_u) in enumerate(units):
        for name, s in _SRC_GATE.items():
            d = (_DST_GATE[name] * 4 + u) * H
            src = slice(s * H, (s + 1) * H)
            for dst_r, src_r, n in unit_in_rows[u]:
                wih = wih.at[dst_r:dst_r + n, d:d + H].set(
                    wih_u[src_r:src_r + n, src])
            whh = whh.at[u * H:(u + 1) * H, d:d + H].set(whh_u[:, src])
            b = b.at[:, d:d + H].set(b_u[:, src])
    return wih.astype(cdt), whh.astype(cdt), b


def aspect_lstm_forward_pallas(sent_emb, asp_emb, params,
                               compute_dtype=jnp.float32):
    """sent_emb / asp_emb: (B, T, E) batch-first embedded inputs -> (B, C)."""
    H = params["hidden_dim"]
    B, Ts, E = sent_emb.shape
    _, Ta, _ = asp_emb.shape
    C = params["fc2_w"].shape[1]
    Tmax = max(Ts, Ta)

    # Pad batch to a full 8-sublane group (padded rows are independent and
    # sliced off at the end) -> aligned VMEM accesses, filled vregs.
    B_pad = max(8, ((B + 7) // 8) * 8)
    if B_pad != B:
        pad = ((0, B_pad - B), (0, 0), (0, 0))
        sent_emb = jnp.pad(sent_emb, pad)
        asp_emb = jnp.pad(asp_emb, pad)

    def to_tmajor(x):                         # (B, T, E) -> (Tmax, B, E), zero-pad
        x = jnp.transpose(x, (1, 0, 2))
        return jnp.pad(x, ((0, Tmax - x.shape[0]), (0, 0), (0, 0)))

    # Layer-1 joint input slab: row block r = [x_s(r)|x_a(r)|x_s(Ts-1-r)|x_a(Ta-1-r)]
    # (zero-padded beyond each stack's length; zeros keep everything finite).
    x1 = jnp.concatenate(
        [to_tmajor(sent_emb), to_tmajor(asp_emb),
         to_tmajor(sent_emb[:, ::-1, :]), to_tmajor(asp_emb[:, ::-1, :])],
        axis=-1).reshape(Tmax * B_pad, 4 * E).astype(compute_dtype)

    sent_l1, sent_l2 = params["sentence_lstm"]
    asp_l1, asp_l2 = params["aspect_lstm"]
    units_l1 = [sent_l1[0], asp_l1[0], sent_l1[1], asp_l1[1]]
    units_l2 = [sent_l2[0], asp_l2[0], sent_l2[1], asp_l2[1]]

    # Layer-1 input slab column blocks (width E): [sf, af, sb(rev), ab(rev)].
    rows_l1 = [[(0 * E, 0, E)], [(1 * E, 0, E)], [(2 * E, 0, E)], [(3 * E, 0, E)]]
    # Layer-2 input slab column blocks (width H):
    #   0:sf(r) 1:af(r) 2:sb(r) 3:ab(r) 4:sb(rev) 5:ab(rev) 6:sf(rev) 7:af(rev)
    rows_l2 = [
        [(0 * H, 0, H), (2 * H, H, H)],   # sent_fwd needs [sf(r), sb(r)]
        [(1 * H, 0, H), (3 * H, H, H)],   # asp_fwd  needs [af(r), ab(r)]
        [(6 * H, 0, H), (4 * H, H, H)],   # sent_bwd needs [sf(rev), sb(rev)]
        [(7 * H, 0, H), (5 * H, H, H)],   # asp_bwd  needs [af(rev), ab(rev)]
    ]
    wih1, whh1, b1 = _pack_joint_layer(units_l1, rows_l1, 4 * E, H, compute_dtype)
    wih2, whh2, b2 = _pack_joint_layer(units_l2, rows_l2, 8 * H, H, compute_dtype)

    inputs = [x1, wih1, whh1, b1, wih2, whh2, b2,
              params["fc1_w"].astype(compute_dtype), params["fc1_b"],
              params["fc2_w"].astype(compute_dtype), params["fc2_b"]]

    kernel = functools.partial(_aspect_lstm_kernel, Ts=Ts, Ta=Ta, B=B_pad, H=H,
                               cdt=compute_dtype)
    vmem = pl.BlockSpec(memory_space=pltpu.MemorySpace.VMEM)
    out = pl.pallas_call(
        kernel,
        out_shape=jax.ShapeDtypeStruct((B_pad, C), jnp.float32),
        in_specs=[vmem] * len(inputs),
        out_specs=vmem,
        scratch_shapes=[
            pltpu.VMEM((Tmax * B_pad, 16 * H), jnp.float32),  # joint gate slab
            pltpu.VMEM((Tmax * B_pad, 8 * H), jnp.float32),   # layer-1 hidden (fwd|rev)
        ],
    )(*inputs)
    return out[:B]


# -----------------------------------------------------------------------------
# Pure-JAX reference (for correctness check)
# -----------------------------------------------------------------------------
def lstm_single_direction_ref(x_tbd, w_ih, w_hh, b):
    H = w_hh.shape[0]
    B = x_tbd.shape[1]

    def step(carry, x_t):
        h, c = carry
        gates = x_t @ w_ih + h @ w_hh + b
        i_g = jax.nn.sigmoid(gates[:, 0 * H:1 * H])
        f_g = jax.nn.sigmoid(gates[:, 1 * H:2 * H])
        g_g = jnp.tanh(gates[:, 2 * H:3 * H])
        o_g = jax.nn.sigmoid(gates[:, 3 * H:4 * H])
        c = f_g * c + i_g * g_g
        h = o_g * jnp.tanh(c)
        return (h, c), h

    init = (jnp.zeros((B, H), jnp.float32), jnp.zeros((B, H), jnp.float32))
    _, hs = jax.lax.scan(step, init, x_tbd)
    return hs


def _bilstm_stack_ref(x_btd, layers):
    x = jnp.transpose(x_btd, (1, 0, 2))  # time-major (T, B, D)
    for (p_fwd, p_bwd) in layers:
        h_fwd = lstm_single_direction_ref(x, *p_fwd)
        h_bwd = lstm_single_direction_ref(x[::-1], *p_bwd)[::-1]
        x = jnp.concatenate([h_fwd, h_bwd], axis=-1)
    return x  # (T, B, 2H)


# -----------------------------------------------------------------------------
# Full AspectLSTM forward
# -----------------------------------------------------------------------------
def aspect_lstm_forward(sentence_ids, aspect_ids, params, use_pallas=True,
                        compute_dtype=jnp.float32):
    emb = params["embedding"]
    sent_emb = emb[sentence_ids]   # (B, Ts, E)  embedding gather = XLA glue
    asp_emb = emb[aspect_ids]      # (B, Ta, E)
    H = params["hidden_dim"]

    if use_pallas:
        return aspect_lstm_forward_pallas(sent_emb, asp_emb, params,
                                          compute_dtype=compute_dtype)

    sent_out = _bilstm_stack_ref(sent_emb, params["sentence_lstm"])  # (Ts,B,2H)
    asp_out = _bilstm_stack_ref(asp_emb, params["aspect_lstm"])      # (Ta,B,2H)
    sent_final = jnp.concatenate([sent_out[-1, :, :H], sent_out[0, :, H:]], axis=1)
    asp_final = jnp.concatenate([asp_out[-1, :, :H], asp_out[0, :, H:]], axis=1)
    combined = jnp.concatenate([sent_final, asp_final], axis=1)      # (B, 4H)
    h = jnp.maximum(combined @ params["fc1_w"] + params["fc1_b"], 0.0)
    return h @ params["fc2_w"] + params["fc2_b"]


# -----------------------------------------------------------------------------
# Deterministic parameter initialization (shapes follow nn.Module.__init__)
# -----------------------------------------------------------------------------
def init_params(key, vocab_size, embed_dim, hidden_dim, num_classes, num_layers=2):
    keys = iter(jax.random.split(key, 64))
    k = 1.0 / jnp.sqrt(hidden_dim)

    def uni(shape):
        return jax.random.uniform(next(keys), shape, jnp.float32, -k, k)

    def lstm_dir(d_in):
        # PyTorch: W_ih (4H, d_in), W_hh (4H, H), b_ih+b_hh (4H,). Stored transposed.
        return (uni((d_in, 4 * hidden_dim)),
                uni((hidden_dim, 4 * hidden_dim)),
                uni((1, 4 * hidden_dim)))

    def bilstm():
        layers = []
        for layer in range(num_layers):
            d_in = embed_dim if layer == 0 else 2 * hidden_dim
            layers.append((lstm_dir(d_in), lstm_dir(d_in)))
        return layers

    embedding = jax.random.normal(next(keys), (vocab_size, embed_dim), jnp.float32)
    embedding = embedding.at[0].set(0.0)  # padding_idx=0

    concat_dim = hidden_dim * 4
    params = {
        "hidden_dim": hidden_dim,
        "embedding": embedding,
        "sentence_lstm": bilstm(),
        "aspect_lstm": bilstm(),
        "fc1_w": uni((concat_dim, hidden_dim)),
        "fc1_b": uni((1, hidden_dim)),
        "fc2_w": uni((hidden_dim, num_classes)),
        "fc2_b": uni((1, num_classes)),
    }
    return params


if __name__ == "__main__":
    vocab_size, embed_dim, hidden_dim, num_classes = 50, 16, 32, 3
    batch, sent_len, aspect_len = 2, 8, 4

    root = jax.random.PRNGKey(0)
    k_p, k_s, k_a = jax.random.split(root, 3)
    params = init_params(k_p, vocab_size, embed_dim, hidden_dim, num_classes)

    sentence = jax.random.randint(k_s, (batch, sent_len), 1, vocab_size, jnp.int32)
    aspect = jax.random.randint(k_a, (batch, aspect_len), 1, vocab_size, jnp.int32)

    # NOTE: pass compute_dtype=jnp.bfloat16 on v5e/v6e/v7x to halve matmul
    # operand bytes / VMEM footprint (state & accumulation stay f32).
    logits = aspect_lstm_forward(sentence, aspect, params, use_pallas=True)
    logits = jax.block_until_ready(logits)

    ref = aspect_lstm_forward(sentence, aspect, params, use_pallas=False)
    ref = jax.block_until_ready(ref)

    assert logits.shape == (batch, num_classes)
    assert jnp.allclose(logits, ref, atol=1e-2, rtol=1e-2), (logits, ref)

    print("KERNEL_OK")
</pallas_src>

<mosaic_0001>
module attributes {stable_mosaic.version = 11 : i64} {
  func.func @_aspect_lstm_kernel(%arg0: memref<64x64xf32, #tpu.memory_space<vmem>>, %arg1: memref<64x512xf32, #tpu.memory_space<vmem>>, %arg2: memref<128x512xf32, #tpu.memory_space<vmem>>, %arg3: memref<1x512xf32, #tpu.memory_space<vmem>>, %arg4: memref<256x512xf32, #tpu.memory_space<vmem>>, %arg5: memref<128x512xf32, #tpu.memory_space<vmem>>, %arg6: memref<1x512xf32, #tpu.memory_space<vmem>>, %arg7: memref<128x32xf32, #tpu.memory_space<vmem>>, %arg8: memref<1x32xf32, #tpu.memory_space<vmem>>, %arg9: memref<32x3xf32, #tpu.memory_space<vmem>>, %arg10: memref<1x3xf32, #tpu.memory_space<vmem>>, %arg11: memref<8x3xf32, #tpu.memory_space<vmem>>, %arg12: memref<64x512xf32, #tpu.memory_space<vmem>>, %arg13: memref<64x256xf32, #tpu.memory_space<vmem>>) attributes {dimension_semantics = [], scalar_prefetch = 0 : i64, scratch_operands = 2 : i64, tpu.core_type = #tpu.core_type<tc>} {
    %cst = arith.constant 0.000000e+00 : f32
    %0 = vector.broadcast %cst : f32 to vector<64x256xf32>
    %c0 = arith.constant 0 : index
    %c0_0 = arith.constant 0 : index
    %1 = vector.load %arg13[%c0, %c0_0] : memref<64x256xf32, #tpu.memory_space<vmem>>, vector<64x256xf32>
    tpu.vector_store %arg13[%c0, %c0_0], %0 {strides = array<i32>} : memref<64x256xf32, #tpu.memory_space<vmem>>, vector<64x256xf32>,
    %c0_1 = arith.constant 0 : index
    %c0_2 = arith.constant 0 : index
    %2 = vector.load %arg0[%c0_1, %c0_2] : memref<64x64xf32, #tpu.memory_space<vmem>>, vector<64x64xf32>
    %c0_3 = arith.constant 0 : index
    %c0_4 = arith.constant 0 : index
    %3 = vector.load %arg1[%c0_3, %c0_4] : memref<64x512xf32, #tpu.memory_space<vmem>>, vector<64x512xf32>
    %cst_5 = arith.constant dense<0.000000e+00> : vector<64x512xf32>
    %4 = tpu.matmul %2, %3, %cst_5 {dimension_numbers = #tpu.dot_dimension_numbers<[1], [0], [0], [1], [0, 0, 1, 1], [], []>} : vector<64x64xf32>, vector<64x512xf32>, vector<64x512xf32> -> vector<64x512xf32>
    %c0_6 = arith.constant 0 : index
    %c0_7 = arith.constant 0 : index
    %5 = vector.load %arg3[%c0_6, %c0_7] : memref<1x512xf32, #tpu.memory_space<vmem>>, vector<1x512xf32>
    %6 = vector.broadcast %5 : vector<1x512xf32> to vector<64x512xf32>
    %7 = arith.addf %4, %6 : vector<64x512xf32>
    %c0_8 = arith.constant 0 : index
    %c0_9 = arith.constant 0 : index
    %8 = vector.load %arg12[%c0_8, %c0_9] : memref<64x512xf32, #tpu.memory_space<vmem>>, vector<64x512xf32>
    tpu.vector_store %arg12[%c0_8, %c0_9], %7 {strides = array<i32>} : memref<64x512xf32, #tpu.memory_space<vmem>>, vector<64x512xf32>,
    %c0_10 = arith.constant 0 : index
    %c0_11 = arith.constant 0 : index
    %9 = vector.load %arg2[%c0_10, %c0_11] : memref<128x512xf32, #tpu.memory_space<vmem>>, vector<128x512xf32>
    %cst_12 = arith.constant 0.000000e+00 : f32
    %10 = vector.broadcast %cst_12 : f32 to vector<8x128xf32>
    %cst_13 = arith.constant 0.000000e+00 : f32
    %11 = vector.broadcast %cst_13 : f32 to vector<8x128xf32>
    %c0_14 = arith.constant 0 : index
    %c0_15 = arith.constant 0 : index
    %12 = vector.load %arg12[%c0_14, %c0_15] : memref<64x512xf32, #tpu.memory_space<vmem>>, vector<8x512xf32>
    %cst_16 = arith.constant dense<0.000000e+00> : vector<8x512xf32>
    %13 = tpu.matmul %10, %9, %cst_16 {dimension_numbers = #tpu.dot_dimension_numbers<[1], [0], [0], [1], [0, 0, 1, 1], [], []>} : vector<8x128xf32>, vector<128x512xf32>, vector<8x512xf32> -> vector<8x512xf32>
    %14 = arith.addf %12, %13 : vector<8x512xf32>
    %15 = vector.extract_strided_slice %14 {offsets = [0, 0], sizes = [8, 384], strides = [1, 1]} : vector<8x512xf32> to vector<8x384xf32>
    %16 = arith.negf %15 : vector<8x384xf32>
    %17 = math.exp %16 : vector<8x384xf32>
    %cst_17 = arith.constant 1.000000e+00 : f32
    %18 = vector.broadcast %cst_17 : f32 to vector<8x384xf32>
    %19 = arith.addf %18, %17 : vector<8x384xf32>
    %20 = arith.divf %18, %19 : vector<8x384xf32>
    %21 = vector.extract_strided_slice %14 {offsets = [0, 384], sizes = [8, 128], strides = [1, 1]} : vector<8x512xf32> to vector<8x128xf32>
    %22 = math.tanh %21 : vector<8x128xf32>
    %23 = vector.extract_strided_slice %20 {offsets = [0, 128], sizes = [8, 128], strides = [1, 1]} : vector<8x384xf32> to vector<8x128xf32>
    %24 = arith.mulf %23, %11 : vector<8x128xf32>
    %25 = vector.extract_strided_slice %20 {offsets = [0, 0], sizes = [8, 128], strides = [1, 1]} : vector<8x384xf32> to vector<8x128xf32>
    %26 = arith.mulf %25, %22 : vector<8x128xf32>
    %27 = arith.addf %24, %26 : vector<8x128xf32>
    %28 = vector.extract_strided_slice %20 {offsets = [0, 256], sizes = [8, 128], strides = [1, 1]} : vector<8x384xf32> to vector<8x128xf32>
    %29 = math.tanh %27 : vector<8x128xf32>
    %30 = arith.mulf %28, %29 : vector<8x128xf32>
    %31 = vector.extract_strided_slice %30 {offsets = [0, 0], sizes = [8, 64], strides = [1, 1]} : vector<8x128xf32> to vector<8x64xf32>
    %c0_18 = arith.constant 0 : index
    %c0_19 = arith.constant 0 : index
    %32 = vector.load %arg13[%c0_18, %c0_19] : memref<64x256xf32, #tpu.memory_space<vmem>>, vector<8x64xf32>
    tpu.vector_store %arg13[%c0_18, %c0_19], %31 {strides = array<i32>} : memref<64x256xf32, #tpu.memory_space<vmem>>, vector<8x64xf32>,
    %33 = vector.extract_strided_slice %30 {offsets = [0, 64], sizes = [8, 32], strides = [1, 1]} : vector<8x128xf32> to vector<8x32xf32>
    %c56 = arith.constant 56 : index
    %c64 = arith.constant 64 : index
    %34 = vector.load %arg13[%c56, %c64] : memref<64x256xf32, #tpu.memory_space<vmem>>, vector<8x32xf32>
    tpu.vector_store %arg13[%c56, %c64], %33 {strides = array<i32>} : memref<64x256xf32, #tpu.memory_space<vmem>>, vector<8x32xf32>,
    %35 = vector.extract_strided_slice %30 {offsets = [0, 96], sizes = [8, 32], strides = [1, 1]} : vector<8x128xf32> to vector<8x32xf32>
    %c24 = arith.constant 24 : index
    %c96 = arith.constant 96 : index
    %36 = vector.load %arg13[%c24, %c96] : memref<64x256xf32, #tpu.memory_space<vmem>>, vector<8x32xf32>
    tpu.vector_store %arg13[%c24, %c96], %35 {strides = array<i32>} : memref<64x256xf32, #tpu.memory_space<vmem>>, vector<8x32xf32>,
    %37 = vector.extract_strided_slice %30 {offsets = [0, 64], sizes = [8, 64], strides = [1, 1]} : vector<8x128xf32> to vector<8x64xf32>
    %c0_20 = arith.constant 0 : index
    %c128 = arith.constant 128 : index
    %38 = vector.load %arg13[%c0_20, %c128] : memref<64x256xf32, #tpu.memory_space<vmem>>, vector<8x64xf32>
    tpu.vector_store %arg13[%c0_20, %c128], %37 {strides = array<i32>} : memref<64x256xf32, #tpu.memory_space<vmem>>, vector<8x64xf32>,
    %39 = vector.extract_strided_slice %30 {offsets = [0, 0], sizes = [8, 32], strides = [1, 1]} : vector<8x128xf32> to vector<8x32xf32>
    %c56_21 = arith.constant 56 : index
    %c192 = arith.constant 192 : index
    %40 = vector.load %arg13[%c56_21, %c192] : memref<64x256xf32, #tpu.memory_space<vmem>>, vector<8x32xf32>
    tpu.vector_store %arg13[%c56_21, %c192], %39 {strides = array<i32>} : memref<64x256xf32, #tpu.memory_space<vmem>>, vector<8x32xf32>,
    %41 = vector.extract_strided_slice %30 {offsets = [0, 32], sizes = [8, 32], strides = [1, 1]} : vector<8x128xf32> to vector<8x32xf32>
    %c24_22 = arith.constant 24 : index
    %c224 = arith.constant 224 : index
    %42 = vector.load %arg13[%c24_22, %c224] : memref<64x256xf32, #tpu.memory_space<vmem>>, vector<8x32xf32>
    tpu.vector_store %arg13[%c24_22, %c224], %41 {strides = array<i32>} : memref<64x256xf32, #tpu.memory_space<vmem>>, vector<8x32xf32>,
    %c8 = arith.constant 8 : index
    %c0_23 = arith.constant 0 : index
    %43 = vector.load %arg12[%c8, %c0_23] : memref<64x512xf32, #tpu.memory_space<vmem>>, vector<8x512xf32>
    %cst_24 = arith.constant dense<0.000000e+00> : vector<8x512xf32>
    %44 = tpu.matmul %30, %9, %cst_24 {dimension_numbers = #tpu.dot_dimension_numbers<[1], [0], [0], [1], [0, 0, 1, 1], [], []>} : vector<8x128xf32>, vector<128x512xf32>, vector<8x512xf32> -> vector<8x512xf32>
    %45 = arith.addf %43, %44 : vector<8x512xf32>
    %46 = vector.extract_strided_slice %45 {offsets = [0, 0], sizes = [8, 384], strides = [1, 1]} : vector<8x512xf32> to vector<8x384xf32>
    %47 = arith.negf %46 : vector<8x384xf32>
    %48 = math.exp %47 : vector<8x384xf32>
    %cst_25 = arith.constant 1.000000e+00 : f32
    %49 = vector.broadcast %cst_25 : f32 to vector<8x384xf32>
    %50 = arith.addf %49, %48 : vector<8x384xf32>
    %51 = arith.divf %49, %50 : vector<8x384xf32>
    %52 = vector.extract_strided_slice %45 {offsets = [0, 384], sizes = [8, 128], strides = [1, 1]} : vector<8x512xf32> to vector<8x128xf32>
    %53 = math.tanh %52 : vector<8x128xf32>
    %54 = vector.extract_strided_slice %51 {offsets = [0, 128], sizes = [8, 128], strides = [1, 1]} : vector<8x384xf32> to vector<8x128xf32>
    %55 = arith.mulf %54, %27 : vector<8x128xf32>
    %56 = vector.extract_strided_slice %51 {offsets = [0, 0], sizes = [8, 128], strides = [1, 1]} : vector<8x384xf32> to vector<8x128xf32>
    %57 = arith.mulf %56, %53 : vector<8x128xf32>
    %58 = arith.addf %55, %57 : vector<8x128xf32>
    %59 = vector.extract_strided_slice %51 {offsets = [0, 256], sizes = [8, 128], strides = [1, 1]} : vector<8x384xf32> to vector<8x128xf32>
    %60 = math.tanh %58 : vector<8x128xf32>
    %61 = arith.mulf %59, %60 : vector<8x128xf32>
    %62 = vector.extract_strided_slice %61 {offsets = [0, 0], sizes = [8, 64], strides = [1, 1]} : vector<8x128xf32> to vector<8x64xf32>
    %c8_26 = arith.constant 8 : index
    %c0_27 = arith.constant 0 : index
    %63 = vector.load %arg13[%c8_26, %c0_27] : memref<64x256xf32, #tpu.memory_space<vmem>>, vector<8x64xf32>
    tpu.vector_store %arg13[%c8_26, %c0_27], %62 {strides = array<i32>} : memref<64x256xf32, #tpu.memory_space<vmem>>, vector<8x64xf32>,
    %64 = vector.extract_strided_slice %61 {offsets = [0, 64], sizes = [8, 32], strides = [1, 1]} : vector<8x128xf32> to vector<8x32xf32>
    %c48 = arith.constant 48 : index
    %c64_28 = arith.constant 64 : index
    %65 = vector.load %arg13[%c48, %c64_28] : memref<64x256xf32, #tpu.memory_space<vmem>>, vector<8x32xf32>
    tpu.vector_store %arg13[%c48, %c64_28], %64 {strides = array<i32>} : memref<64x256xf32, #tpu.memory_space<vmem>>, vector<8x32xf32>,
    %66 = vector.extract_strided_slice %61 {offsets = [0, 96], sizes = [8, 32], strides = [1, 1]} : vector<8x128xf32> to vector<8x32xf32>
    %c16 = arith.constant 16 : index
    %c96_29 = arith.constant 96 : index
    %67 = vector.load %arg13[%c16, %c96_29] : memref<64x256xf32, #tpu.memory_space<vmem>>, vector<8x32xf32>
    tpu.vector_store %arg13[%c16, %c96_29], %66 {strides = array<i32>} : memref<64x256xf32, #tpu.memory_space<vmem>>, vector<8x32xf32>,
    %68 = vector.extract_strided_slice %61 {offsets = [0, 64], sizes = [8, 64], strides = [1, 1]} : vector<8x128xf32> to vector<8x64xf32>
    %c8_30 = arith.constant 8 : index
    %c128_31 = arith.constant 128 : index
    %69 = vector.load %arg13[%c8_30, %c128_31] : memref<64x256xf32, #tpu.memory_space<vmem>>, vector<8x64xf32>
    tpu.vector_store %arg13[%c8_30, %c128_31], %68 {strides = array<i32>} : memref<64x256xf32, #tpu.memory_space<vmem>>, vector<8x64xf32>,
    %70 = vector.extract_strided_slice %61 {offsets = [0, 0], sizes = [8, 32], strides = [1, 1]} : vector<8x128xf32> to vector<8x32xf32>
    %c48_32 = arith.constant 48 : index
    %c192_33 = arith.constant 192 : index
    %71 = vector.load %arg13[%c48_32, %c192_33] : memref<64x256xf32, #tpu.memory_space<vmem>>, vector<8x32xf32>
    tpu.vector_store %arg13[%c48_32, %c192_33], %70 {strides = array<i32>} : memref<64x256xf32, #tpu.memory_space<vmem>>, vector<8x32xf32>,
    %72 = vector.extract_strided_slice %61 {offsets = [0, 32], sizes = [8, 32], strides = [1, 1]} : vector<8x128xf32> to vector<8x32xf32>
    %c16_34 = arith.constant 16 : index
    %c224_35 = arith.constant 224 : index
    %73 = vector.load %arg13[%c16_34, %c224_35] : memref<64x256xf32, #tpu.memory_space<vmem>>, vector<8x32xf32>
    tpu.vector_store %arg13[%c16_34, %c224_35], %72 {strides = array<i32>} : memref<64x256xf32, #tpu.memory_space<vmem>>, vector<8x32xf32>,
    %c16_36 = arith.constant 16 : index
    %c0_37 = arith.constant 0 : index
    %74 = vector.load %arg12[%c16_36, %c0_37] : memref<64x512xf32, #tpu.memory_space<vmem>>, vector<8x512xf32>
    %cst_38 = arith.constant dense<0.000000e+00> : vector<8x512xf32>
    %75 = tpu.matmul %61, %9, %cst_38 {dimension_numbers = #tpu.dot_dimension_numbers<[1], [0], [0], [1], [0, 0, 1, 1], [], []>} : vector<8x128xf32>, vector<128x512xf32>, vector<8x512xf32> -> vector<8x512xf32>
    %76 = arith.addf %74, %75 : vector<8x512xf32>
    %77 = vector.extract_strided_slice %76 {offsets = [0, 0], sizes = [8, 384], strides = [1, 1]} : vector<8x512xf32> to vector<8x384xf32>
    %78 = arith.negf %77 : vector<8x384xf32>
    %79 = math.exp %78 : vector<8x384xf32>
    %cst_39 = arith.constant 1.000000e+00 : f32
    %80 = vector.broadcast %cst_39 : f32 to vector<8x384xf32>
    %81 = arith.addf %80, %79 : vector<8x384xf32>
    %82 = arith.divf %80, %81 : vector<8x384xf32>
    %83 = vector.extract_strided_slice %76 {offsets = [0, 384], sizes = [8, 128], strides = [1, 1]} : vector<8x512xf32> to vector<8x128xf32>
    %84 = math.tanh %83 : vector<8x128xf32>
    %85 = vector.extract_strided_slice %82 {offsets = [0, 128], sizes = [8, 128], strides = [1, 1]} : vector<8x384xf32> to vector<8x128xf32>
    %86 = arith.mulf %85, %58 : vector<8x128xf32>
    %87 = vector.extract_strided_slice %82 {offsets = [0, 0], sizes = [8, 128], strides = [1, 1]} : vector<8x384xf32> to vector<8x128xf32>
    %88 = arith.mulf %87, %84 : vector<8x128xf32>
    %89 = arith.addf %86, %88 : vector<8x128xf32>
    %90 = vector.extract_strided_slice %82 {offsets = [0, 256], sizes = [8, 128], strides = [1, 1]} : vector<8x384xf32> to vector<8x128xf32>
    %91 = math.tanh %89 : vector<8x128xf32>
    %92 = arith.mulf %90, %91 : vector<8x128xf32>
    %93 = vector.extract_strided_slice %92 {offsets = [0, 0], sizes = [8, 64], strides = [1, 1]} : vector<8x128xf32> to vector<8x64xf32>
    %c16_40 = arith.constant 16 : index
    %c0_41 = arith.constant 0 : index
    %94 = vector.load %arg13[%c16_40, %c0_41] : memref<64x256xf32, #tpu.memory_space<vmem>>, vector<8x64xf32>
    tpu.vector_store %arg13[%c16_40, %c0_41], %93 {strides = array<i32>} : memref<64x256xf32, #tpu.memory_space<vmem>>, vector<8x64xf32>,
    %95 = vector.extract_strided_slice %92 {offsets = [0, 64], sizes = [8, 32], strides = [1, 1]} : vector<8x128xf32> to vector<8x32xf32>
    %c40 = arith.constant 40 : index
    %c64_42 = arith.constant 64 : index
    %96 = vector.load %arg13[%c40, %c64_42] : memref<64x256xf32, #tpu.memory_space<vmem>>, vector<8x32xf32>
    tpu.vector_store %arg13[%c40, %c64_42], %95 {strides = array<i32>} : memref<64x256xf32, #tpu.memory_space<vmem>>, vector<8x32xf32>,
    %97 = vector.extract_strided_slice %92 {offsets = [0, 96], sizes = [8, 32], strides = [1, 1]} : vector<8x128xf32> to vector<8x32xf32>
    %c8_43 = arith.constant 8 : index
    %c96_44 = arith.constant 96 : index
    %98 = vector.load %arg13[%c8_43, %c96_44] : memref<64x256xf32, #tpu.memory_space<vmem>>, vector<8x32xf32>
    tpu.vector_store %arg13[%c8_43, %c96_44], %97 {strides = array<i32>} : memref<64x256xf32, #tpu.memory_space<vmem>>, vector<8x32xf32>,
    %99 = vector.extract_strided_slice %92 {offsets = [0, 64], sizes = [8, 64], strides = [1, 1]} : vector<8x128xf32> to vector<8x64xf32>
    %c16_45 = arith.constant 16 : index
    %c128_46 = arith.constant 128 : index
    %100 = vector.load %arg13[%c16_45, %c128_46] : memref<64x256xf32, #tpu.memory_space<vmem>>, vector<8x64xf32>
    tpu.vector_store %arg13[%c16_45, %c128_46], %99 {strides = array<i32>} : memref<64x256xf32, #tpu.memory_space<vmem>>, vector<8x64xf32>,
    %101 = vector.extract_strided_slice %92 {offsets = [0, 0], sizes = [8, 32], strides = [1, 1]} : vector<8x128xf32> to vector<8x32xf32>
    %c40_47 = arith.constant 40 : index
    %c192_48 = arith.constant 192 : index
    %102 = vector.load %arg13[%c40_47, %c192_48] : memref<64x256xf32, #tpu.memory_space<vmem>>, vector<8x32xf32>
    tpu.vector_store %arg13[%c40_47, %c192_48], %101 {strides = array<i32>} : memref<64x256xf32, #tpu.memory_space<vmem>>, vector<8x32xf32>,
    %103 = vector.extract_strided_slice %92 {offsets = [0, 32], sizes = [8, 32], strides = [1, 1]} : vector<8x128xf32> to vector<8x32xf32>
    %c8_49 = arith.constant 8 : index
    %c224_50 = arith.constant 224 : index
    %104 = vector.load %arg13[%c8_49, %c224_50] : memref<64x256xf32, #tpu.memory_space<vmem>>, vector<8x32xf32>
    tpu.vector_store %arg13[%c8_49, %c224_50], %103 {strides = array<i32>} : memref<64x256xf32, #tpu.memory_space<vmem>>, vector<8x32xf32>,
    %c24_51 = arith.constant 24 : index
    %c0_52 = arith.constant 0 : index
    %105 = vector.load %arg12[%c24_51, %c0_52] : memref<64x512xf32, #tpu.memory_space<vmem>>, vector<8x512xf32>
    %cst_53 = arith.constant dense<0.000000e+00> : vector<8x512xf32>
    %106 = tpu.matmul %92, %9, %cst_53 {dimension_numbers = #tpu.dot_dimension_numbers<[1], [0], [0], [1], [0, 0, 1, 1], [], []>} : vector<8x128xf32>, vector<128x512xf32>, vector<8x512xf32> -> vector<8x512xf32>
    %107 = arith.addf %105, %106 : vector<8x512xf32>
    %108 = vector.extract_strided_slice %107 {offsets = [0, 0], sizes = [8, 384], strides = [1, 1]} : vector<8x512xf32> to vector<8x384xf32>
    %109 = arith.negf %108 : vector<8x384xf32>
    %110 = math.exp %109 : vector<8x384xf32>
    %cst_54 = arith.constant 1.000000e+00 : f32
    %111 = vector.broadcast %cst_54 : f32 to vector<8x384xf32>
    %112 = arith.addf %111, %110 : vector<8x384xf32>
    %113 = arith.divf %111, %112 : vector<8x384xf32>
    %114 = vector.extract_strided_slice %107 {offsets = [0, 384], sizes = [8, 128], strides = [1, 1]} : vector<8x512xf32> to vector<8x128xf32>
    %115 = math.tanh %114 : vector<8x128xf32>
    %116 = vector.extract_strided_slice %113 {offsets = [0, 128], sizes = [8, 128], strides = [1, 1]} : vector<8x384xf32> to vector<8x128xf32>
    %117 = arith.mulf %116, %89 : vector<8x128xf32>
    %118 = vector.extract_strided_slice %113 {offsets = [0, 0], sizes = [8, 128], strides = [1, 1]} : vector<8x384xf32> to vector<8x128xf32>
    %119 = arith.mulf %118, %115 : vector<8x128xf32>
    %120 = arith.addf %117, %119 : vector<8x128xf32>
    %121 = vector.extract_strided_slice %113 {offsets = [0, 256], sizes = [8, 128], strides = [1, 1]} : vector<8x384xf32> to vector<8x128xf32>
    %122 = math.tanh %120 : vector<8x128xf32>
    %123 = arith.mulf %121, %122 : vector<8x128xf32>
    %124 = vector.extract_strided_slice %123 {offsets = [0, 0], sizes = [8, 64], strides = [1, 1]} : vector<8x128xf32> to vector<8x64xf32>
    %c24_55 = arith.constant 24 : index
    %c0_56 = arith.constant 0 : index
    %125 = vector.load %arg13[%c24_55, %c0_56] : memref<64x256xf32, #tpu.memory_space<vmem>>, vector<8x64xf32>
    tpu.vector_store %arg13[%c24_55, %c0_56], %124 {strides = array<i32>} : memref<64x256xf32, #tpu.memory_space<vmem>>, vector<8x64xf32>,
    %126 = vector.extract_strided_slice %123 {offsets = [0, 64], sizes = [8, 32], strides = [1, 1]} : vector<8x128xf32> to vector<8x32xf32>
    %c32 = arith.constant 32 : index
    %c64_57 = arith.constant 64 : index
    %127 = vector.load %arg13[%c32, %c64_57] : memref<64x256xf32, #tpu.memory_space<vmem>>, vector<8x32xf32>
    tpu.vector_store %arg13[%c32, %c64_57], %126 {strides = array<i32>} : memref<64x256xf32, #tpu.memory_space<vmem>>, vector<8x32xf32>,
    %128 = vector.extract_strided_slice %123 {offsets = [0, 96], sizes = [8, 32], strides = [1, 1]} : vector<8x128xf32> to vector<8x32xf32>
    %c0_58 = arith.constant 0 : index
    %c96_59 = arith.constant 96 : index
    %129 = vector.load %arg13[%c0_58, %c96_59] : memref<64x256xf32, #tpu.memory_space<vmem>>, vector<8x32xf32>
    tpu.vector_store %arg13[%c0_58, %c96_59], %128 {strides = array<i32>} : memref<64x256xf32, #tpu.memory_space<vmem>>, vector<8x32xf32>,
    %130 = vector.extract_strided_slice %123 {offsets = [0, 64], sizes = [8, 64], strides = [1, 1]} : vector<8x128xf32> to vector<8x64xf32>
    %c24_60 = arith.constant 24 : index
    %c128_61 = arith.constant 128 : index
    %131 = vector.load %arg13[%c24_60, %c128_61] : memref<64x256xf32, #tpu.memory_space<vmem>>, vector<8x64xf32>
    tpu.vector_store %arg13[%c24_60, %c128_61], %130 {strides = array<i32>} : memref<64x256xf32, #tpu.memory_space<vmem>>, vector<8x64xf32>,
    %132 = vector.extract_strided_slice %123 {offsets = [0, 0], sizes = [8, 32], strides = [1, 1]} : vector<8x128xf32> to vector<8x32xf32>
    %c32_62 = arith.constant 32 : index
    %c192_63 = arith.constant 192 : index
    %133 = vector.load %arg13[%c32_62, %c192_63] : memref<64x256xf32, #tpu.memory_space<vmem>>, vector<8x32xf32>
    tpu.vector_store %arg13[%c32_62, %c192_63], %132 {strides = array<i32>} : memref<64x256xf32, #tpu.memory_space<vmem>>, vector<8x32xf32>,
    %134 = vector.extract_strided_slice %123 {offsets = [0, 32], sizes = [8, 32], strides = [1, 1]} : vector<8x128xf32> to vector<8x32xf32>
    %c0_64 = arith.constant 0 : index
    %c224_65 = arith.constant 224 : index
    %135 = vector.load %arg13[%c0_64, %c224_65] : memref<64x256xf32, #tpu.memory_space<vmem>>, vector<8x32xf32>
    tpu.vector_store %arg13[%c0_64, %c224_65], %134 {strides = array<i32>} : memref<64x256xf32, #tpu.memory_space<vmem>>, vector<8x32xf32>,
    %c32_66 = arith.constant 32 : index
    %c0_67 = arith.constant 0 : index
    %136 = vector.load %arg12[%c32_66, %c0_67] : memref<64x512xf32, #tpu.memory_space<vmem>>, vector<8x512xf32>
    %cst_68 = arith.constant dense<0.000000e+00> : vector<8x512xf32>
    %137 = tpu.matmul %123, %9, %cst_68 {dimension_numbers = #tpu.dot_dimension_numbers<[1], [0], [0], [1], [0, 0, 1, 1], [], []>} : vector<8x128xf32>, vector<128x512xf32>, vector<8x512xf32> -> vector<8x512xf32>
    %138 = arith.addf %136, %137 : vector<8x512xf32>
    %139 = vector.extract_strided_slice %138 {offsets = [0, 0], sizes = [8, 384], strides = [1, 1]} : vector<8x512xf32> to vector<8x384xf32>
    %140 = arith.negf %139 : vector<8x384xf32>
    %141 = math.exp %140 : vector<8x384xf32>
    %cst_69 = arith.constant 1.000000e+00 : f32
    %142 = vector.broadcast %cst_69 : f32 to vector<8x384xf32>
    %143 = arith.addf %142, %141 : vector<8x384xf32>
    %144 = arith.divf %142, %143 : vector<8x384xf32>
    %145 = vector.extract_strided_slice %138 {offsets = [0, 384], sizes = [8, 128], strides = [1, 1]} : vector<8x512xf32> to vector<8x128xf32>
    %146 = math.tanh %145 : vector<8x128xf32>
    %147 = vector.extract_strided_slice %144 {offsets = [0, 128], sizes = [8, 128], strides = [1, 1]} : vector<8x384xf32> to vector<8x128xf32>
    %148 = arith.mulf %147, %120 : vector<8x128xf32>
    %149 = vector.extract_strided_slice %144 {offsets = [0, 0], sizes = [8, 128], strides = [1, 1]} : vector<8x384xf32> to vector<8x128xf32>
    %150 = arith.mulf %149, %146 : vector<8x128xf32>
    %151 = arith.addf %148, %150 : vector<8x128xf32>
    %152 = vector.extract_strided_slice %144 {offsets = [0, 256], sizes = [8, 128], strides = [1, 1]} : vector<8x384xf32> to vector<8x128xf32>
    %153 = math.tanh %151 : vector<8x128xf32>
    %154 = arith.mulf %152, %153 : vector<8x128xf32>
    %155 = vector.extract_strided_slice %154 {offsets = [0, 0], sizes = [8, 64], strides = [1, 1]} : vector<8x128xf32> to vector<8x64xf32>
    %c32_70 = arith.constant 32 : index
    %c0_71 = arith.constant 0 : index
    %156 = vector.load %arg13[%c32_70, %c0_71] : memref<64x256xf32, #tpu.memory_space<vmem>>, vector<8x64xf32>
    tpu.vector_store %arg13[%c32_70, %c0_71], %155 {strides = array<i32>} : memref<64x256xf32, #tpu.memory_space<vmem>>, vector<8x64xf32>,
    %157 = vector.extract_strided_slice %154 {offsets = [0, 64], sizes = [8, 32], strides = [1, 1]} : vector<8x128xf32> to vector<8x32xf32>
    %c24_72 = arith.constant 24 : index
    %c64_73 = arith.constant 64 : index
    %158 = vector.load %arg13[%c24_72, %c64_73] : memref<64x256xf32, #tpu.memory_space<vmem>>, vector<8x32xf32>
    tpu.vector_store %arg13[%c24_72, %c64_73], %157 {strides = array<i32>} : memref<64x256xf32, #tpu.memory_space<vmem>>, vector<8x32xf32>,
    %159 = vector.extract_strided_slice %154 {offsets = [0, 64], sizes = [8, 64], strides = [1, 1]} : vector<8x128xf32> to vector<8x64xf32>
    %c32_74 = arith.constant 32 : index
    %c128_75 = arith.constant 128 : index
    %160 = vector.load %arg13[%c32_74, %c128_75] : memref<64x256xf32, #tpu.memory_space<vmem>>, vector<8x64xf32>
    tpu.vector_store %arg13[%c32_74, %c128_75], %159 {strides = array<i32>} : memref<64x256xf32, #tpu.memory_space<vmem>>, vector<8x64xf32>,
    %161 = vector.extract_strided_slice %154 {offsets = [0, 0], sizes = [8, 32], strides = [1, 1]} : vector<8x128xf32> to vector<8x32xf32>
    %c24_76 = arith.constant 24 : index
    %c192_77 = arith.constant 192 : index
    %162 = vector.load %arg13[%c24_76, %c192_77] : memref<64x256xf32, #tpu.memory_space<vmem>>, vector<8x32xf32>
    tpu.vector_store %arg13[%c24_76, %c192_77], %161 {strides = array<i32>} : memref<64x256xf32, #tpu.memory_space<vmem>>, vector<8x32xf32>,
    %c40_78 = arith.constant 40 : index
    %c0_79 = arith.constant 0 : index
    %163 = vector.load %arg12[%c40_78, %c0_79] : memref<64x512xf32, #tpu.memory_space<vmem>>, vector<8x512xf32>
    %cst_80 = arith.constant dense<0.000000e+00> : vector<8x512xf32>
    %164 = tpu.matmul %154, %9, %cst_80 {dimension_numbers = #tpu.dot_dimension_numbers<[1], [0], [0], [1], [0, 0, 1, 1], [], []>} : vector<8x128xf32>, vector<128x512xf32>, vector<8x512xf32> -> vector<8x512xf32>
    %165 = arith.addf %163, %164 : vector<8x512xf32>
    %166 = vector.extract_strided_slice %165 {offsets = [0, 0], sizes = [8, 384], strides = [1, 1]} : vector<8x512xf32> to vector<8x384xf32>
    %167 = arith.negf %166 : vector<8x384xf32>
    %168 = math.exp %167 : vector<8x384xf32>
    %cst_81 = arith.constant 1.000000e+00 : f32
    %169 = vector.broadcast %cst_81 : f32 to vector<8x384xf32>
    %170 = arith.addf %169, %168 : vector<8x384xf32>
    %171 = arith.divf %169, %170 : vector<8x384xf32>
    %172 = vector.extract_strided_slice %165 {offsets = [0, 384], sizes = [8, 128], strides = [1, 1]} : vector<8x512xf32> to vector<8x128xf32>
    %173 = math.tanh %172 : vector<8x128xf32>
    %174 = vector.extract_strided_slice %171 {offsets = [0, 128], sizes = [8, 128], strides = [1, 1]} : vector<8x384xf32> to vector<8x128xf32>
    %175 = arith.mulf %174, %151 : vector<8x128xf32>
    %176 = vector.extract_strided_slice %171 {offsets = [0, 0], sizes = [8, 128], strides = [1, 1]} : vector<8x384xf32> to vector<8x128xf32>
    %177 = arith.mulf %176, %173 : vector<8x128xf32>
    %178 = arith.addf %175, %177 : vector<8x128xf32>
    %179 = vector.extract_strided_slice %171 {offsets = [0, 256], sizes = [8, 128], strides = [1, 1]} : vector<8x384xf32> to vector<8x128xf32>
    %180 = math.tanh %178 : vector<8x128xf32>
    %181 = arith.mulf %179, %180 : vector<8x128xf32>
    %182 = vector.extract_strided_slice %181 {offsets = [0, 0], sizes = [8, 64], strides = [1, 1]} : vector<8x128xf32> to vector<8x64xf32>
    %c40_82 = arith.constant 40 : index
    %c0_83 = arith.constant 0 : index
    %183 = vector.load %arg13[%c40_82, %c0_83] : memref<64x256xf32, #tpu.memory_space<vmem>>, vector<8x64xf32>
    tpu.vector_store %arg13[%c40_82, %c0_83], %182 {strides = array<i32>} : memref<64x256xf32, #tpu.memory_space<vmem>>, vector<8x64xf32>,
    %184 = vector.extract_strided_slice %181 {offsets = [0, 64], sizes = [8, 32], strides = [1, 1]} : vector<8x128xf32> to vector<8x32xf32>
    %c16_84 = arith.constant 16 : index
    %c64_85 = arith.constant 64 : index
    %185 = vector.load %arg13[%c16_84, %c64_85] : memref<64x256xf32, #tpu.memory_space<vmem>>, vector<8x32xf32>
    tpu.vector_store %arg13[%c16_84, %c64_85], %184 {strides = array<i32>} : memref<64x256xf32, #tpu.memory_space<vmem>>, vector<8x32xf32>,
    %186 = vector.extract_strided_slice %181 {offsets = [0, 64], sizes = [8, 64], strides = [1, 1]} : vector<8x128xf32> to vector<8x64xf32>
    %c40_86 = arith.constant 40 : index
    %c128_87 = arith.constant 128 : index
    %187 = vector.load %arg13[%c40_86, %c128_87] : memref<64x256xf32, #tpu.memory_space<vmem>>, vector<8x64xf32>
    tpu.vector_store %arg13[%c40_86, %c128_87], %186 {strides = array<i32>} : memref<64x256xf32, #tpu.memory_space<vmem>>, vector<8x64xf32>,
    %188 = vector.extract_strided_slice %181 {offsets = [0, 0], sizes = [8, 32], strides = [1, 1]} : vector<8x128xf32> to vector<8x32xf32>
    %c16_88 = arith.constant 16 : index
    %c192_89 = arith.constant 192 : index
    %189 = vector.load %arg13[%c16_88, %c192_89] : memref<64x256xf32, #tpu.memory_space<vmem>>, vector<8x32xf32>
    tpu.vector_store %arg13[%c16_88, %c192_89], %188 {strides = array<i32>} : memref<64x256xf32, #tpu.memory_space<vmem>>, vector<8x32xf32>,
    %c48_90 = arith.constant 48 : index
    %c0_91 = arith.constant 0 : index
    %190 = vector.load %arg12[%c48_90, %c0_91] : memref<64x512xf32, #tpu.memory_space<vmem>>, vector<8x512xf32>
    %cst_92 = arith.constant dense<0.000000e+00> : vector<8x512xf32>
    %191 = tpu.matmul %181, %9, %cst_92 {dimension_numbers = #tpu.dot_dimension_numbers<[1], [0], [0], [1], [0, 0, 1, 1], [], []>} : vector<8x128xf32>, vector<128x512xf32>, vector<8x512xf32> -> vector<8x512xf32>
    %192 = arith.addf %190, %191 : vector<8x512xf32>
    %193 = vector.extract_strided_slice %192 {offsets = [0, 0], sizes = [8, 384], strides = [1, 1]} : vector<8x512xf32> to vector<8x384xf32>
    %194 = arith.negf %193 : vector<8x384xf32>
    %195 = math.exp %194 : vector<8x384xf32>
    %cst_93 = arith.constant 1.000000e+00 : f32
    %196 = vector.broadcast %cst_93 : f32 to vector<8x384xf32>
    %197 = arith.addf %196, %195 : vector<8x384xf32>
    %198 = arith.divf %196, %197 : vector<8x384xf32>
    %199 = vector.extract_strided_slice %192 {offsets = [0, 384], sizes = [8, 128], strides = [1, 1]} : vector<8x512xf32> to vector<8x128xf32>
    %200 = math.tanh %199 : vector<8x128xf32>
    %201 = vector.extract_strided_slice %198 {offsets = [0, 128], sizes = [8, 128], strides = [1, 1]} : vector<8x384xf32> to vector<8x128xf32>
    %202 = arith.mulf %201, %178 : vector<8x128xf32>
    %203 = vector.extract_strided_slice %198 {offsets = [0, 0], sizes = [8, 128], strides = [1, 1]} : vector<8x384xf32> to vector<8x128xf32>
    %204 = arith.mulf %203, %200 : vector<8x128xf32>
    %205 = arith.addf %202, %204 : vector<8x128xf32>
    %206 = vector.extract_strided_slice %198 {offsets = [0, 256], sizes = [8, 128], strides = [1, 1]} : vector<8x384xf32> to vector<8x128xf32>
    %207 = math.tanh %205 : vector<8x128xf32>
    %208 = arith.mulf %206, %207 : vector<8x128xf32>
    %209 = vector.extract_strided_slice %208 {offsets = [0, 0], sizes = [8, 64], strides = [1, 1]} : vector<8x128xf32> to vector<8x64xf32>
    %c48_94 = arith.constant 48 : index
    %c0_95 = arith.constant 0 : index
    %210 = vector.load %arg13[%c48_94, %c0_95] : memref<64x256xf32, #tpu.memory_space<vmem>>, vector<8x64xf32>
    tpu.vector_store %arg13[%c48_94, %c0_95], %209 {strides = array<i32>} : memref<64x256xf32, #tpu.memory_space<vmem>>, vector<8x64xf32>,
    %211 = vector.extract_strided_slice %208 {offsets = [0, 64], sizes = [8, 32], strides = [1, 1]} : vector<8x128xf32> to vector<8x32xf32>
    %c8_96 = arith.constant 8 : index
    %c64_97 = arith.constant 64 : index
    %212 = vector.load %arg13[%c8_96, %c64_97] : memref<64x256xf32, #tpu.memory_space<vmem>>, vector<8x32xf32>
    tpu.vector_store %arg13[%c8_96, %c64_97], %211 {strides = array<i32>} : memref<64x256xf32, #tpu.memory_space<vmem>>, vector<8x32xf32>,
    %213 = vector.extract_strided_slice %208 {offsets = [0, 64], sizes = [8, 64], strides = [1, 1]} : vector<8x128xf32> to vector<8x64xf32>
    %c48_98 = arith.constant 48 : index
    %c128_99 = arith.constant 128 : index
    %214 = vector.load %arg13[%c48_98, %c128_99] : memref<64x256xf32, #tpu.memory_space<vmem>>, vector<8x64xf32>
    tpu.vector_store %arg13[%c48_98, %c128_99], %213 {strides = array<i32>} : memref<64x256xf32, #tpu.memory_space<vmem>>, vector<8x64xf32>,
    %215 = vector.extract_strided_slice %208 {offsets = [0, 0], sizes = [8, 32], strides = [1, 1]} : vector<8x128xf32> to vector<8x32xf32>
    %c8_100 = arith.constant 8 : index
    %c192_101 = arith.constant 192 : index
    %216 = vector.load %arg13[%c8_100, %c192_101] : memref<64x256xf32, #tpu.memory_space<vmem>>, vector<8x32xf32>
    tpu.vector_store %arg13[%c8_100, %c192_101], %215 {strides = array<i32>} : memref<64x256xf32, #tpu.memory_space<vmem>>, vector<8x32xf32>,
    %c56_102 = arith.constant 56 : index
    %c0_103 = arith.constant 0 : index
    %217 = vector.load %arg12[%c56_102, %c0_103] : memref<64x512xf32, #tpu.memory_space<vmem>>, vector<8x512xf32>
    %cst_104 = arith.constant dense<0.000000e+00> : vector<8x512xf32>
    %218 = tpu.matmul %208, %9, %cst_104 {dimension_numbers = #tpu.dot_dimension_numbers<[1], [0], [0], [1], [0, 0, 1, 1], [], []>} : vector<8x128xf32>, vector<128x512xf32>, vector<8x512xf32> -> vector<8x512xf32>
    %219 = arith.addf %217, %218 : vector<8x512xf32>
    %220 = vector.extract_strided_slice %219 {offsets = [0, 0], sizes = [8, 384], strides = [1, 1]} : vector<8x512xf32> to vector<8x384xf32>
    %221 = arith.negf %220 : vector<8x384xf32>
    %222 = math.exp %221 : vector<8x384xf32>
    %cst_105 = arith.constant 1.000000e+00 : f32
    %223 = vector.broadcast %cst_105 : f32 to vector<8x384xf32>
    %224 = arith.addf %223, %222 : vector<8x384xf32>
    %225 = arith.divf %223, %224 : vector<8x384xf32>
    %226 = vector.extract_strided_slice %219 {offsets = [0, 384], sizes = [8, 128], strides = [1, 1]} : vector<8x512xf32> to vector<8x128xf32>
    %227 = math.tanh %226 : vector<8x128xf32>
    %228 = vector.extract_strided_slice %225 {offsets = [0, 128], sizes = [8, 128], strides = [1, 1]} : vector<8x384xf32> to vector<8x128xf32>
    %229 = arith.mulf %228, %205 : vector<8x128xf32>
    %230 = vector.extract_strided_slice %225 {offsets = [0, 0], sizes = [8, 128], strides = [1, 1]} : vector<8x384xf32> to vector<8x128xf32>
    %231 = arith.mulf %230, %227 : vector<8x128xf32>
    %232 = arith.addf %229, %231 : vector<8x128xf32>
    %233 = vector.extract_strided_slice %225 {offsets = [0, 256], sizes = [8, 128], strides = [1, 1]} : vector<8x384xf32> to vector<8x128xf32>
    %234 = math.tanh %232 : vector<8x128xf32>
    %235 = arith.mulf %233, %234 : vector<8x128xf32>
    %236 = vector.extract_strided_slice %235 {offsets = [0, 0], sizes = [8, 64], strides = [1, 1]} : vector<8x128xf32> to vector<8x64xf32>
    %c56_106 = arith.constant 56 : index
    %c0_107 = arith.constant 0 : index
    %237 = vector.load %arg13[%c56_106, %c0_107] : memref<64x256xf32, #tpu.memory_space<vmem>>, vector<8x64xf32>
    tpu.vector_store %arg13[%c56_106, %c0_107], %236 {strides = array<i32>} : memref<64x256xf32, #tpu.memory_space<vmem>>, vector<8x64xf32>,
    %238 = vector.extract_strided_slice %235 {offsets = [0, 64], sizes = [8, 32], strides = [1, 1]} : vector<8x128xf32> to vector<8x32xf32>
    %c0_108 = arith.constant 0 : index
    %c64_109 = arith.constant 64 : index
    %239 = vector.load %arg13[%c0_108, %c64_109] : memref<64x256xf32, #tpu.memory_space<vmem>>, vector<8x32xf32>
    tpu.vector_store %arg13[%c0_108, %c64_109], %238 {strides = array<i32>} : memref<64x256xf32, #tpu.memory_space<vmem>>, vector<8x32xf32>,
    %240 = vector.extract_strided_slice %235 {offsets = [0, 64], sizes = [8, 64], strides = [1, 1]} : vector<8x128xf32> to vector<8x64xf32>
    %c56_110 = arith.constant 56 : index
    %c128_111 = arith.constant 128 : index
    %241 = vector.load %arg13[%c56_110, %c128_111] : memref<64x256xf32, #tpu.memory_space<vmem>>, vector<8x64xf32>
    tpu.vector_store %arg13[%c56_110, %c128_111], %240 {strides = array<i32>} : memref<64x256xf32, #tpu.memory_space<vmem>>, vector<8x64xf32>,
    %242 = vector.extract_strided_slice %235 {offsets = [0, 0], sizes = [8, 32], strides = [1, 1]} : vector<8x128xf32> to vector<8x32xf32>
    %c0_112 = arith.constant 0 : index
    %c192_113 = arith.constant 192 : index
    %243 = vector.load %arg13[%c0_112, %c192_113] : memref<64x256xf32, #tpu.memory_space<vmem>>, vector<8x32xf32>
    tpu.vector_store %arg13[%c0_112, %c192_113], %242 {strides = array<i32>} : memref<64x256xf32, #tpu.memory_space<vmem>>, vector<8x32xf32>,
    %c0_114 = arith.constant 0 : index
    %c0_115 = arith.constant 0 : index
    %244 = vector.load %arg13[%c0_114, %c0_115] : memref<64x256xf32, #tpu.memory_space<vmem>>, vector<64x256xf32>
    %c0_116 = arith.constant 0 : index
    %c0_117 = arith.constant 0 : index
    %245 = vector.load %arg4[%c0_116, %c0_117] : memref<256x512xf32, #tpu.memory_space<vmem>>, vector<256x512xf32>
    %cst_118 = arith.constant dense<0.000000e+00> : vector<64x512xf32>
    %246 = tpu.matmul %244, %245, %cst_118 {dimension_numbers = #tpu.dot_dimension_numbers<[1], [0], [0], [1], [0, 0, 1, 1], [], []>} : vector<64x256xf32>, vector<256x512xf32>, vector<64x512xf32> -> vector<64x512xf32>
    %c0_119 = arith.constant 0 : index
    %c0_120 = arith.constant 0 : index
    %247 = vector.load %arg6[%c0_119, %c0_120] : memref<1x512xf32, #tpu.memory_space<vmem>>, vector<1x512xf32>
    %248 = vector.broadcast %247 : vector<1x512xf32> to vector<64x512xf32>
    %249 = arith.addf %246, %248 : vector<64x512xf32>
    %c0_121 = arith.constant 0 : index
    %c0_122 = arith.constant 0 : index
    %250 = vector.load %arg12[%c0_121, %c0_122] : memref<64x512xf32, #tpu.memory_space<vmem>>, vector<64x512xf32>
    tpu.vector_store %arg12[%c0_121, %c0_122], %249 {strides = array<i32>} : memref<64x512xf32, #tpu.memory_space<vmem>>, vector<64x512xf32>,
    %c0_123 = arith.constant 0 : index
    %c0_124 = arith.constant 0 : index
    %251 = vector.load %arg5[%c0_123, %c0_124] : memref<128x512xf32, #tpu.memory_space<vmem>>, vector<128x512xf32>
    %cst_125 = arith.constant 0.000000e+00 : f32
    %252 = vector.broadcast %cst_125 : f32 to vector<8x128xf32>
    %cst_126 = arith.constant 0.000000e+00 : f32
    %253 = vector.broadcast %cst_126 : f32 to vector<8x128xf32>
    %c0_127 = arith.constant 0 : index
    %c0_128 = arith.constant 0 : index
    %254 = vector.load %arg12[%c0_127, %c0_128] : memref<64x512xf32, #tpu.memory_space<vmem>>, vector<8x512xf32>
    %cst_129 = arith.constant dense<0.000000e+00> : vector<8x512xf32>
    %255 = tpu.matmul %252, %251, %cst_129 {dimension_numbers = #tpu.dot_dimension_numbers<[1], [0], [0], [1], [0, 0, 1, 1], [], []>} : vector<8x128xf32>, vector<128x512xf32>, vector<8x512xf32> -> vector<8x512xf32>
    %256 = arith.addf %254, %255 : vector<8x512xf32>
    %257 = vector.extract_strided_slice %256 {offsets = [0, 0], sizes = [8, 384], strides = [1, 1]} : vector<8x512xf32> to vector<8x384xf32>
    %258 = arith.negf %257 : vector<8x384xf32>
    %259 = math.exp %258 : vector<8x384xf32>
    %cst_130 = arith.constant 1.000000e+00 : f32
    %260 = vector.broadcast %cst_130 : f32 to vector<8x384xf32>
    %261 = arith.addf %260, %259 : vector<8x384xf32>
    %262 = arith.divf %260, %261 : vector<8x384xf32>
    %263 = vector.extract_strided_slice %256 {offsets = [0, 384], sizes = [8, 128], strides = [1, 1]} : vector<8x512xf32> to vector<8x128xf32>
    %264 = math.tanh %263 : vector<8x128xf32>
    %265 = vector.extract_strided_slice %262 {offsets = [0, 128], sizes = [8, 128], strides = [1, 1]} : vector<8x384xf32> to vector<8x128xf32>
    %266 = arith.mulf %265, %253 : vector<8x128xf32>
    %267 = vector.extract_strided_slice %262 {offsets = [0, 0], sizes = [8, 128], strides = [1, 1]} : vector<8x384xf32> to vector<8x128xf32>
    %268 = arith.mulf %267, %264 : vector<8x128xf32>
    %269 = arith.addf %266, %268 : vector<8x128xf32>
    %270 = vector.extract_strided_slice %262 {offsets = [0, 256], sizes = [8, 128], strides = [1, 1]} : vector<8x384xf32> to vector<8x128xf32>
    %271 = math.tanh %269 : vector<8x128xf32>
    %272 = arith.mulf %270, %271 : vector<8x128xf32>
    %c8_131 = arith.constant 8 : index
    %c0_132 = arith.constant 0 : index
    %273 = vector.load %arg12[%c8_131, %c0_132] : memref<64x512xf32, #tpu.memory_space<vmem>>, vector<8x512xf32>
    %cst_133 = arith.constant dense<0.000000e+00> : vector<8x512xf32>
    %274 = tpu.matmul %272, %251, %cst_133 {dimension_numbers = #tpu.dot_dimension_numbers<[1], [0], [0], [1], [0, 0, 1, 1], [], []>} : vector<8x128xf32>, vector<128x512xf32>, vector<8x512xf32> -> vector<8x512xf32>
    %275 = arith.addf %273, %274 : vector<8x512xf32>
    %276 = vector.extract_strided_slice %275 {offsets = [0, 0], sizes = [8, 384], strides = [1, 1]} : vector<8x512xf32> to vector<8x384xf32>
    %277 = arith.negf %276 : vector<8x384xf32>
    %278 = math.exp %277 : vector<8x384xf32>
    %cst_134 = arith.constant 1.000000e+00 : f32
    %279 = vector.broadcast %cst_134 : f32 to vector<8x384xf32>
    %280 = arith.addf %279, %278 : vector<8x384xf32>
    %281 = arith.divf %279, %280 : vector<8x384xf32>
    %282 = vector.extract_strided_slice %275 {offsets = [0, 384], sizes = [8, 128], strides = [1, 1]} : vector<8x512xf32> to vector<8x128xf32>
    %283 = math.tanh %282 : vector<8x128xf32>
    %284 = vector.extract_strided_slice %281 {offsets = [0, 128], sizes = [8, 128], strides = [1, 1]} : vector<8x384xf32> to vector<8x128xf32>
    %285 = arith.mulf %284, %269 : vector<8x128xf32>
    %286 = vector.extract_strided_slice %281 {offsets = [0, 0], sizes = [8, 128], strides = [1, 1]} : vector<8x384xf32> to vector<8x128xf32>
    %287 = arith.mulf %286, %283 : vector<8x128xf32>
    %288 = arith.addf %285, %287 : vector<8x128xf32>
    %289 = vector.extract_strided_slice %281 {offsets = [0, 256], sizes = [8, 128], strides = [1, 1]} : vector<8x384xf32> to vector<8x128xf32>
    %290 = math.tanh %288 : vector<8x128xf32>
    %291 = arith.mulf %289, %290 : vector<8x128xf32>
    %c16_135 = arith.constant 16 : index
    %c0_136 = arith.constant 0 : index
    %292 = vector.load %arg12[%c16_135, %c0_136] : memref<64x512xf32, #tpu.memory_space<vmem>>, vector<8x512xf32>
    %cst_137 = arith.constant dense<0.000000e+00> : vector<8x512xf32>
    %293 = tpu.matmul %291, %251, %cst_137 {dimension_numbers = #tpu.dot_dimension_numbers<[1], [0], [0], [1], [0, 0, 1, 1], [], []>} : vector<8x128xf32>, vector<128x512xf32>, vector<8x512xf32> -> vector<8x512xf32>
    %294 = arith.addf %292, %293 : vector<8x512xf32>
    %295 = vector.extract_strided_slice %294 {offsets = [0, 0], sizes = [8, 384], strides = [1, 1]} : vector<8x512xf32> to vector<8x384xf32>
    %296 = arith.negf %295 : vector<8x384xf32>
    %297 = math.exp %296 : vector<8x384xf32>
    %cst_138 = arith.constant 1.000000e+00 : f32
    %298 = vector.broadcast %cst_138 : f32 to vector<8x384xf32>
    %299 = arith.addf %298, %297 : vector<8x384xf32>
    %300 = arith.divf %298, %299 : vector<8x384xf32>
    %301 = vector.extract_strided_slice %294 {offsets = [0, 384], sizes = [8, 128], strides = [1, 1]} : vector<8x512xf32> to vector<8x128xf32>
    %302 = math.tanh %301 : vector<8x128xf32>
    %303 = vector.extract_strided_slice %300 {offsets = [0, 128], sizes = [8, 128], strides = [1, 1]} : vector<8x384xf32> to vector<8x128xf32>
    %304 = arith.mulf %303, %288 : vector<8x128xf32>
    %305 = vector.extract_strided_slice %300 {offsets = [0, 0], sizes = [8, 128], strides = [1, 1]} : vector<8x384xf32> to vector<8x128xf32>
    %306 = arith.mulf %305, %302 : vector<8x128xf32>
    %307 = arith.addf %304, %306 : vector<8x128xf32>
    %308 = vector.extract_strided_slice %300 {offsets = [0, 256], sizes = [8, 128], strides = [1, 1]} : vector<8x384xf32> to vector<8x128xf32>
    %309 = math.tanh %307 : vector<8x128xf32>
    %310 = arith.mulf %308, %309 : vector<8x128xf32>
    %c24_139 = arith.constant 24 : index
    %c0_140 = arith.constant 0 : index
    %311 = vector.load %arg12[%c24_139, %c0_140] : memref<64x512xf32, #tpu.memory_space<vmem>>, vector<8x512xf32>
    %cst_141 = arith.constant dense<0.000000e+00> : vector<8x512xf32>
    %312 = tpu.matmul %310, %251, %cst_141 {dimension_numbers = #tpu.dot_dimension_numbers<[1], [0], [0], [1], [0, 0, 1, 1], [], []>} : vector<8x128xf32>, vector<128x512xf32>, vector<8x512xf32> -> vector<8x512xf32>
    %313 = arith.addf %311, %312 : vector<8x512xf32>
    %314 = vector.extract_strided_slice %313 {offsets = [0, 0], sizes = [8, 384], strides = [1, 1]} : vector<8x512xf32> to vector<8x384xf32>
    %315 = arith.negf %314 : vector<8x384xf32>
    %316 = math.exp %315 : vector<8x384xf32>
    %cst_142 = arith.constant 1.000000e+00 : f32
    %317 = vector.broadcast %cst_142 : f32 to vector<8x384xf32>
    %318 = arith.addf %317, %316 : vector<8x384xf32>
    %319 = arith.divf %317, %318 : vector<8x384xf32>
    %320 = vector.extract_strided_slice %313 {offsets = [0, 384], sizes = [8, 128], strides = [1, 1]} : vector<8x512xf32> to vector<8x128xf32>
    %321 = math.tanh %320 : vector<8x128xf32>
    %322 = vector.extract_strided_slice %319 {offsets = [0, 128], sizes = [8, 128], strides = [1, 1]} : vector<8x384xf32> to vector<8x128xf32>
    %323 = arith.mulf %322, %307 : vector<8x128xf32>
    %324 = vector.extract_strided_slice %319 {offsets = [0, 0], sizes = [8, 128], strides = [1, 1]} : vector<8x384xf32> to vector<8x128xf32>
    %325 = arith.mulf %324, %321 : vector<8x128xf32>
    %326 = arith.addf %323, %325 : vector<8x128xf32>
    %327 = vector.extract_strided_slice %319 {offsets = [0, 256], sizes = [8, 128], strides = [1, 1]} : vector<8x384xf32> to vector<8x128xf32>
    %328 = math.tanh %326 : vector<8x128xf32>
    %329 = arith.mulf %327, %328 : vector<8x128xf32>
    %c32_143 = arith.constant 32 : index
    %c0_144 = arith.constant 0 : index
    %330 = vector.load %arg12[%c32_143, %c0_144] : memref<64x512xf32, #tpu.memory_space<vmem>>, vector<8x512xf32>
    %cst_145 = arith.constant dense<0.000000e+00> : vector<8x512xf32>
    %331 = tpu.matmul %329, %251, %cst_145 {dimension_numbers = #tpu.dot_dimension_numbers<[1], [0], [0], [1], [0, 0, 1, 1], [], []>} : vector<8x128xf32>, vector<128x512xf32>, vector<8x512xf32> -> vector<8x512xf32>
    %332 = arith.addf %330, %331 : vector<8x512xf32>
    %333 = vector.extract_strided_slice %332 {offsets = [0, 0], sizes = [8, 384], strides = [1, 1]} : vector<8x512xf32> to vector<8x384xf32>
    %334 = arith.negf %333 : vector<8x384xf32>
    %335 = math.exp %334 : vector<8x384xf32>
    %cst_146 = arith.constant 1.000000e+00 : f32
    %336 = vector.broadcast %cst_146 : f32 to vector<8x384xf32>
    %337 = arith.addf %336, %335 : vector<8x384xf32>
    %338 = arith.divf %336, %337 : vector<8x384xf32>
    %339 = vector.extract_strided_slice %332 {offsets = [0, 384], sizes = [8, 128], strides = [1, 1]} : vector<8x512xf32> to vector<8x128xf32>
    %340 = math.tanh %339 : vector<8x128xf32>
    %341 = vector.extract_strided_slice %338 {offsets = [0, 128], sizes = [8, 128], strides = [1, 1]} : vector<8x384xf32> to vector<8x128xf32>
    %342 = arith.mulf %341, %326 : vector<8x128xf32>
    %343 = vector.extract_strided_slice %338 {offsets = [0, 0], sizes = [8, 128], strides = [1, 1]} : vector<8x384xf32> to vector<8x128xf32>
    %344 = arith.mulf %343, %340 : vector<8x128xf32>
    %345 = arith.addf %342, %344 : vector<8x128xf32>
    %346 = vector.extract_strided_slice %338 {offsets = [0, 256], sizes = [8, 128], strides = [1, 1]} : vector<8x384xf32> to vector<8x128xf32>
    %347 = math.tanh %345 : vector<8x128xf32>
    %348 = arith.mulf %346, %347 : vector<8x128xf32>
    %c40_147 = arith.constant 40 : index
    %c0_148 = arith.constant 0 : index
    %349 = vector.load %arg12[%c40_147, %c0_148] : memref<64x512xf32, #tpu.memory_space<vmem>>, vector<8x512xf32>
    %cst_149 = arith.constant dense<0.000000e+00> : vector<8x512xf32>
    %350 = tpu.matmul %348, %251, %cst_149 {dimension_numbers = #tpu.dot_dimension_numbers<[1], [0], [0], [1], [0, 0, 1, 1], [], []>} : vector<8x128xf32>, vector<128x512xf32>, vector<8x512xf32> -> vector<8x512xf32>
    %351 = arith.addf %349, %350 : vector<8x512xf32>
    %352 = vector.extract_strided_slice %351 {offsets = [0, 0], sizes = [8, 384], strides = [1, 1]} : vector<8x512xf32> to vector<8x384xf32>
    %353 = arith.negf %352 : vector<8x384xf32>
    %354 = math.exp %353 : vector<8x384xf32>
    %cst_150 = arith.constant 1.000000e+00 : f32
    %355 = vector.broadcast %cst_150 : f32 to vector<8x384xf32>
    %356 = arith.addf %355, %354 : vector<8x384xf32>
    %357 = arith.divf %355, %356 : vector<8x384xf32>
    %358 = vector.extract_strided_slice %351 {offsets = [0, 384], sizes = [8, 128], strides = [1, 1]} : vector<8x512xf32> to vector<8x128xf32>
    %359 = math.tanh %358 : vector<8x128xf32>
    %360 = vector.extract_strided_slice %357 {offsets = [0, 128], sizes = [8, 128], strides = [1, 1]} : vector<8x384xf32> to vector<8x128xf32>
    %361 = arith.mulf %360, %345 : vector<8x128xf32>
    %362 = vector.extract_strided_slice %357 {offsets = [0, 0], sizes = [8, 128], strides = [1, 1]} : vector<8x384xf32> to vector<8x128xf32>
    %363 = arith.mulf %362, %359 : vector<8x128xf32>
    %364 = arith.addf %361, %363 : vector<8x128xf32>
    %365 = vector.extract_strided_slice %357 {offsets = [0, 256], sizes = [8, 128], strides = [1, 1]} : vector<8x384xf32> to vector<8x128xf32>
    %366 = math.tanh %364 : vector<8x128xf32>
    %367 = arith.mulf %365, %366 : vector<8x128xf32>
    %c48_151 = arith.constant 48 : index
    %c0_152 = arith.constant 0 : index
    %368 = vector.load %arg12[%c48_151, %c0_152] : memref<64x512xf32, #tpu.memory_space<vmem>>, vector<8x512xf32>
    %cst_153 = arith.constant dense<0.000000e+00> : vector<8x512xf32>
    %369 = tpu.matmul %367, %251, %cst_153 {dimension_numbers = #tpu.dot_dimension_numbers<[1], [0], [0], [1], [0, 0, 1, 1], [], []>} : vector<8x128xf32>, vector<128x512xf32>, vector<8x512xf32> -> vector<8x512xf32>
    %370 = arith.addf %368, %369 : vector<8x512xf32>
    %371 = vector.extract_strided_slice %370 {offsets = [0, 0], sizes = [8, 384], strides = [1, 1]} : vector<8x512xf32> to vector<8x384xf32>
    %372 = arith.negf %371 : vector<8x384xf32>
    %373 = math.exp %372 : vector<8x384xf32>
    %cst_154 = arith.constant 1.000000e+00 : f32
    %374 = vector.broadcast %cst_154 : f32 to vector<8x384xf32>
    %375 = arith.addf %374, %373 : vector<8x384xf32>
    %376 = arith.divf %374, %375 : vector<8x384xf32>
    %377 = vector.extract_strided_slice %370 {offsets = [0, 384], sizes = [8, 128], strides = [1, 1]} : vector<8x512xf32> to vector<8x128xf32>
    %378 = math.tanh %377 : vector<8x128xf32>
    %379 = vector.extract_strided_slice %376 {offsets = [0, 128], sizes = [8, 128], strides = [1, 1]} : vector<8x384xf32> to vector<8x128xf32>
    %380 = arith.mulf %379, %364 : vector<8x128xf32>
    %381 = vector.extract_strided_slice %376 {offsets = [0, 0], sizes = [8, 128], strides = [1, 1]} : vector<8x384xf32> to vector<8x128xf32>
    %382 = arith.mulf %381, %378 : vector<8x128xf32>
    %383 = arith.addf %380, %382 : vector<8x128xf32>
    %384 = vector.extract_strided_slice %376 {offsets = [0, 256], sizes = [8, 128], strides = [1, 1]} : vector<8x384xf32> to vector<8x128xf32>
    %385 = math.tanh %383 : vector<8x128xf32>
    %386 = arith.mulf %384, %385 : vector<8x128xf32>
    %c56_155 = arith.constant 56 : index
    %c0_156 = arith.constant 0 : index
    %387 = vector.load %arg12[%c56_155, %c0_156] : memref<64x512xf32, #tpu.memory_space<vmem>>, vector<8x512xf32>
    %cst_157 = arith.constant dense<0.000000e+00> : vector<8x512xf32>
    %388 = tpu.matmul %386, %251, %cst_157 {dimension_numbers = #tpu.dot_dimension_numbers<[1], [0], [0], [1], [0, 0, 1, 1], [], []>} : vector<8x128xf32>, vector<128x512xf32>, vector<8x512xf32> -> vector<8x512xf32>
    %389 = arith.addf %387, %388 : vector<8x512xf32>
    %390 = vector.extract_strided_slice %389 {offsets = [0, 0], sizes = [8, 384], strides = [1, 1]} : vector<8x512xf32> to vector<8x384xf32>
    %391 = arith.negf %390 : vector<8x384xf32>
    %392 = math.exp %391 : vector<8x384xf32>
    %cst_158 = arith.constant 1.000000e+00 : f32
    %393 = vector.broadcast %cst_158 : f32 to vector<8x384xf32>
    %394 = arith.addf %393, %392 : vector<8x384xf32>
    %395 = arith.divf %393, %394 : vector<8x384xf32>
    %396 = vector.extract_strided_slice %389 {offsets = [0, 384], sizes = [8, 128], strides = [1, 1]} : vector<8x512xf32> to vector<8x128xf32>
    %397 = math.tanh %396 : vector<8x128xf32>
    %398 = vector.extract_strided_slice %395 {offsets = [0, 128], sizes = [8, 128], strides = [1, 1]} : vector<8x384xf32> to vector<8x128xf32>
    %399 = arith.mulf %398, %383 : vector<8x128xf32>
    %400 = vector.extract_strided_slice %395 {offsets = [0, 0], sizes = [8, 128], strides = [1, 1]} : vector<8x384xf32> to vector<8x128xf32>
    %401 = arith.mulf %400, %397 : vector<8x128xf32>
    %402 = arith.addf %399, %401 : vector<8x128xf32>
    %403 = vector.extract_strided_slice %395 {offsets = [0, 256], sizes = [8, 128], strides = [1, 1]} : vector<8x384xf32> to vector<8x128xf32>
    %404 = math.tanh %402 : vector<8x128xf32>
    %405 = arith.mulf %403, %404 : vector<8x128xf32>
    %406 = vector.extract_strided_slice %405 {offsets = [0, 0], sizes = [8, 32], strides = [1, 1]} : vector<8x128xf32> to vector<8x32xf32>
    %407 = vector.extract_strided_slice %405 {offsets = [0, 64], sizes = [8, 32], strides = [1, 1]} : vector<8x128xf32> to vector<8x32xf32>
    %408 = vector.extract_strided_slice %329 {offsets = [0, 32], sizes = [8, 32], strides = [1, 1]} : vector<8x128xf32> to vector<8x32xf32>
    %409 = vector.extract_strided_slice %329 {offsets = [0, 96], sizes = [8, 32], strides = [1, 1]} : vector<8x128xf32> to vector<8x32xf32>
    %410 = tpu.concatenate %406, %407, %408, %409 in 1 : vector<8x32xf32>, vector<8x32xf32>, vector<8x32xf32>, vector<8x32xf32> -> vector<8x128xf32>
    %c0_159 = arith.constant 0 : index
    %c0_160 = arith.constant 0 : index
    %411 = vector.load %arg7[%c0_159, %c0_160] : memref<128x32xf32, #tpu.memory_space<vmem>>, vector<128x32xf32>
    %cst_161 = arith.constant dense<0.000000e+00> : vector<8x32xf32>
    %412 = tpu.matmul %410, %411, %cst_161 {dimension_numbers = #tpu.dot_dimension_numbers<[1], [0], [0], [1], [0, 0, 1, 1], [], []>} : vector<8x128xf32>, vector<128x32xf32>, vector<8x32xf32> -> vector<8x32xf32>
    %c0_162 = arith.constant 0 : index
    %c0_163 = arith.constant 0 : index
    %413 = vector.load %arg8[%c0_162, %c0_163] : memref<1x32xf32, #tpu.memory_space<vmem>>, vector<1x32xf32>
    %414 = vector.broadcast %413 : vector<1x32xf32> to vector<8x32xf32>
    %415 = arith.addf %412, %414 : vector<8x32xf32>
    %cst_164 = arith.constant 0.000000e+00 : f32
    %416 = vector.broadcast %cst_164 : f32 to vector<8x32xf32>
    %417 = arith.maximumf %415, %416 : vector<8x32xf32>
    %c0_165 = arith.constant 0 : index
    %c0_166 = arith.constant 0 : index
    %418 = vector.load %arg9[%c0_165, %c0_166] : memref<32x3xf32, #tpu.memory_space<vmem>>, vector<32x3xf32>
    %cst_167 = arith.constant dense<0.000000e+00> : vector<8x3xf32>
    %419 = tpu.matmul %417, %418, %cst_167 {dimension_numbers = #tpu.dot_dimension_numbers<[1], [0], [0], [1], [0, 0, 1, 1], [], []>} : vector<8x32xf32>, vector<32x3xf32>, vector<8x3xf32> -> vector<8x3xf32>
    %c0_168 = arith.constant 0 : index
    %c0_169 = arith.constant 0 : index
    %420 = vector.load %arg10[%c0_168, %c0_169] : memref<1x3xf32, #tpu.memory_space<vmem>>, vector<1x3xf32>
    %421 = vector.broadcast %420 : vector<1x3xf32> to vector<8x3xf32>
    %422 = arith.addf %419, %421 : vector<8x3xf32>
    %c0_170 = arith.constant 0 : index
    %c0_171 = arith.constant 0 : index
    %423 = vector.load %arg11[%c0_170, %c0_171] : memref<8x3xf32, #tpu.memory_space<vmem>>, vector<8x3xf32>
    tpu.vector_store %arg11[%c0_170, %c0_171], %422 {strides = array<i32>} : memref<8x3xf32, #tpu.memory_space<vmem>>, vector<8x3xf32>,
    return
  }
}

</mosaic_0001>

<llo_original>
// kernel: tpu_custom_call.1
$region0: #{tpu_custom_call.1}
  #allocation0 [shape = 'u32[]', space=smem, size = 0x4, offset = 0x4, fixed_abs, tag = 'smem constant byte address 0x4 - core index']
  #allocation1 [shape = 'u32[144,128]{1,0:T(1,128)}', space=vmem, size = 0x12000, scoped, tag = 'internal scratch']
  #allocation2 [shape = 'f32[64,512]{1,0:T(8,128)}', space=vmem, size = 0x20000, scoped, tag = 'scratch operand']
  #allocation3 [shape = 'f32[64,256]{1,0:T(8,128)}', space=vmem, size = 0x10000, scoped, tag = 'scratch operand']
  %s0 = inlined_call_operand.vmem [shape: f32[64,64], index: 0, kind: input, shape index: {}]
  %s1 = inlined_call_operand.hbm [shape: f32[64,512], index: 1, kind: input, shape index: {}]
  %s2 = inlined_call_operand.hbm [shape: f32[128,512], index: 2, kind: input, shape index: {}]
  %s3 = inlined_call_operand.vmem [shape: f32[1,512], index: 3, kind: input, shape index: {}]
  %s4 = inlined_call_operand.hbm [shape: f32[256,512], index: 4, kind: input, shape index: {}]
  %s5 = inlined_call_operand.hbm [shape: f32[128,512], index: 5, kind: input, shape index: {}]
  %s6 = inlined_call_operand.vmem [shape: f32[1,512], index: 6, kind: input, shape index: {}]
  %s7 = inlined_call_operand.vmem [shape: f32[128,32], index: 7, kind: input, shape index: {}]
  %s8 = inlined_call_operand.vmem [shape: f32[1,32], index: 8, kind: input, shape index: {}]
  %s9 = inlined_call_operand.vmem [shape: f32[32,3], index: 9, kind: input, shape index: {}]
  %s10 = inlined_call_operand.vmem [shape: f32[1,3], index: 10, kind: input, shape index: {}]
  %s11 = inlined_call_operand.vmem [shape: f32[8,3], index: 11, kind: output, shape index: {}]
  %s12 = sld [smem:[#allocation0]]
  $region70: #{tpu_custom_call.1} parent=0
    _
  %s14 = ssub.s32 1, %s12
  %s15 = scalar_select 0, %s14, %s12
  $region1: #{tpu_custom_call.1} parent=0
    #allocation4 [shape = 'u8[131072]{0}', space=vmem, size = 0x20000, scoped, tag = 'input window, operand 1, single buffered']
    #allocation5 [shape = 's32[1]{0}', space=sflag, size = 0x4, scoped, tag = 'scoped memory for tpu_custom_call.1']
    #allocation6 [shape = 'u8[262144]{0}', space=vmem, size = 0x40000, scoped, tag = 'input window, operand 2, single buffered']
    #allocation7 [shape = 's32[1]{0}', space=sflag, size = 0x4, scoped, tag = 'scoped memory for tpu_custom_call.1']
    #allocation8 [shape = 'u8[524288]{0}', space=vmem, size = 0x80000, scoped, tag = 'input window, operand 4, single buffered']
    #allocation9 [shape = 'u8[262144]{0}', space=vmem, size = 0x40000, scoped, tag = 'input window, operand 5, single buffered']
    #allocation10 [shape = 's32[1]{0}', space=sflag, size = 0x4, scoped, tag = 'scoped memory for tpu_custom_call.1']
    %16 = vsyncpa [#allocation5], 0
    %17 = vsyncpa [#allocation7], 0
    %18 = vsyncpa [#allocation10], 0
    // Predicated region
    $region2: #{tpu_custom_call.1} parent=1 // pred_check
      _
    $region3: #{tpu_custom_call.1} parent=1 // pred_check_branch
      %20 = sbr.rel (0) target = $region5
    $region4: #{tpu_custom_call.1} parent=1 // pred_region
      _
    $region5: #{tpu_custom_call.1} parent=1 // pred_fallthru
      _
    // Predicated region
    $region6: #{tpu_custom_call.1} parent=1 // pred_check
      _
    $region7: #{tpu_custom_call.1} parent=1 // pred_check_branch
      %22 = sbr.rel (0) target = $region9
    $region8: #{tpu_custom_call.1} parent=1 // pred_region
      %s24 = ssub.s32 4096, 4096
      %25 = vsyncadd [#allocation5], %s24
      %s26 = sshll.u32 [#allocation4], 4
      %s27 = int_to_ptr.vmem [resolvable:$true] %s26
      %32 = dma.hbm_to_vmem [thread:$0]  %s1, 4096, %s27, [#allocation5], 512, 512, 32
    $region9: #{tpu_custom_call.1} parent=1 // pred_fallthru
      _
    // Predicated region
    $region10: #{tpu_custom_call.1} parent=1 // pred_check
      _
    $region11: #{tpu_custom_call.1} parent=1 // pred_check_branch
      %34 = sbr.rel (0) target = $region13
    $region12: #{tpu_custom_call.1} parent=1 // pred_region
      %s36 = ssub.s32 8192, 8192
      %37 = vsyncadd [#allocation7], %s36
      %s38 = sshll.u32 [#allocation6], 4
      %s39 = int_to_ptr.vmem [resolvable:$true] %s38
      %44 = dma.hbm_to_vmem [thread:$0]  %s2, 8192, %s39, [#allocation7], 512, 512, 32
    $region13: #{tpu_custom_call.1} parent=1 // pred_fallthru
      _
    // Predicated region
    $region14: #{tpu_custom_call.1} parent=1 // pred_check
      _
    $region15: #{tpu_custom_call.1} parent=1 // pred_check_branch
      %46 = sbr.rel (0) target = $region17
    $region16: #{tpu_custom_call.1} parent=1 // pred_region
      _
    $region17: #{tpu_custom_call.1} parent=1 // pred_fallthru
      _
    // Predicated region
    $region18: #{tpu_custom_call.1} parent=1 // pred_check
      _
    $region19: #{tpu_custom_call.1} parent=1 // pred_check_branch
      %48 = sbr.rel (0) target = $region21
    $region20: #{tpu_custom_call.1} parent=1 // pred_region
      %s50 = ssub.s32 16384, 16384
      %51 = vsyncadd [#allocation7], %s50
      %s52 = sshll.u32 [#allocation8], 4
      %s53 = int_to_ptr.vmem [resolvable:$true] %s52
      %58 = dma.hbm_to_vmem [thread:$0]  %s4, 16384, %s53, [#allocation7], 512, 512, 32
    $region21: #{tpu_custom_call.1} parent=1 // pred_fallthru
      _
    // Predicated region
    $region22: #{tpu_custom_call.1} parent=1 // pred_check
      _
    $region23: #{tpu_custom_call.1} parent=1 // pred_check_branch
      %60 = sbr.rel (0) target = $region25
    $region24: #{tpu_custom_call.1} parent=1 // pred_region
      %s62 = ssub.s32 8192, 8192
      %63 = vsyncadd [#allocation10], %s62
      %s64 = sshll.u32 [#allocation9], 4
      %s65 = int_to_ptr.vmem [resolvable:$true] %s64
      %70 = dma.hbm_to_vmem [thread:$0]  %s5, 8192, %s65, [#allocation10], 512, 512, 32
    $region25: #{tpu_custom_call.1} parent=1 // pred_fallthru
      _
    // Predicated region
    $region26: #{tpu_custom_call.1} parent=1 // pred_check
      _
    $region27: #{tpu_custom_call.1} parent=1 // pred_check_branch
      %72 = sbr.rel (0) target = $region29
    $region28: #{tpu_custom_call.1} parent=1 // pred_region
      _
    $region29: #{tpu_custom_call.1} parent=1 // pred_fallthru
      _
    // Predicated region
    $region30: #{tpu_custom_call.1} parent=1 // pred_check
      _
    $region31: #{tpu_custom_call.1} parent=1 // pred_check_branch
      %74 = sbr.rel (0) target = $region33
    $region32: #{tpu_custom_call.1} parent=1 // pred_region
      _
    $region33: #{tpu_custom_call.1} parent=1 // pred_fallthru
      _
    // Predicated region
    $region34: #{tpu_custom_call.1} parent=1 // pred_check
      _
    $region35: #{tpu_custom_call.1} parent=1 // pred_check_branch
      %76 = sbr.rel (0) target = $region37
    $region36: #{tpu_custom_call.1} parent=1 // pred_region
      _
    $region37: #{tpu_custom_call.1} parent=1 // pred_fallthru
      _
    // Predicated region
    $region38: #{tpu_custom_call.1} parent=1 // pred_check
      _
    $region39: #{tpu_custom_call.1} parent=1 // pred_check_branch
      %78 = sbr.rel (0) target = $region41
    $region40: #{tpu_custom_call.1} parent=1 // pred_region
      _
    $region41: #{tpu_custom_call.1} parent=1 // pred_fallthru
      _
    // Predicated region
    $region42: #{tpu_custom_call.1} parent=1 // pred_check
      _
    $region43: #{tpu_custom_call.1} parent=1 // pred_check_branch
      %80 = sbr.rel (0) target = $region45
    $region44: #{tpu_custom_call.1} parent=1 // pred_region
      _
    $region45: #{tpu_custom_call.1} parent=1 // pred_fallthru
      _
    // Predicated region
    $region46: #{tpu_custom_call.1} parent=1 // pred_check
      _
    $region47: #{tpu_custom_call.1} parent=1 // pred_check_branch
      %82 = sbr.rel (0) target = $region49
    $region48: #{tpu_custom_call.1} parent=1 // pred_region
      %83 = dma.done [#allocation5], 4096
    $region49: #{tpu_custom_call.1} parent=1 // pred_fallthru
      _
    // Predicated region
    $region50: #{tpu_custom_call.1} parent=1 // pred_check
      _
    $region51: #{tpu_custom_call.1} parent=1 // pred_check_branch
      %85 = sbr.rel (0) target = $region53
    $region52: #{tpu_custom_call.1} parent=1 // pred_region
      %86 = dma.done [#allocation7], 8192
    $region53: #{tpu_custom_call.1} parent=1 // pred_fallthru
      _
    // Predicated region
    $region54: #{tpu_custom_call.1} parent=1 // pred_check
      _
    $region55: #{tpu_custom_call.1} parent=1 // pred_check_branch
      %88 = sbr.rel (0) target = $region57
    $region56: #{tpu_custom_call.1} parent=1 // pred_region
      %89 = dma.done [#allocation7], 16384
    $region57: #{tpu_custom_call.1} parent=1 // pred_fallthru
      _
    // Predicated region
    $region58: #{tpu_custom_call.1} parent=1 // pred_check
      _
    $region59: #{tpu_custom_call.1} parent=1 // pred_check_branch
      %91 = sbr.rel (0) target = $region61
    $region60: #{tpu_custom_call.1} parent=1 // pred_region
      %92 = dma.done [#allocation10], 8192
    $region61: #{tpu_custom_call.1} parent=1 // pred_fallthru
      _
    %93 = vst [vmem:[#allocation3] sm:$0xff] 0.0
    %94 = vst [vmem:[#allocation3 + $0x8] sm:$0xff] 0.0
    %95 = vst [vmem:[#allocation3 + $0x10] sm:$0xff] 0.0
    %96 = vst [vmem:[#allocation3 + $0x18] sm:$0xff] 0.0
    %97 = vst [vmem:[#allocation3 + $0x20] sm:$0xff] 0.0
    %98 = vst [vmem:[#allocation3 + $0x28] sm:$0xff] 0.0
    %99 = vst [vmem:[#allocation3 + $0x30] sm:$0xff] 0.0
    %100 = vst [vmem:[#allocation3 + $0x38] sm:$0xff] 0.0
    %101 = vst [vmem:[#allocation3 + $0x40] sm:$0xff] 0.0
    %102 = vst [vmem:[#allocation3 + $0x48] sm:$0xff] 0.0
    %103 = vst [vmem:[#allocation3 + $0x50] sm:$0xff] 0.0
    %104 = vst [vmem:[#allocation3 + $0x58] sm:$0xff] 0.0
    %105 = vst [vmem:[#allocation3 + $0x60] sm:$0xff] 0.0
    %106 = vst [vmem:[#allocation3 + $0x68] sm:$0xff] 0.0
    %107 = vst [vmem:[#allocation3 + $0x70] sm:$0xff] 0.0
    %108 = vst [vmem:[#allocation3 + $0x78] sm:$0xff] 0.0
    %v109 = vld [vmem:[%s0] sm:$0xff]
    %v110 = vld [vmem:[%s0 + $0x8] sm:$0xff]
    %v111 = vld [vmem:[%s0 + $0x10] sm:$0xff]
    %v112 = vld [vmem:[%s0 + $0x18] sm:$0xff]
    %v113 = vld [vmem:[%s0 + $0x20] sm:$0xff]
    %v114 = vld [vmem:[%s0 + $0x28] sm:$0xff]
    %v115 = vld [vmem:[%s0 + $0x30] sm:$0xff]
    %v116 = vld [vmem:[%s0 + $0x38] sm:$0xff]
    %v117 = vld [vmem:[#allocation4] sm:$0xff]
    %v118 = vld [vmem:[#allocation4 + $0x8] sm:$0xff]
    %v119 = vld [vmem:[#allocation4 + $0x10] sm:$0xff]
    %v120 = vld [vmem:[#allocation4 + $0x18] sm:$0xff]
    %v121 = vld [vmem:[#allocation4 + $0x20] sm:$0xff]
    %v122 = vld [vmem:[#allocation4 + $0x28] sm:$0xff]
    %v123 = vld [vmem:[#allocation4 + $0x30] sm:$0xff]
    %v124 = vld [vmem:[#allocation4 + $0x38] sm:$0xff]
    %v125 = vld [vmem:[#allocation4 + $0x40] sm:$0xff]
    %v126 = vld [vmem:[#allocation4 + $0x48] sm:$0xff]
    %v127 = vld [vmem:[#allocation4 + $0x50] sm:$0xff]
    %v128 = vld [vmem:[#allocation4 + $0x58] sm:$0xff]
    %v129 = vld [vmem:[#allocation4 + $0x60] sm:$0xff]
    %v130 = vld [vmem:[#allocation4 + $0x68] sm:$0xff]
    %v131 = vld [vmem:[#allocation4 + $0x70] sm:$0xff]
    %v132 = vld [vmem:[#allocation4 + $0x78] sm:$0xff]
    %v133 = vld [vmem:[#allocation4 + $0x80] sm:$0xff]
    %v134 = vld [vmem:[#allocation4 + $0x88] sm:$0xff]
    %v135 = vld [vmem:[#allocation4 + $0x90] sm:$0xff]
    %v136 = vld [vmem:[#allocation4 + $0x98] sm:$0xff]
    %v137 = vld [vmem:[#allocation4 + $0xa0] sm:$0xff]
    %v138 = vld [vmem:[#allocation4 + $0xa8] sm:$0xff]
    %v139 = vld [vmem:[#allocation4 + $0xb0] sm:$0xff]
    %v140 = vld [vmem:[#allocation4 + $0xb8] sm:$0xff]
    %v141 = vld [vmem:[#allocation4 + $0xc0] sm:$0xff]
    %v142 = vld [vmem:[#allocation4 + $0xc8] sm:$0xff]
    %v143 = vld [vmem:[#allocation4 + $0xd0] sm:$0xff]
    %v144 = vld [vmem:[#allocation4 + $0xd8] sm:$0xff]
    %v145 = vld [vmem:[#allocation4 + $0xe0] sm:$0xff]
    %v146 = vld [vmem:[#allocation4 + $0xe8] sm:$0xff]
    %v147 = vld [vmem:[#allocation4 + $0xf0] sm:$0xff]
    %v148 = vld [vmem:[#allocation4 + $0xf8] sm:$0xff]
    %v149 = vld [vmem:[%s3] sm:$0xf]
    %v151 = vlaneseq
    %v152 = vshrl.u32 %v151, 7
    %v153 = vsub.s32 0, %v152
    %v154 = vrot.slane %v149, %v153
    %v155 = vlaneseq
    %v156 = vshrl.u32 %v155, 7
    %v157 = vsub.s32 1, %v156
    %v158 = vrot.slane %v149, %v157
    %v159 = vlaneseq
    %v160 = vshrl.u32 %v159, 7
    %v161 = vsub.s32 2, %v160
    %v162 = vrot.slane %v149, %v161
    %v163 = vlaneseq
    %v164 = vshrl.u32 %v163, 7
    %v165 = vsub.s32 3, %v164
    %v166 = vrot.slane %v149, %v165
    %vm171 = vcmask 523264
    %v173 = vsel %vm171, %v109, 0
    %v176 = vsel %vm171, %v110, 0
    %v179 = vsel %vm171, %v111, 0
    %v182 = vsel %vm171, %v112, 0
    %v185 = vsel %vm171, %v113, 0
    %v188 = vsel %vm171, %v114, 0
    %v191 = vsel %vm171, %v115, 0
    %v194 = vsel %vm171, %v116, 0
    %196 = vmatprep.subr.mxu0 %v118
    %197 = vmatpush1.msra.mxu0 %v117
    %198 = vmatprep.subr.mxu0 %v122
    %199 = vmatpush1.msra.mxu0 %v121
    %200 = vmatprep.subr.mxu0 %v126
    %201 = vmatpush1.msra.mxu0 %v125
    %202 = vmatprep.subr.mxu0 %v130
    %203 = vmatpush1.msra.mxu0 %v129
    %204 = vmatprep.subr.mxu0 %v134
    %205 = vmatpush1.msra.mxu0 %v133
    %206 = vmatprep.subr.mxu0 %v138
    %207 = vmatpush1.msra.mxu0 %v137
    %208 = vmatprep.subr.mxu0 %v142
    %209 = vmatpush1.msra.mxu0 %v141
    %210 = vmatprep.subr.mxu0 %v146
    %211 = vmatpush1.msra.mxu0 %v145
    %212 = vmatprep.subr.mxu0 0.0
    %213 = vmatpush1.msra.mxu0 0.0
    %214 = vmatprep.subr.mxu0 0.0
    %215 = vmatpush1.msra.mxu0 0.0
    %216 = vmatprep.subr.mxu0 0.0
    %217 = vmatpush1.msra.mxu0 0.0
    %218 = vmatprep.subr.mxu0 0.0
    %219 = vmatpush1.msra.mxu0 0.0
    %220 = vmatprep.subr.mxu0 0.0
    %221 = vmatpush1.msra.mxu0 0.0
    %222 = vmatprep.subr.mxu0 0.0
    %223 = vmatpush1.msra.mxu0 0.0
    %224 = vmatprep.subr.mxu0 0.0
    %225 = vmatpush1.msra.mxu0 0.0
    %226 = vmatprep.subr.mxu0 0.0
    %227 = vmatpush1.msra.mxu0 0.0
    %228 = vmatprep.subr.mxu0 0.0
    %229 = vmatpush1.msra.mxu0 0.0
    %230 = vmatprep.subr.mxu0 0.0
    %231 = vmatpush1.msra.mxu0 0.0
    %232 = vmatprep.subr.mxu0 0.0
    %233 = vmatpush1.msra.mxu0 0.0
    %234 = vmatprep.subr.mxu0 0.0
    %235 = vmatpush1.msra.mxu0 0.0
    %236 = vmatprep.subr.mxu0 0.0
    %237 = vmatpush1.msra.mxu0 0.0
    %238 = vmatprep.subr.mxu0 0.0
    %239 = vmatpush1.msra.mxu0 0.0
    %240 = vmatprep.subr.mxu0 0.0
    %241 = vmatpush1.msra.mxu0 0.0
    %242 = vmatprep.subr.mxu0 0.0
    %243 = vmatpush1.msra.mxu0 0.0
    %244 = vmatprep.subr.mxu0 0.0
    %245 = vmatpush1.msra.mxu0 0.0
    %246 = vmatprep.subr.mxu0 0.0
    %247 = vmatpush1.msra.mxu0 0.0
    %248 = vmatprep.subr.mxu0 0.0
    %249 = vmatpush1.msra.mxu0 0.0
    %250 = vmatprep.subr.mxu0 0.0
    %251 = vmatpush1.msra.mxu0 0.0
    %252 = vmatprep.subr.mxu0 0.0
    %253 = vmatpush1.msra.mxu0 0.0
    %254 = vmatprep.subr.mxu0 0.0
    %255 = vmatpush1.msra.mxu0 0.0
    %256 = vmatprep.subr.mxu0 0.0
    %257 = vmatpush1.msra.mxu0 0.0
    %258 = vmatprep.subr.mxu0 0.0
    %259 = vmatpush1.msra.mxu0 0.0
    %260 = vmatprep.mubr.f32.mxu0 0.0
    %261 = vmatmul.mubr.f32.gmra.mrb[0].mxu0 %v173
    %v262 = vpop.f32.mrb[0].mxu0
    %v263 = vadd.f32 %v154, %v262
    %v264 = vpop.f32.mrb[0].mxu0
    %v265 = vadd.f32 %v158, %v264
    %266 = vmatprep.mubr.f32.mxu0 0.0
    %267 = vmatmul.mubr.f32.gmra.mrb[0].mxu0 %v176
    %v268 = vpop.f32.mrb[0].mxu0
    %v269 = vadd.f32 %v154, %v268
    %v270 = vpop.f32.mrb[0].mxu0
    %v271 = vadd.f32 %v158, %v270
    %272 = vmatprep.mubr.f32.mxu0 0.0
    %273 = vmatmul.mubr.f32.gmra.mrb[0].mxu0 %v179
    %v274 = vpop.f32.mrb[0].mxu0
    %v275 = vadd.f32 %v154, %v274
    %v276 = vpop.f32.mrb[0].mxu0
    %v277 = vadd.f32 %v158, %v276
    %278 = vmatprep.mubr.f32.mxu0 0.0
    %279 = vmatmul.mubr.f32.gmra.mrb[0].mxu0 %v182
    %v280 = vpop.f32.mrb[0].mxu0
    %v281 = vadd.f32 %v154, %v280
    %v282 = vpop.f32.mrb[0].mxu0
    %v283 = vadd.f32 %v158, %v282
    %284 = vmatprep.mubr.f32.mxu0 0.0
    %285 = vmatmul.mubr.f32.gmra.mrb[0].mxu0 %v185
    %v286 = vpop.f32.mrb[0].mxu0
    %v287 = vadd.f32 %v154, %v286
    %v288 = vpop.f32.mrb[0].mxu0
    %v289 = vadd.f32 %v158, %v288
    %290 = vmatprep.mubr.f32.mxu0 0.0
    %291 = vmatmul.mubr.f32.gmra.mrb[0].mxu0 %v188
    %v292 = vpop.f32.mrb[0].mxu0
    %v293 = vadd.f32 %v154, %v292
    %v294 = vpop.f32.mrb[0].mxu0
    %v295 = vadd.f32 %v158, %v294
    %296 = vmatprep.mubr.f32.mxu0 0.0
    %297 = vmatmul.mubr.f32.gmra.mrb[0].mxu0 %v191
    %v298 = vpop.f32.mrb[0].mxu0
    %v299 = vadd.f32 %v154, %v298
    %v300 = vpop.f32.mrb[0].mxu0
    %v301 = vadd.f32 %v158, %v300
    %302 = vmatprep.mubr.f32.mxu0 0.0
    %303 = vmatmul.mubr.f32.gmra.mrb[0].mxu0 %v194
    %v304 = vpop.f32.mrb[0].mxu0
    %v305 = vadd.f32 %v154, %v304
    %v306 = vpop.f32.mrb[0].mxu0
    %v307 = vadd.f32 %v158, %v306
    %308 = vdwg.mxu0
    %309 = vmatprep.subr.mxu0 %v120
    %310 = vmatpush1.msra.mxu0 %v119
    %311 = vmatprep.subr.mxu0 %v124
    %312 = vmatpush1.msra.mxu0 %v123
    %313 = vmatprep.subr.mxu0 %v128
    %314 = vmatpush1.msra.mxu0 %v127
    %315 = vmatprep.subr.mxu0 %v132
    %316 = vmatpush1.msra.mxu0 %v131
    %317 = vmatprep.subr.mxu0 %v136
    %318 = vmatpush1.msra.mxu0 %v135
    %319 = vmatprep.subr.mxu0 %v140
    %320 = vmatpush1.msra.mxu0 %v139
    %321 = vmatprep.subr.mxu0 %v144
    %322 = vmatpush1.msra.mxu0 %v143
    %323 = vmatprep.subr.mxu0 %v148
    %324 = vmatpush1.msra.mxu0 %v147
    %325 = vmatprep.subr.mxu0 0.0
    %326 = vmatpush1.msra.mxu0 0.0
    %327 = vmatprep.subr.mxu0 0.0
    %328 = vmatpush1.msra.mxu0 0.0
    %329 = vmatprep.subr.mxu0 0.0
    %330 = vmatpush1.msra.mxu0 0.0
    %331 = vmatprep.subr.mxu0 0.0
    %332 = vmatpush1.msra.mxu0 0.0
    %333 = vmatprep.subr.mxu0 0.0
    %334 = vmatpush1.msra.mxu0 0.0
    %335 = vmatprep.subr.mxu0 0.0
    %336 = vmatpush1.msra.mxu0 0.0
    %337 = vmatprep.subr.mxu0 0.0
    %338 = vmatpush1.msra.mxu0 0.0
    %339 = vmatprep.subr.mxu0 0.0
    %340 = vmatpush1.msra.mxu0 0.0
    %341 = vmatprep.subr.mxu0 0.0
    %342 = vmatpush1.msra.mxu0 0.0
    %343 = vmatprep.subr.mxu0 0.0
    %344 = vmatpush1.msra.mxu0 0.0
    %345 = vmatprep.subr.mxu0 0.0
    %346 = vmatpush1.msra.mxu0 0.0
    %347 = vmatprep.subr.mxu0 0.0
    %348 = vmatpush1.msra.mxu0 0.0
    %349 = vmatprep.subr.mxu0 0.0
    %350 = vmatpush1.msra.mxu0 0.0
    %351 = vmatprep.subr.mxu0 0.0
    %352 = vmatpush1.msra.mxu0 0.0
    %353 = vmatprep.subr.mxu0 0.0
    %354 = vmatpush1.msra.mxu0 0.0
    %355 = vmatprep.subr.mxu0 0.0
    %356 = vmatpush1.msra.mxu0 0.0
    %357 = vmatprep.subr.mxu0 0.0
    %358 = vmatpush1.msra.mxu0 0.0
    %359 = vmatprep.subr.mxu0 0.0
    %360 = vmatpush1.msra.mxu0 0.0
    %361 = vmatprep.subr.mxu0 0.0
    %362 = vmatpush1.msra.mxu0 0.0
    %363 = vmatprep.subr.mxu0 0.0
    %364 = vmatpush1.msra.mxu0 0.0
    %365 = vmatprep.subr.mxu0 0.0
    %366 = vmatpush1.msra.mxu0 0.0
    %367 = vmatprep.subr.mxu0 0.0
    %368 = vmatpush1.msra.mxu0 0.0
    %369 = vmatprep.subr.mxu0 0.0
    %370 = vmatpush1.msra.mxu0 0.0
    %371 = vmatprep.subr.mxu0 0.0
    %372 = vmatpush1.msra.mxu0 0.0
    %373 = vmatprep.mubr.f32.mxu0 0.0
    %374 = vmatmul.mubr.f32.gmra.mrb[0].mxu0 %v173
    %v375 = vpop.f32.mrb[0].mxu0
    %v376 = vadd.f32 %v162, %v375
    %v377 = vpop.f32.mrb[0].mxu0
    %v378 = vadd.f32 %v166, %v377
    %379 = vmatprep.mubr.f32.mxu0 0.0
    %380 = vmatmul.mubr.f32.gmra.mrb[0].mxu0 %v176
    %v381 = vpop.f32.mrb[0].mxu0
    %v382 = vadd.f32 %v162, %v381
    %v383 = vpop.f32.mrb[0].mxu0
    %v384 = vadd.f32 %v166, %v383
    %385 = vmatprep.mubr.f32.mxu0 0.0
    %386 = vmatmul.mubr.f32.gmra.mrb[0].mxu0 %v179
    %v387 = vpop.f32.mrb[0].mxu0
    %v388 = vadd.f32 %v162, %v387
    %v389 = vpop.f32.mrb[0].mxu0
    %v390 = vadd.f32 %v166, %v389
    %391 = vmatprep.mubr.f32.mxu0 0.0
    %392 = vmatmul.mubr.f32.gmra.mrb[0].mxu0 %v182
    %v393 = vpop.f32.mrb[0].mxu0
    %v394 = vadd.f32 %v162, %v393
    %v395 = vpop.f32.mrb[0].mxu0
    %v396 = vadd.f32 %v166, %v395
    %397 = vmatprep.mubr.f32.mxu0 0.0
    %398 = vmatmul.mubr.f32.gmra.mrb[0].mxu0 %v185
    %v399 = vpop.f32.mrb[0].mxu0
    %v400 = vadd.f32 %v162, %v399
    %v401 = vpop.f32.mrb[0].mxu0
    %v402 = vadd.f32 %v166, %v401
    %403 = vmatprep.mubr.f32.mxu0 0.0
    %404 = vmatmul.mubr.f32.gmra.mrb[0].mxu0 %v188
    %v405 = vpop.f32.mrb[0].mxu0
    %v406 = vadd.f32 %v162, %v405
    %v407 = vpop.f32.mrb[0].mxu0
    %v408 = vadd.f32 %v166, %v407
    %409 = vmatprep.mubr.f32.mxu0 0.0
    %410 = vmatmul.mubr.f32.gmra.mrb[0].mxu0 %v191
    %v411 = vpop.f32.mrb[0].mxu0
    %v412 = vadd.f32 %v162, %v411
    %v413 = vpop.f32.mrb[0].mxu0
    %v414 = vadd.f32 %v166, %v413
    %415 = vmatprep.mubr.f32.mxu0 0.0
    %416 = vmatmul.mubr.f32.gmra.mrb[0].mxu0 %v194
    %v417 = vpop.f32.mrb[0].mxu0
    %v418 = vadd.f32 %v162, %v417
    %v419 = vpop.f32.mrb[0].mxu0
    %v420 = vadd.f32 %v166, %v419
    %421 = vdwg.mxu0
    %422 = vst [vmem:[#allocation2] sm:$0xff] %v263
    %423 = vst [vmem:[#allocation2 + $0x8] sm:$0xff] %v265
    %424 = vst [vmem:[#allocation2 + $0x10] sm:$0xff] %v376
    %425 = vst [vmem:[#allocation2 + $0x18] sm:$0xff] %v378
    %426 = vst [vmem:[#allocation2 + $0x20] sm:$0xff] %v269
    %427 = vst [vmem:[#allocation2 + $0x28] sm:$0xff] %v271
    %428 = vst [vmem:[#allocation2 + $0x30] sm:$0xff] %v382
    %429 = vst [vmem:[#allocation2 + $0x38] sm:$0xff] %v384
    %430 = vst [vmem:[#allocation2 + $0x40] sm:$0xff] %v275
    %431 = vst [vmem:[#allocation2 + $0x48] sm:$0xff] %v277
    %432 = vst [vmem:[#allocation2 + $0x50] sm:$0xff] %v388
    %433 = vst [vmem:[#allocation2 + $0x58] sm:$0xff] %v390
    %434 = vst [vmem:[#allocation2 + $0x60] sm:$0xff] %v281
    %435 = vst [vmem:[#allocation2 + $0x68] sm:$0xff] %v283
    %436 = vst [vmem:[#allocation2 + $0x70] sm:$0xff] %v394
    %437 = vst [vmem:[#allocation2 + $0x78] sm:$0xff] %v396
    %438 = vst [vmem:[#allocation2 + $0x80] sm:$0xff] %v287
    %439 = vst [vmem:[#allocation2 + $0x88] sm:$0xff] %v289
    %440 = vst [vmem:[#allocation2 + $0x90] sm:$0xff] %v400
    %441 = vst [vmem:[#allocation2 + $0x98] sm:$0xff] %v402
    %442 = vst [vmem:[#allocation2 + $0xa0] sm:$0xff] %v293
    %443 = vst [vmem:[#allocation2 + $0xa8] sm:$0xff] %v295
    %444 = vst [vmem:[#allocation2 + $0xb0] sm:$0xff] %v406
    %445 = vst [vmem:[#allocation2 + $0xb8] sm:$0xff] %v408
    %446 = vst [vmem:[#allocation2 + $0xc0] sm:$0xff] %v299
    %447 = vst [vmem:[#allocation2 + $0xc8] sm:$0xff] %v301
    %448 = vst [vmem:[#allocation2 + $0xd0] sm:$0xff] %v412
    %449 = vst [vmem:[#allocation2 + $0xd8] sm:$0xff] %v414
    %450 = vst [vmem:[#allocation2 + $0xe0] sm:$0xff] %v305
    %451 = vst [vmem:[#allocation2 + $0xe8] sm:$0xff] %v307
    %452 = vst [vmem:[#allocation2 + $0xf0] sm:$0xff] %v418
    %453 = vst [vmem:[#allocation2 + $0xf8] sm:$0xff] %v420
    %v454 = vld [vmem:[#allocation6] sm:$0xff]
    %v455 = vld [vmem:[#allocation6 + $0x8] sm:$0xff]
    %v456 = vld [vmem:[#allocation6 + $0x10] sm:$0xff]
    %v457 = vld [vmem:[#allocation6 + $0x18] sm:$0xff]
    %v458 = vld [vmem:[#allocation6 + $0x20] sm:$0xff]
    %v459 = vld [vmem:[#allocation6 + $0x28] sm:$0xff]
    %v460 = vld [vmem:[#allocation6 + $0x30] sm:$0xff]
    %v461 = vld [vmem:[#allocation6 + $0x38] sm:$0xff]
    %v462 = vld [vmem:[#allocation6 + $0x40] sm:$0xff]
    %v463 = vld [vmem:[#allocation6 + $0x48] sm:$0xff]
    %v464 = vld [vmem:[#allocation6 + $0x50] sm:$0xff]
    %v465 = vld [vmem:[#allocation6 + $0x58] sm:$0xff]
    %v466 = vld [vmem:[#allocation6 + $0x60] sm:$0xff]
    %v467 = vld [vmem:[#allocation6 + $0x68] sm:$0xff]
    %v468 = vld [vmem:[#allocation6 + $0x70] sm:$0xff]
    %v469 = vld [vmem:[#allocation6 + $0x78] sm:$0xff]
    %v470 = vld [vmem:[#allocation6 + $0x80] sm:$0xff]
    %v471 = vld [vmem:[#allocation6 + $0x88] sm:$0xff]
    %v472 = vld [vmem:[#allocation6 + $0x90] sm:$0xff]
    %v473 = vld [vmem:[#allocation6 + $0x98] sm:$0xff]
    %v474 = vld [vmem:[#allocation6 + $0xa0] sm:$0xff]
    %v475 = vld [vmem:[#allocation6 + $0xa8] sm:$0xff]
    %v476 = vld [vmem:[#allocation6 + $0xb0] sm:$0xff]
    %v477 = vld [vmem:[#allocation6 + $0xb8] sm:$0xff]
    %v478 = vld [vmem:[#allocation6 + $0xc0] sm:$0xff]
    %v479 = vld [vmem:[#allocation6 + $0xc8] sm:$0xff]
    %v480 = vld [vmem:[#allocation6 + $0xd0] sm:$0xff]
    %v481 = vld [vmem:[#allocation6 + $0xd8] sm:$0xff]
    %v482 = vld [vmem:[#allocation6 + $0xe0] sm:$0xff]
    %v483 = vld [vmem:[#allocation6 + $0xe8] sm:$0xff]
    %v484 = vld [vmem:[#allocation6 + $0xf0] sm:$0xff]
    %v485 = vld [vmem:[#allocation6 + $0xf8] sm:$0xff]
    %v486 = vld [vmem:[#allocation6 + $0x100] sm:$0xff]
    %v487 = vld [vmem:[#allocation6 + $0x108] sm:$0xff]
    %v488 = vld [vmem:[#allocation6 + $0x110] sm:$0xff]
    %v489 = vld [vmem:[#allocation6 + $0x118] sm:$0xff]
    %v490 = vld [vmem:[#allocation6 + $0x120] sm:$0xff]
    %v491 = vld [vmem:[#allocation6 + $0x128] sm:$0xff]
    %v492 = vld [vmem:[#allocation6 + $0x130] sm:$0xff]
    %v493 = vld [vmem:[#allocation6 + $0x138] sm:$0xff]
    %v494 = vld [vmem:[#allocation6 + $0x140] sm:$0xff]
    %v495 = vld [vmem:[#allocation6 + $0x148] sm:$0xff]
    %v496 = vld [vmem:[#allocation6 + $0x150] sm:$0xff]
    %v497 = vld [vmem:[#allocation6 + $0x158] sm:$0xff]
    %v498 = vld [vmem:[#allocation6 + $0x160] sm:$0xff]
    %v499 = vld [vmem:[#allocation6 + $0x168] sm:$0xff]
    %v500 = vld [vmem:[#allocation6 + $0x170] sm:$0xff]
    %v501 = vld [vmem:[#allocation6 + $0x178] sm:$0xff]
    %v502 = vld [vmem:[#allocation6 + $0x180] sm:$0xff]
    %v503 = vld [vmem:[#allocation6 + $0x188] sm:$0xff]
    %v504 = vld [vmem:[#allocation6 + $0x190] sm:$0xff]
    %v505 = vld [vmem:[#allocation6 + $0x198] sm:$0xff]
    %v506 = vld [vmem:[#allocation6 + $0x1a0] sm:$0xff]
    %v507 = vld [vmem:[#allocation6 + $0x1a8] sm:$0xff]
    %v508 = vld [vmem:[#allocation6 + $0x1b0] sm:$0xff]
    %v509 = vld [vmem:[#allocation6 + $0x1b8] sm:$0xff]
    %v510 = vld [vmem:[#allocation6 + $0x1c0] sm:$0xff]
    %v511 = vld [vmem:[#allocation6 + $0x1c8] sm:$0xff]
    %v512 = vld [vmem:[#allocation6 + $0x1d0] sm:$0xff]
    %v513 = vld [vmem:[#allocation6 + $0x1d8] sm:$0xff]
    %v514 = vld [vmem:[#allocation6 + $0x1e0] sm:$0xff]
    %v515 = vld [vmem:[#allocation6 + $0x1e8] sm:$0xff]
    %v516 = vld [vmem:[#allocation6 + $0x1f0] sm:$0xff]
    %v517 = vld [vmem:[#allocation6 + $0x1f8] sm:$0xff]
    %v518 = vld [vmem:[#allocation2] sm:$0xff]
    %v519 = vld [vmem:[#allocation2 + $0x8] sm:$0xff]
    %v520 = vld [vmem:[#allocation2 + $0x10] sm:$0xff]
    %v521 = vld [vmem:[#allocation2 + $0x18] sm:$0xff]
    %522 = vmatprep.subr.mxu0 %v455
    %523 = vmatpush1.msra.mxu0 %v454
    %524 = vmatprep.subr.mxu0 %v459
    %525 = vmatpush1.msra.mxu0 %v458
    %526 = vmatprep.subr.mxu0 %v463
    %527 = vmatpush1.msra.mxu0 %v462
    %528 = vmatprep.subr.mxu0 %v467
    %529 = vmatpush1.msra.mxu0 %v466
    %530 = vmatprep.subr.mxu0 %v471
    %531 = vmatpush1.msra.mxu0 %v470
    %532 = vmatprep.subr.mxu0 %v475
    %533 = vmatpush1.msra.mxu0 %v474
    %534 = vmatprep.subr.mxu0 %v479
    %535 = vmatpush1.msra.mxu0 %v478
    %536 = vmatprep.subr.mxu0 %v483
    %537 = vmatpush1.msra.mxu0 %v482
    %538 = vmatprep.subr.mxu0 %v487
    %539 = vmatpush1.msra.mxu0 %v486
    %540 = vmatprep.subr.mxu0 %v491
    %541 = vmatpush1.msra.mxu0 %v490
    %542 = vmatprep.subr.mxu0 %v495
    %543 = vmatpush1.msra.mxu0 %v494
    %544 = vmatprep.subr.mxu0 %v499
    %545 = vmatpush1.msra.mxu0 %v498
    %546 = vmatprep.subr.mxu0 %v503
    %547 = vmatpush1.msra.mxu0 %v502
    %548 = vmatprep.subr.mxu0 %v507
    %549 = vmatpush1.msra.mxu0 %v506
    %550 = vmatprep.subr.mxu0 %v511
    %551 = vmatpush1.msra.mxu0 %v510
    %552 = vmatprep.subr.mxu0 %v515
    %553 = vmatpush1.msra.mxu0 %v514
    %554 = vmatprep.subr.mxu0 0.0
    %555 = vmatpush1.msra.mxu0 0.0
    %556 = vmatprep.subr.mxu0 0.0
    %557 = vmatpush1.msra.mxu0 0.0
    %558 = vmatprep.subr.mxu0 0.0
    %559 = vmatpush1.msra.mxu0 0.0
    %560 = vmatprep.subr.mxu0 0.0
    %561 = vmatpush1.msra.mxu0 0.0
    %562 = vmatprep.subr.mxu0 0.0
    %563 = vmatpush1.msra.mxu0 0.0
    %564 = vmatprep.subr.mxu0 0.0
    %565 = vmatpush1.msra.mxu0 0.0
    %566 = vmatprep.subr.mxu0 0.0
    %567 = vmatpush1.msra.mxu0 0.0
    %568 = vmatprep.subr.mxu0 0.0
    %569 = vmatpush1.msra.mxu0 0.0
    %570 = vmatprep.subr.mxu0 0.0
    %571 = vmatpush1.msra.mxu0 0.0
    %572 = vmatprep.subr.mxu0 0.0
    %573 = vmatpush1.msra.mxu0 0.0
    %574 = vmatprep.subr.mxu0 0.0
    %575 = vmatpush1.msra.mxu0 0.0
    %576 = vmatprep.subr.mxu0 0.0
    %577 = vmatpush1.msra.mxu0 0.0
    %578 = vmatprep.subr.mxu0 0.0
    %579 = vmatpush1.msra.mxu0 0.0
    %580 = vmatprep.subr.mxu0 0.0
    %581 = vmatpush1.msra.mxu0 0.0
    %582 = vmatprep.subr.mxu0 0.0
    %583 = vmatpush1.msra.mxu0 0.0
    %584 = vmatprep.subr.mxu0 0.0
    %585 = vmatpush1.msra.mxu0 0.0
    %586 = vmatprep.mubr.f32.mxu0 0.0
    %587 = vmatmul.mubr.f32.gmra.mrb[0].mxu0 0.0
    %v588 = vpop.f32.mrb[0].mxu0
    %v589 = vadd.f32 0.0, %v588
    %v590 = vpop.f32.mrb[0].mxu0
    %v591 = vadd.f32 0.0, %v590
    %592 = vdwg.mxu0
    %593 = vmatprep.subr.mxu0 %v457
    %594 = vmatpush1.msra.mxu0 %v456
    %595 = vmatprep.subr.mxu0 %v461
    %596 = vmatpush1.msra.mxu0 %v460
    %597 = vmatprep.subr.mxu0 %v465
    %598 = vmatpush1.msra.mxu0 %v464
    %599 = vmatprep.subr.mxu0 %v469
    %600 = vmatpush1.msra.mxu0 %v468
    %601 = vmatprep.subr.mxu0 %v473
    %602 = vmatpush1.msra.mxu0 %v472
    %603 = vmatprep.subr.mxu0 %v477
    %604 = vmatpush1.msra.mxu0 %v476
    %605 = vmatprep.subr.mxu0 %v481
    %606 = vmatpush1.msra.mxu0 %v480
    %607 = vmatprep.subr.mxu0 %v485
    %608 = vmatpush1.msra.mxu0 %v484
    %609 = vmatprep.subr.mxu0 %v489
    %610 = vmatpush1.msra.mxu0 %v488
    %611 = vmatprep.subr.mxu0 %v493
    %612 = vmatpush1.msra.mxu0 %v492
    %613 = vmatprep.subr.mxu0 %v497
    %614 = vmatpush1.msra.mxu0 %v496
    %615 = vmatprep.subr.mxu0 %v501
    %616 = vmatpush1.msra.mxu0 %v500
    %617 = vmatprep.subr.mxu0 %v505
    %618 = vmatpush1.msra.mxu0 %v504
    %619 = vmatprep.subr.mxu0 %v509
    %620 = vmatpush1.msra.mxu0 %v508
    %621 = vmatprep.subr.mxu0 %v513
    %622 = vmatpush1.msra.mxu0 %v512
    %623 = vmatprep.subr.mxu0 %v517
    %624 = vmatpush1.msra.mxu0 %v516
    %625 = vmatprep.subr.mxu0 0.0
    %626 = vmatpush1.msra.mxu0 0.0
    %627 = vmatprep.subr.mxu0 0.0
    %628 = vmatpush1.msra.mxu0 0.0
    %629 = vmatprep.subr.mxu0 0.0
    %630 = vmatpush1.msra.mxu0 0.0
    %631 = vmatprep.subr.mxu0 0.0
    %632 = vmatpush1.msra.mxu0 0.0
    %633 = vmatprep.subr.mxu0 0.0
    %634 = vmatpush1.msra.mxu0 0.0
    %635 = vmatprep.subr.mxu0 0.0
    %636 = vmatpush1.msra.mxu0 0.0
    %637 = vmatprep.subr.mxu0 0.0
    %638 = vmatpush1.msra.mxu0 0.0
    %639 = vmatprep.subr.mxu0 0.0
    %640 = vmatpush1.msra.mxu0 0.0
    %641 = vmatprep.subr.mxu0 0.0
    %642 = vmatpush1.msra.mxu0 0.0
    %643 = vmatprep.subr.mxu0 0.0
    %644 = vmatpush1.msra.mxu0 0.0
    %645 = vmatprep.subr.mxu0 0.0
    %646 = vmatpush1.msra.mxu0 0.0
    %647 = vmatprep.subr.mxu0 0.0
    %648 = vmatpush1.msra.mxu0 0.0
    %649 = vmatprep.subr.mxu0 0.0
    %650 = vmatpush1.msra.mxu0 0.0
    %651 = vmatprep.subr.mxu0 0.0
    %652 = vmatpush1.msra.mxu0 0.0
    %653 = vmatprep.subr.mxu0 0.0
    %654 = vmatpush1.msra.mxu0 0.0
    %655 = vmatprep.subr.mxu0 0.0
    %656 = vmatpush1.msra.mxu0 0.0
    %657 = vmatprep.mubr.f32.mxu0 0.0
    %658 = vmatmul.mubr.f32.gmra.mrb[0].mxu0 0.0
    %v659 = vpop.f32.mrb[0].mxu0
    %v660 = vadd.f32 0.0, %v659
    %v661 = vpop.f32.mrb[0].mxu0
    %v662 = vadd.f32 0.0, %v661
    %663 = vdwg.mxu0
    %v664 = vadd.f32 %v518, %v589
    %v665 = vadd.f32 %v519, %v591
    %v666 = vadd.f32 %v520, %v660
    %v667 = vadd.f32 %v521, %v662
    %v668 = vxor.u32 %v664, 2147483648
    %v669 = vxor.u32 %v665, 2147483648
    %v670 = vxor.u32 %v666, 2147483648
    %v671 = vmul.f32 %v668, 1.442695
    %v672 = vpow.pop %v671
    %v673 = vmul.f32 %v669, 1.442695
    %v674 = vpow.pop %v673
    %v675 = vmul.f32 %v670, 1.442695
    %v676 = vpow.pop %v675
    %v677 = vadd.f32 %v672, 1.0
    %v678 = vadd.f32 %v674, 1.0
    %v679 = vadd.f32 %v676, 1.0
    %v680 = vrcp.pop %v677
    %v681 = vmul.f32 1.0, %v680
    %v682 = vrcp.pop %v678
    %v683 = vmul.f32 1.0, %v682
    %v684 = vrcp.pop %v679
    %v685 = vmul.f32 1.0, %v684
    %v686 = vtanh.pop %v667
    %v687 = vmul.f32 %v683, 0.0
    %v688 = vmul.f32 %v681, %v686
    %v689 = vadd.f32 %v687, %v688
    %v690 = vtanh.pop %v689
    %v691 = vmul.f32 %v685, %v690
    %692 = vst.msk [vmem:[#allocation3] sm:$0xff] %vm171, %v691
    %vm693 = vcmask 785920
    %694 = vst.msk [vmem:[#allocation3 + $0x70] sm:$0xff] %vm693, %v691
    %vm695 = vcmask 1048320
    %696 = vst.msk [vmem:[#allocation3 + $0x30] sm:$0xff] %vm695, %v691
    %698 = vrot.lane.b32.xlu0 %v691, 64
    %v699 = vpop.permute.xlu0 %698
    %701 = vst.msk [vmem:[#allocation3 + $0x8] sm:$0xff] %vm171, %v699
    %702 = vst.msk [vmem:[#allocation3 + $0x78] sm:$0xff] %vm693, %v699
    %703 = vst.msk [vmem:[#allocation3 + $0x38] sm:$0xff] %vm695, %v699
    %v704 = vld [vmem:[#allocation2 + $0x20] sm:$0xff]
    %v705 = vld [vmem:[#allocation2 + $0x28] sm:$0xff]
    %v706 = vld [vmem:[#allocation2 + $0x30] sm:$0xff]
    %v707 = vld [vmem:[#allocation2 + $0x38] sm:$0xff]
    %708 = vmatprep.subr.mxu0 %v455
    %709 = vmatpush1.msra.mxu0 %v454
    %710 = vmatprep.subr.mxu0 %v459
    %711 = vmatpush1.msra.mxu0 %v458
    %712 = vmatprep.subr.mxu0 %v463
    %713 = vmatpush1.msra.mxu0 %v462
    %714 = vmatprep.subr.mxu0 %v467
    %715 = vmatpush1.msra.mxu0 %v466
    %716 = vmatprep.subr.mxu0 %v471
    %717 = vmatpush1.msra.mxu0 %v470
    %718 = vmatprep.subr.mxu0 %v475
    %719 = vmatpush1.msra.mxu0 %v474
    %720 = vmatprep.subr.mxu0 %v479
    %721 = vmatpush1.msra.mxu0 %v478
    %722 = vmatprep.subr.mxu0 %v483
    %723 = vmatpush1.msra.mxu0 %v482
    %724 = vmatprep.subr.mxu0 %v487
    %725 = vmatpush1.msra.mxu0 %v486
    %726 = vmatprep.subr.mxu0 %v491
    %727 = vmatpush1.msra.mxu0 %v490
    %728 = vmatprep.subr.mxu0 %v495
    %729 = vmatpush1.msra.mxu0 %v494
    %730 = vmatprep.subr.mxu0 %v499
    %731 = vmatpush1.msra.mxu0 %v498
    %732 = vmatprep.subr.mxu0 %v503
    %733 = vmatpush1.msra.mxu0 %v502
    %734 = vmatprep.subr.mxu0 %v507
    %735 = vmatpush1.msra.mxu0 %v506
    %736 = vmatprep.subr.mxu0 %v511
    %737 = vmatpush1.msra.mxu0 %v510
    %738 = vmatprep.subr.mxu0 %v515
    %739 = vmatpush1.msra.mxu0 %v514
    %740 = vmatprep.subr.mxu0 0.0
    %741 = vmatpush1.msra.mxu0 0.0
    %742 = vmatprep.subr.mxu0 0.0
    %743 = vmatpush1.msra.mxu0 0.0
    %744 = vmatprep.subr.mxu0 0.0
    %745 = vmatpush1.msra.mxu0 0.0
    %746 = vmatprep.subr.mxu0 0.0
    %747 = vmatpush1.msra.mxu0 0.0
    %748 = vmatprep.subr.mxu0 0.0
    %749 = vmatpush1.msra.mxu0 0.0
    %750 = vmatprep.subr.mxu0 0.0
    %751 = vmatpush1.msra.mxu0 0.0
    %752 = vmatprep.subr.mxu0 0.0
    %753 = vmatpush1.msra.mxu0 0.0
    %754 = vmatprep.subr.mxu0 0.0
    %755 = vmatpush1.msra.mxu0 0.0
    %756 = vmatprep.subr.mxu0 0.0
    %757 = vmatpush1.msra.mxu0 0.0
    %758 = vmatprep.subr.mxu0 0.0
    %759 = vmatpush1.msra.mxu0 0.0
    %760 = vmatprep.subr.mxu0 0.0
    %761 = vmatpush1.msra.mxu0 0.0
    %762 = vmatprep.subr.mxu0 0.0
    %763 = vmatpush1.msra.mxu0 0.0
    %764 = vmatprep.subr.mxu0 0.0
    %765 = vmatpush1.msra.mxu0 0.0
    %766 = vmatprep.subr.mxu0 0.0
    %767 = vmatpush1.msra.mxu0 0.0
    %768 = vmatprep.subr.mxu0 0.0
    %769 = vmatpush1.msra.mxu0 0.0
    %770 = vmatprep.subr.mxu0 0.0
    %771 = vmatpush1.msra.mxu0 0.0
    %772 = vmatprep.mubr.f32.mxu0 0.0
    %773 = vmatmul.mubr.f32.gmra.mrb[0].mxu0 %v691
    %v774 = vpop.f32.mrb[0].mxu0
    %v775 = vadd.f32 0.0, %v774
    %v776 = vpop.f32.mrb[0].mxu0
    %v777 = vadd.f32 0.0, %v776
    %778 = vdwg.mxu0
    %779 = vmatprep.subr.mxu0 %v457
    %780 = vmatpush1.msra.mxu0 %v456
    %781 = vmatprep.subr.mxu0 %v461
    %782 = vmatpush1.msra.mxu0 %v460
    %783 = vmatprep.subr.mxu0 %v465
    %784 = vmatpush1.msra.mxu0 %v464
    %785 = vmatprep.subr.mxu0 %v469
    %786 = vmatpush1.msra.mxu0 %v468
    %787 = vmatprep.subr.mxu0 %v473
    %788 = vmatpush1.msra.mxu0 %v472
    %789 = vmatprep.subr.mxu0 %v477
    %790 = vmatpush1.msra.mxu0 %v476
    %791 = vmatprep.subr.mxu0 %v481
    %792 = vmatpush1.msra.mxu0 %v480
    %793 = vmatprep.subr.mxu0 %v485
    %794 = vmatpush1.msra.mxu0 %v484
    %795 = vmatprep.subr.mxu0 %v489
    %796 = vmatpush1.msra.mxu0 %v488
    %797 = vmatprep.subr.mxu0 %v493
    %798 = vmatpush1.msra.mxu0 %v492
    %799 = vmatprep.subr.mxu0 %v497
    %800 = vmatpush1.msra.mxu0 %v496
    %801 = vmatprep.subr.mxu0 %v501
    %802 = vmatpush1.msra.mxu0 %v500
    %803 = vmatprep.subr.mxu0 %v505
    %804 = vmatpush1.msra.mxu0 %v504
    %805 = vmatprep.subr.mxu0 %v509
    %806 = vmatpush1.msra.mxu0 %v508
    %807 = vmatprep.subr.mxu0 %v513
    %808 = vmatpush1.msra.mxu0 %v512
    %809 = vmatprep.subr.mxu0 %v517
    %810 = vmatpush1.msra.mxu0 %v516
    %811 = vmatprep.subr.mxu0 0.0
    %812 = vmatpush1.msra.mxu0 0.0
    %813 = vmatprep.subr.mxu0 0.0
    %814 = vmatpush1.msra.mxu0 0.0
    %815 = vmatprep.subr.mxu0 0.0
    %816 = vmatpush1.msra.mxu0 0.0
    %817 = vmatprep.subr.mxu0 0.0
    %818 = vmatpush1.msra.mxu0 0.0
    %819 = vmatprep.subr.mxu0 0.0
    %820 = vmatpush1.msra.mxu0 0.0
    %821 = vmatprep.subr.mxu0 0.0
    %822 = vmatpush1.msra.mxu0 0.0
    %823 = vmatprep.subr.mxu0 0.0
    %824 = vmatpush1.msra.mxu0 0.0
    %825 = vmatprep.subr.mxu0 0.0
    %826 = vmatpush1.msra.mxu0 0.0
    %827 = vmatprep.subr.mxu0 0.0
    %828 = vmatpush1.msra.mxu0 0.0
    %829 = vmatprep.subr.mxu0 0.0
    %830 = vmatpush1.msra.mxu0 0.0
    %831 = vmatprep.subr.mxu0 0.0
    %832 = vmatpush1.msra.mxu0 0.0
    %833 = vmatprep.subr.mxu0 0.0
    %834 = vmatpush1.msra.mxu0 0.0
    %835 = vmatprep.subr.mxu0 0.0
    %836 = vmatpush1.msra.mxu0 0.0
    %837 = vmatprep.subr.mxu0 0.0
    %838 = vmatpush1.msra.mxu0 0.0
    %839 = vmatprep.subr.mxu0 0.0
    %840 = vmatpush1.msra.mxu0 0.0
    %841 = vmatprep.subr.mxu0 0.0
    %842 = vmatpush1.msra.mxu0 0.0
    %843 = vmatprep.mubr.f32.mxu0 0.0
    %844 = vmatmul.mubr.f32.gmra.mrb[0].mxu0 %v691
    %v845 = vpop.f32.mrb[0].mxu0
    %v846 = vadd.f32 0.0, %v845
    %v847 = vpop.f32.mrb[0].mxu0
    %v848 = vadd.f32 0.0, %v847
    %849 = vdwg.mxu0
    %v850 = vadd.f32 %v704, %v775
    %v851 = vadd.f32 %v705, %v777
    %v852 = vadd.f32 %v706, %v846
    %v853 = vadd.f32 %v707, %v848
    %v854 = vxor.u32 %v850, 2147483648
    %v855 = vxor.u32 %v851, 2147483648
    %v856 = vxor.u32 %v852, 2147483648
    %v857 = vmul.f32 %v854, 1.442695
    %v858 = vpow.pop %v857
    %v859 = vmul.f32 %v855, 1.442695
    %v860 = vpow.pop %v859
    %v861 = vmul.f32 %v856, 1.442695
    %v862 = vpow.pop %v861
    %v863 = vadd.f32 %v858, 1.0
    %v864 = vadd.f32 %v860, 1.0
    %v865 = vadd.f32 %v862, 1.0
    %v866 = vrcp.pop %v863
    %v867 = vmul.f32 1.0, %v866
    %v868 = vrcp.pop %v864
    %v869 = vmul.f32 1.0, %v868
    %v870 = vrcp.pop %v865
    %v871 = vmul.f32 1.0, %v870
    %v872 = vtanh.pop %v853
    %v873 = vmul.f32 %v869, %v689
    %v874 = vmul.f32 %v867, %v872
    %v875 = vadd.f32 %v873, %v874
    %v876 = vtanh.pop %v875
    %v877 = vmul.f32 %v871, %v876
    %878 = vst.msk [vmem:[#allocation3 + $0x10] sm:$0xff] %vm171, %v877
    %879 = vst.msk [vmem:[#allocation3 + $0x60] sm:$0xff] %vm693, %v877
    %880 = vst.msk [vmem:[#allocation3 + $0x20] sm:$0xff] %vm695, %v877
    %882 = vrot.lane.b32.xlu0 %v877, 64
    %v883 = vpop.permute.xlu0 %882
    %885 = vst.msk [vmem:[#allocation3 + $0x18] sm:$0xff] %vm171, %v883
    %886 = vst.msk [vmem:[#allocation3 + $0x68] sm:$0xff] %vm693, %v883
    %887 = vst.msk [vmem:[#allocation3 + $0x28] sm:$0xff] %vm695, %v883
    %v888 = vld [vmem:[#allocation2 + $0x40] sm:$0xff]
    %v889 = vld [vmem:[#allocation2 + $0x48] sm:$0xff]
    %v890 = vld [vmem:[#allocation2 + $0x50] sm:$0xff]
    %v891 = vld [vmem:[#allocation2 + $0x58] sm:$0xff]
    %892 = vmatprep.subr.mxu0 %v455
    %893 = vmatpush1.msra.mxu0 %v454
    %894 = vmatprep.subr.mxu0 %v459
    %895 = vmatpush1.msra.mxu0 %v458
    %896 = vmatprep.subr.mxu0 %v463
    %897 = vmatpush1.msra.mxu0 %v462
    %898 = vmatprep.subr.mxu0 %v467
    %899 = vmatpush1.msra.mxu0 %v466
    %900 = vmatprep.subr.mxu0 %v471
    %901 = vmatpush1.msra.mxu0 %v470
    %902 = vmatprep.subr.mxu0 %v475
    %903 = vmatpush1.msra.mxu0 %v474
    %904 = vmatprep.subr.mxu0 %v479
    %905 = vmatpush1.msra.mxu0 %v478
    %906 = vmatprep.subr.mxu0 %v483
    %907 = vmatpush1.msra.mxu0 %v482
    %908 = vmatprep.subr.mxu0 %v487
    %909 = vmatpush1.msra.mxu0 %v486
    %910 = vmatprep.subr.mxu0 %v491
    %911 = vmatpush1.msra.mxu0 %v490
    %912 = vmatprep.subr.mxu0 %v495
    %913 = vmatpush1.msra.mxu0 %v494
    %914 = vmatprep.subr.mxu0 %v499
    %915 = vmatpush1.msra.mxu0 %v498
    %916 = vmatprep.subr.mxu0 %v503
    %917 = vmatpush1.msra.mxu0 %v502
    %918 = vmatprep.subr.mxu0 %v507
    %919 = vmatpush1.msra.mxu0 %v506
    %920 = vmatprep.subr.mxu0 %v511
    %921 = vmatpush1.msra.mxu0 %v510
    %922 = vmatprep.subr.mxu0 %v515
    %923 = vmatpush1.msra.mxu0 %v514
    %924 = vmatprep.subr.mxu0 0.0
    %925 = vmatpush1.msra.mxu0 0.0
    %926 = vmatprep.subr.mxu0 0.0
    %927 = vmatpush1.msra.mxu0 0.0
    %928 = vmatprep.subr.mxu0 0.0
    %929 = vmatpush1.msra.mxu0 0.0
    %930 = vmatprep.subr.mxu0 0.0
    %931 = vmatpush1.msra.mxu0 0.0
    %932 = vmatprep.subr.mxu0 0.0
    %933 = vmatpush1.msra.mxu0 0.0
    %934 = vmatprep.subr.mxu0 0.0
    %935 = vmatpush1.msra.mxu0 0.0
    %936 = vmatprep.subr.mxu0 0.0
    %937 = vmatpush1.msra.mxu0 0.0
    %938 = vmatprep.subr.mxu0 0.0
    %939 = vmatpush1.msra.mxu0 0.0
    %940 = vmatprep.subr.mxu0 0.0
    %941 = vmatpush1.msra.mxu0 0.0
    %942 = vmatprep.subr.mxu0 0.0
    %943 = vmatpush1.msra.mxu0 0.0
    %944 = vmatprep.subr.mxu0 0.0
    %945 = vmatpush1.msra.mxu0 0.0
    %946 = vmatprep.subr.mxu0 0.0
    %947 = vmatpush1.msra.mxu0 0.0
    %948 = vmatprep.subr.mxu0 0.0
    %949 = vmatpush1.msra.mxu0 0.0
    %950 = vmatprep.subr.mxu0 0.0
    %951 = vmatpush1.msra.mxu0 0.0
    %952 = vmatprep.subr.mxu0 0.0
    %953 = vmatpush1.msra.mxu0 0.0
    %954 = vmatprep.subr.mxu0 0.0
    %955 = vmatpush1.msra.mxu0 0.0
    %956 = vmatprep.mubr.f32.mxu0 0.0
    %957 = vmatmul.mubr.f32.gmra.mrb[0].mxu0 %v877
    %v958 = vpop.f32.mrb[0].mxu0
    %v959 = vadd.f32 0.0, %v958
    %v960 = vpop.f32.mrb[0].mxu0
    %v961 = vadd.f32 0.0, %v960
    %962 = vdwg.mxu0
    %963 = vmatprep.subr.mxu0 %v457
    %964 = vmatpush1.msra.mxu0 %v456
    %965 = vmatprep.subr.mxu0 %v461
    %966 = vmatpush1.msra.mxu0 %v460
    %967 = vmatprep.subr.mxu0 %v465
    %968 = vmatpush1.msra.mxu0 %v464
    %969 = vmatprep.subr.mxu0 %v469
    %970 = vmatpush1.msra.mxu0 %v468
    %971 = vmatprep.subr.mxu0 %v473
    %972 = vmatpush1.msra.mxu0 %v472
    %973 = vmatprep.subr.mxu0 %v477
    %974 = vmatpush1.msra.mxu0 %v476
    %975 = vmatprep.subr.mxu0 %v481
    %976 = vmatpush1.msra.mxu0 %v480
    %977 = vmatprep.subr.mxu0 %v485
    %978 = vmatpush1.msra.mxu0 %v484
    %979 = vmatprep.subr.mxu0 %v489
    %980 = vmatpush1.msra.mxu0 %v488
    %981 = vmatprep.subr.mxu0 %v493
    %982 = vmatpush1.msra.mxu0 %v492
    %983 = vmatprep.subr.mxu0 %v497
    %984 = vmatpush1.msra.mxu0 %v496
    %985 = vmatprep.subr.mxu0 %v501
    %986 = vmatpush1.msra.mxu0 %v500
    %987 = vmatprep.subr.mxu0 %v505
    %988 = vmatpush1.msra.mxu0 %v504
    %989 = vmatprep.subr.mxu0 %v509
    %990 = vmatpush1.msra.mxu0 %v508
    %991 = vmatprep.subr.mxu0 %v513
    %992 = vmatpush1.msra.mxu0 %v512
    %993 = vmatprep.subr.mxu0 %v517
    %994 = vmatpush1.msra.mxu0 %v516
    %995 = vmatprep.subr.mxu0 0.0
    %996 = vmatpush1.msra.mxu0 0.0
    %997 = vmatprep.subr.mxu0 0.0
    %998 = vmatpush1.msra.mxu0 0.0
    %999 = vmatprep.subr.mxu0 0.0
    %1000 = vmatpush1.msra.mxu0 0.0
    %1001 = vmatprep.subr.mxu0 0.0
    %1002 = vmatpush1.msra.mxu0 0.0
    %1003 = vmatprep.subr.mxu0 0.0
    %1004 = vmatpush1.msra.mxu0 0.0
    %1005 = vmatprep.subr.mxu0 0.0
    %1006 = vmatpush1.msra.mxu0 0.0
    %1007 = vmatprep.subr.mxu0 0.0
    %1008 = vmatpush1.msra.mxu0 0.0
    %1009 = vmatprep.subr.mxu0 0.0
    %1010 = vmatpush1.msra.mxu0 0.0
    %1011 = vmatprep.subr.mxu0 0.0
    %1012 = vmatpush1.msra.mxu0 0.0
    %1013 = vmatprep.subr.mxu0 0.0
    %1014 = vmatpush1.msra.mxu0 0.0
    %1015 = vmatprep.subr.mxu0 0.0
    %1016 = vmatpush1.msra.mxu0 0.0
    %1017 = vmatprep.subr.mxu0 0.0
    %1018 = vmatpush1.msra.mxu0 0.0
    %1019 = vmatprep.subr.mxu0 0.0
    %1020 = vmatpush1.msra.mxu0 0.0
    %1021 = vmatprep.subr.mxu0 0.0
    %1022 = vmatpush1.msra.mxu0 0.0
    %1023 = vmatprep.subr.mxu0 0.0
    %1024 = vmatpush1.msra.mxu0 0.0
    %1025 = vmatprep.subr.mxu0 0.0
    %1026 = vmatpush1.msra.mxu0 0.0
    %1027 = vmatprep.mubr.f32.mxu0 0.0
    %1028 = vmatmul.mubr.f32.gmra.mrb[0].mxu0 %v877
    %v1029 = vpop.f32.mrb[0].mxu0
    %v1030 = vadd.f32 0.0, %v1029
    %v1031 = vpop.f32.mrb[0].mxu0
    %v1032 = vadd.f32 0.0, %v1031
    %1033 = vdwg.mxu0
    %v1034 = vadd.f32 %v888, %v959
    %v1035 = vadd.f32 %v889, %v961
    %v1036 = vadd.f32 %v890, %v1030
    %v1037 = vadd.f32 %v891, %v1032
    %v1038 = vxor.u32 %v1034, 2147483648
    %v1039 = vxor.u32 %v1035, 2147483648
    %v1040 = vxor.u32 %v1036, 2147483648
    %v1041 = vmul.f32 %v1038, 1.442695
    %v1042 = vpow.pop %v1041
    %v1043 = vmul.f32 %v1039, 1.442695
    %v1044 = vpow.pop %v1043
    %v1045 = vmul.f32 %v1040, 1.442695
    %v1046 = vpow.pop %v1045
    %v1047 = vadd.f32 %v1042, 1.0
    %v1048 = vadd.f32 %v1044, 1.0
    %v1049 = vadd.f32 %v1046, 1.0
    %v1050 = vrcp.pop %v1047
    %v1051 = vmul.f32 1.0, %v1050
    %v1052 = vrcp.pop %v1048
    %v1053 = vmul.f32 1.0, %v1052
    %v1054 = vrcp.pop %v1049
    %v1055 = vmul.f32 1.0, %v1054
    %v1056 = vtanh.pop %v1037
    %v1057 = vmul.f32 %v1053, %v875
    %v1058 = vmul.f32 %v1051, %v1056
    %v1059 = vadd.f32 %v1057, %v1058
    %v1060 = vtanh.pop %v1059
    %v1061 = vmul.f32 %v1055, %v1060
    %1062 = vst.msk [vmem:[#allocation3 + $0x20] sm:$0xff] %vm171, %v1061
    %1063 = vst.msk [vmem:[#allocation3 + $0x50] sm:$0xff] %vm693, %v1061
    %1064 = vst.msk [vmem:[#allocation3 + $0x10] sm:$0xff] %vm695, %v1061
    %1066 = vrot.lane.b32.xlu0 %v1061, 64
    %v1067 = vpop.permute.xlu0 %1066
    %1069 = vst.msk [vmem:[#allocation3 + $0x28] sm:$0xff] %vm171, %v1067
    %1070 = vst.msk [vmem:[#allocation3 + $0x58] sm:$0xff] %vm693, %v1067
    %1071 = vst.msk [vmem:[#allocation3 + $0x18] sm:$0xff] %vm695, %v1067
    %v1072 = vld [vmem:[#allocation2 + $0x60] sm:$0xff]
    %v1073 = vld [vmem:[#allocation2 + $0x68] sm:$0xff]
    %v1074 = vld [vmem:[#allocation2 + $0x70] sm:$0xff]
    %v1075 = vld [vmem:[#allocation2 + $0x78] sm:$0xff]
    %1076 = vmatprep.subr.mxu0 %v455
    %1077 = vmatpush1.msra.mxu0 %v454
    %1078 = vmatprep.subr.mxu0 %v459
    %1079 = vmatpush1.msra.mxu0 %v458
    %1080 = vmatprep.subr.mxu0 %v463
    %1081 = vmatpush1.msra.mxu0 %v462
    %1082 = vmatprep.subr.mxu0 %v467
    %1083 = vmatpush1.msra.mxu0 %v466
    %1084 = vmatprep.subr.mxu0 %v471
    %1085 = vmatpush1.msra.mxu0 %v470
    %1086 = vmatprep.subr.mxu0 %v475
    %1087 = vmatpush1.msra.mxu0 %v474
    %1088 = vmatprep.subr.mxu0 %v479
    %1089 = vmatpush1.msra.mxu0 %v478
    %1090 = vmatprep.subr.mxu0 %v483
    %1091 = vmatpush1.msra.mxu0 %v482
    %1092 = vmatprep.subr.mxu0 %v487
    %1093 = vmatpush1.msra.mxu0 %v486
    %1094 = vmatprep.subr.mxu0 %v491
    %1095 = vmatpush1.msra.mxu0 %v490
    %1096 = vmatprep.subr.mxu0 %v495
    %1097 = vmatpush1.msra.mxu0 %v494
    %1098 = vmatprep.subr.mxu0 %v499
    %1099 = vmatpush1.msra.mxu0 %v498
    %1100 = vmatprep.subr.mxu0 %v503
    %1101 = vmatpush1.msra.mxu0 %v502
    %1102 = vmatprep.subr.mxu0 %v507
    %1103 = vmatpush1.msra.mxu0 %v506
    %1104 = vmatprep.subr.mxu0 %v511
    %1105 = vmatpush1.msra.mxu0 %v510
    %1106 = vmatprep.subr.mxu0 %v515
    %1107 = vmatpush1.msra.mxu0 %v514
    %1108 = vmatprep.subr.mxu0 0.0
    %1109 = vmatpush1.msra.mxu0 0.0
    %1110 = vmatprep.subr.mxu0 0.0
    %1111 = vmatpush1.msra.mxu0 0.0
    %1112 = vmatprep.subr.mxu0 0.0
    %1113 = vmatpush1.msra.mxu0 0.0
    %1114 = vmatprep.subr.mxu0 0.0
    %1115 = vmatpush1.msra.mxu0 0.0
    %1116 = vmatprep.subr.mxu0 0.0
    %1117 = vmatpush1.msra.mxu0 0.0
    %1118 = vmatprep.subr.mxu0 0.0
    %1119 = vmatpush1.msra.mxu0 0.0
    %1120 = vmatprep.subr.mxu0 0.0
    %1121 = vmatpush1.msra.mxu0 0.0
    %1122 = vmatprep.subr.mxu0 0.0
    %1123 = vmatpush1.msra.mxu0 0.0
    %1124 = vmatprep.subr.mxu0 0.0
    %1125 = vmatpush1.msra.mxu0 0.0
    %1126 = vmatprep.subr.mxu0 0.0
    %1127 = vmatpush1.msra.mxu0 0.0
    %1128 = vmatprep.subr.mxu0 0.0
    %1129 = vmatpush1.msra.mxu0 0.0
    %1130 = vmatprep.subr.mxu0 0.0
    %1131 = vmatpush1.msra.mxu0 0.0
    %1132 = vmatprep.subr.mxu0 0.0
    %1133 = vmatpush1.msra.mxu0 0.0
    %1134 = vmatprep.subr.mxu0 0.0
    %1135 = vmatpush1.msra.mxu0 0.0
    %1136 = vmatprep.subr.mxu0 0.0
    %1137 = vmatpush1.msra.mxu0 0.0
    %1138 = vmatprep.subr.mxu0 0.0
    %1139 = vmatpush1.msra.mxu0 0.0
    %1140 = vmatprep.mubr.f32.mxu0 0.0
    %1141 = vmatmul.mubr.f32.gmra.mrb[0].mxu0 %v1061
    %v1142 = vpop.f32.mrb[0].mxu0
    %v1143 = vadd.f32 0.0, %v1142
    %v1144 = vpop.f32.mrb[0].mxu0
    %v1145 = vadd.f32 0.0, %v1144
    %1146 = vdwg.mxu0
    %1147 = vmatprep.subr.mxu0 %v457
    %1148 = vmatpush1.msra.mxu0 %v456
    %1149 = vmatprep.subr.mxu0 %v461
    %1150 = vmatpush1.msra.mxu0 %v460
    %1151 = vmatprep.subr.mxu0 %v465
    %1152 = vmatpush1.msra.mxu0 %v464
    %1153 = vmatprep.subr.mxu0 %v469
    %1154 = vmatpush1.msra.mxu0 %v468
    %1155 = vmatprep.subr.mxu0 %v473
    %1156 = vmatpush1.msra.mxu0 %v472
    %1157 = vmatprep.subr.mxu0 %v477
    %1158 = vmatpush1.msra.mxu0 %v476
    %1159 = vmatprep.subr.mxu0 %v481
    %1160 = vmatpush1.msra.mxu0 %v480
    %1161 = vmatprep.subr.mxu0 %v485
    %1162 = vmatpush1.msra.mxu0 %v484
    %1163 = vmatprep.subr.mxu0 %v489
    %1164 = vmatpush1.msra.mxu0 %v488
    %1165 = vmatprep.subr.mxu0 %v493
    %1166 = vmatpush1.msra.mxu0 %v492
    %1167 = vmatprep.subr.mxu0 %v497
    %1168 = vmatpush1.msra.mxu0 %v496
    %1169 = vmatprep.subr.mxu0 %v501
    %1170 = vmatpush1.msra.mxu0 %v500
    %1171 = vmatprep.subr.mxu0 %v505
    %1172 = vmatpush1.msra.mxu0 %v504
    %1173 = vmatprep.subr.mxu0 %v509
    %1174 = vmatpush1.msra.mxu0 %v508
    %1175 = vmatprep.subr.mxu0 %v513
    %1176 = vmatpush1.msra.mxu0 %v512
    %1177 = vmatprep.subr.mxu0 %v517
    %1178 = vmatpush1.msra.mxu0 %v516
    %1179 = vmatprep.subr.mxu0 0.0
    %1180 = vmatpush1.msra.mxu0 0.0
    %1181 = vmatprep.subr.mxu0 0.0
    %1182 = vmatpush1.msra.mxu0 0.0
    %1183 = vmatprep.subr.mxu0 0.0
    %1184 = vmatpush1.msra.mxu0 0.0
    %1185 = vmatprep.subr.mxu0 0.0
    %1186 = vmatpush1.msra.mxu0 0.0
    %1187 = vmatprep.subr.mxu0 0.0
    %1188 = vmatpush1.msra.mxu0 0.0
    %1189 = vmatprep.subr.mxu0 0.0
    %1190 = vmatpush1.msra.mxu0 0.0
    %1191 = vmatprep.subr.mxu0 0.0
    %1192 = vmatpush1.msra.mxu0 0.0
    %1193 = vmatprep.subr.mxu0 0.0
    %1194 = vmatpush1.msra.mxu0 0.0
    %1195 = vmatprep.subr.mxu0 0.0
    %1196 = vmatpush1.msra.mxu0 0.0
    %1197 = vmatprep.subr.mxu0 0.0
    %1198 = vmatpush1.msra.mxu0 0.0
    %1199 = vmatprep.subr.mxu0 0.0
    %1200 = vmatpush1.msra.mxu0 0.0
    %1201 = vmatprep.subr.mxu0 0.0
    %1202 = vmatpush1.msra.mxu0 0.0
    %1203 = vmatprep.subr.mxu0 0.0
    %1204 = vmatpush1.msra.mxu0 0.0
    %1205 = vmatprep.subr.mxu0 0.0
    %1206 = vmatpush1.msra.mxu0 0.0
    %1207 = vmatprep.subr.mxu0 0.0
    %1208 = vmatpush1.msra.mxu0 0.0
    %1209 = vmatprep.subr.mxu0 0.0
    %1210 = vmatpush1.msra.mxu0 0.0
    %1211 = vmatprep.mubr.f32.mxu0 0.0
    %1212 = vmatmul.mubr.f32.gmra.mrb[0].mxu0 %v1061
    %v1213 = vpop.f32.mrb[0].mxu0
    %v1214 = vadd.f32 0.0, %v1213
    %v1215 = vpop.f32.mrb[0].mxu0
    %v1216 = vadd.f32 0.0, %v1215
    %1217 = vdwg.mxu0
    %v1218 = vadd.f32 %v1072, %v1143
    %v1219 = vadd.f32 %v1073, %v1145
    %v1220 = vadd.f32 %v1074, %v1214
    %v1221 = vadd.f32 %v1075, %v1216
    %v1222 = vxor.u32 %v1218, 2147483648
    %v1223 = vxor.u32 %v1219, 2147483648
    %v1224 = vxor.u32 %v1220, 2147483648
    %v1225 = vmul.f32 %v1222, 1.442695
    %v1226 = vpow.pop %v1225
    %v1227 = vmul.f32 %v1223, 1.442695
    %v1228 = vpow.pop %v1227
    %v1229 = vmul.f32 %v1224, 1.442695
    %v1230 = vpow.pop %v1229
    %v1231 = vadd.f32 %v1226, 1.0
    %v1232 = vadd.f32 %v1228, 1.0
    %v1233 = vadd.f32 %v1230, 1.0
    %v1234 = vrcp.pop %v1231
    %v1235 = vmul.f32 1.0, %v1234
    %v1236 = vrcp.pop %v1232
    %v1237 = vmul.f32 1.0, %v1236
    %v1238 = vrcp.pop %v1233
    %v1239 = vmul.f32 1.0, %v1238
    %v1240 = vtanh.pop %v1221
    %v1241 = vmul.f32 %v1237, %v1059
    %v1242 = vmul.f32 %v1235, %v1240
    %v1243 = vadd.f32 %v1241, %v1242
    %v1244 = vtanh.pop %v1243
    %v1245 = vmul.f32 %v1239, %v1244
    %1246 = vst.msk [vmem:[#allocation3 + $0x30] sm:$0xff] %vm171, %v1245
    %1247 = vst.msk [vmem:[#allocation3 + $0x40] sm:$0xff] %vm693, %v1245
    %1248 = vst.msk [vmem:[#allocation3] sm:$0xff] %vm695, %v1245
    %1250 = vrot.lane.b32.xlu0 %v1245, 64
    %v1251 = vpop.permute.xlu0 %1250
    %1253 = vst.msk [vmem:[#allocation3 + $0x38] sm:$0xff] %vm171, %v1251
    %1254 = vst.msk [vmem:[#allocation3 + $0x48] sm:$0xff] %vm693, %v1251
    %1255 = vst.msk [vmem:[#allocation3 + $0x8] sm:$0xff] %vm695, %v1251
    %v1256 = vld [vmem:[#allocation2 + $0x80] sm:$0xff]
    %v1257 = vld [vmem:[#allocation2 + $0x88] sm:$0xff]
    %v1258 = vld [vmem:[#allocation2 + $0x90] sm:$0xff]
    %v1259 = vld [vmem:[#allocation2 + $0x98] sm:$0xff]
    %1260 = vmatprep.subr.mxu0 %v455
    %1261 = vmatpush1.msra.mxu0 %v454
    %1262 = vmatprep.subr.mxu0 %v459
    %1263 = vmatpush1.msra.mxu0 %v458
    %1264 = vmatprep.subr.mxu0 %v463
    %1265 = vmatpush1.msra.mxu0 %v462
    %1266 = vmatprep.subr.mxu0 %v467
    %1267 = vmatpush1.msra.mxu0 %v466
    %1268 = vmatprep.subr.mxu0 %v471
    %1269 = vmatpush1.msra.mxu0 %v470
    %1270 = vmatprep.subr.mxu0 %v475
    %1271 = vmatpush1.msra.mxu0 %v474
    %1272 = vmatprep.subr.mxu0 %v479
    %1273 = vmatpush1.msra.mxu0 %v478
    %1274 = vmatprep.subr.mxu0 %v483
    %1275 = vmatpush1.msra.mxu0 %v482
    %1276 = vmatprep.subr.mxu0 %v487
    %1277 = vmatpush1.msra.mxu0 %v486
    %1278 = vmatprep.subr.mxu0 %v491
    %1279 = vmatpush1.msra.mxu0 %v490
    %1280 = vmatprep.subr.mxu0 %v495
    %1281 = vmatpush1.msra.mxu0 %v494
    %1282 = vmatprep.subr.mxu0 %v499
    %1283 = vmatpush1.msra.mxu0 %v498
    %1284 = vmatprep.subr.mxu0 %v503
    %1285 = vmatpush1.msra.mxu0 %v502
    %1286 = vmatprep.subr.mxu0 %v507
    %1287 = vmatpush1.msra.mxu0 %v506
    %1288 = vmatprep.subr.mxu0 %v511
    %1289 = vmatpush1.msra.mxu0 %v510
    %1290 = vmatprep.subr.mxu0 %v515
    %1291 = vmatpush1.msra.mxu0 %v514
    %1292 = vmatprep.subr.mxu0 0.0
    %1293 = vmatpush1.msra.mxu0 0.0
    %1294 = vmatprep.subr.mxu0 0.0
    %1295 = vmatpush1.msra.mxu0 0.0
    %1296 = vmatprep.subr.mxu0 0.0
    %1297 = vmatpush1.msra.mxu0 0.0
    %1298 = vmatprep.subr.mxu0 0.0
    %1299 = vmatpush1.msra.mxu0 0.0
    %1300 = vmatprep.subr.mxu0 0.0
    %1301 = vmatpush1.msra.mxu0 0.0
    %1302 = vmatprep.subr.mxu0 0.0
    %1303 = vmatpush1.msra.mxu0 0.0
    %1304 = vmatprep.subr.mxu0 0.0
    %1305 = vmatpush1.msra.mxu0 0.0
    %1306 = vmatprep.subr.mxu0 0.0
    %1307 = vmatpush1.msra.mxu0 0.0
    %1308 = vmatprep.subr.mxu0 0.0
    %1309 = vmatpush1.msra.mxu0 0.0
    %1310 = vmatprep.subr.mxu0 0.0
    %1311 = vmatpush1.msra.mxu0 0.0
    %1312 = vmatprep.subr.mxu0 0.0
    %1313 = vmatpush1.msra.mxu0 0.0
    %1314 = vmatprep.subr.mxu0 0.0
    %1315 = vmatpush1.msra.mxu0 0.0
    %1316 = vmatprep.subr.mxu0 0.0
    %1317 = vmatpush1.msra.mxu0 0.0
    %1318 = vmatprep.subr.mxu0 0.0
    %1319 = vmatpush1.msra.mxu0 0.0
    %1320 = vmatprep.subr.mxu0 0.0
    %1321 = vmatpush1.msra.mxu0 0.0
    %1322 = vmatprep.subr.mxu0 0.0
    %1323 = vmatpush1.msra.mxu0 0.0
    %1324 = vmatprep.mubr.f32.mxu0 0.0
    %1325 = vmatmul.mubr.f32.gmra.mrb[0].mxu0 %v1245
    %v1326 = vpop.f32.mrb[0].mxu0
    %v1327 = vadd.f32 0.0, %v1326
    %v1328 = vpop.f32.mrb[0].mxu0
    %v1329 = vadd.f32 0.0, %v1328
    %1330 = vdwg.mxu0
    %1331 = vmatprep.subr.mxu0 %v457
    %1332 = vmatpush1.msra.mxu0 %v456
    %1333 = vmatprep.subr.mxu0 %v461
    %1334 = vmatpush1.msra.mxu0 %v460
    %1335 = vmatprep.subr.mxu0 %v465
    %1336 = vmatpush1.msra.mxu0 %v464
    %1337 = vmatprep.subr.mxu0 %v469
    %1338 = vmatpush1.msra.mxu0 %v468
    %1339 = vmatprep.subr.mxu0 %v473
    %1340 = vmatpush1.msra.mxu0 %v472
    %1341 = vmatprep.subr.mxu0 %v477
    %1342 = vmatpush1.msra.mxu0 %v476
    %1343 = vmatprep.subr.mxu0 %v481
    %1344 = vmatpush1.msra.mxu0 %v480
    %1345 = vmatprep.subr.mxu0 %v485
    %1346 = vmatpush1.msra.mxu0 %v484
    %1347 = vmatprep.subr.mxu0 %v489
    %1348 = vmatpush1.msra.mxu0 %v488
    %1349 = vmatprep.subr.mxu0 %v493
    %1350 = vmatpush1.msra.mxu0 %v492
    %1351 = vmatprep.subr.mxu0 %v497
    %1352 = vmatpush1.msra.mxu0 %v496
    %1353 = vmatprep.subr.mxu0 %v501
    %1354 = vmatpush1.msra.mxu0 %v500
    %1355 = vmatprep.subr.mxu0 %v505
    %1356 = vmatpush1.msra.mxu0 %v504
    %1357 = vmatprep.subr.mxu0 %v509
    %1358 = vmatpush1.msra.mxu0 %v508
    %1359 = vmatprep.subr.mxu0 %v513
    %1360 = vmatpush1.msra.mxu0 %v512
    %1361 = vmatprep.subr.mxu0 %v517
    %1362 = vmatpush1.msra.mxu0 %v516
    %1363 = vmatprep.subr.mxu0 0.0
    %1364 = vmatpush1.msra.mxu0 0.0
    %1365 = vmatprep.subr.mxu0 0.0
    %1366 = vmatpush1.msra.mxu0 0.0
    %1367 = vmatprep.subr.mxu0 0.0
    %1368 = vmatpush1.msra.mxu0 0.0
    %1369 = vmatprep.subr.mxu0 0.0
    %1370 = vmatpush1.msra.mxu0 0.0
    %1371 = vmatprep.subr.mxu0 0.0
    %1372 = vmatpush1.msra.mxu0 0.0
    %1373 = vmatprep.subr.mxu0 0.0
    %1374 = vmatpush1.msra.mxu0 0.0
    %1375 = vmatprep.subr.mxu0 0.0
    %1376 = vmatpush1.msra.mxu0 0.0
    %1377 = vmatprep.subr.mxu0 0.0
    %1378 = vmatpush1.msra.mxu0 0.0
    %1379 = vmatprep.subr.mxu0 0.0
    %1380 = vmatpush1.msra.mxu0 0.0
    %1381 = vmatprep.subr.mxu0 0.0
    %1382 = vmatpush1.msra.mxu0 0.0
    %1383 = vmatprep.subr.mxu0 0.0
    %1384 = vmatpush1.msra.mxu0 0.0
    %1385 = vmatprep.subr.mxu0 0.0
    %1386 = vmatpush1.msra.mxu0 0.0
    %1387 = vmatprep.subr.mxu0 0.0
    %1388 = vmatpush1.msra.mxu0 0.0
    %1389 = vmatprep.subr.mxu0 0.0
    %1390 = vmatpush1.msra.mxu0 0.0
    %1391 = vmatprep.subr.mxu0 0.0
    %1392 = vmatpush1.msra.mxu0 0.0
    %1393 = vmatprep.subr.mxu0 0.0
    %1394 = vmatpush1.msra.mxu0 0.0
    %1395 = vmatprep.mubr.f32.mxu0 0.0
    %1396 = vmatmul.mubr.f32.gmra.mrb[0].mxu0 %v1245
    %v1397 = vpop.f32.mrb[0].mxu0
    %v1398 = vadd.f32 0.0, %v1397
    %v1399 = vpop.f32.mrb[0].mxu0
    %v1400 = vadd.f32 0.0, %v1399
    %1401 = vdwg.mxu0
    %v1402 = vadd.f32 %v1256, %v1327
    %v1403 = vadd.f32 %v1257, %v1329
    %v1404 = vadd.f32 %v1258, %v1398
    %v1405 = vadd.f32 %v1259, %v1400
    %v1406 = vxor.u32 %v1402, 2147483648
    %v1407 = vxor.u32 %v1403, 2147483648
    %v1408 = vxor.u32 %v1404, 2147483648
    %v1409 = vmul.f32 %v1406, 1.442695
    %v1410 = vpow.pop %v1409
    %v1411 = vmul.f32 %v1407, 1.442695
    %v1412 = vpow.pop %v1411
    %v1413 = vmul.f32 %v1408, 1.442695
    %v1414 = vpow.pop %v1413
    %v1415 = vadd.f32 %v1410, 1.0
    %v1416 = vadd.f32 %v1412, 1.0
    %v1417 = vadd.f32 %v1414, 1.0
    %v1418 = vrcp.pop %v1415
    %v1419 = vmul.f32 1.0, %v1418
    %v1420 = vrcp.pop %v1416
    %v1421 = vmul.f32 1.0, %v1420
    %v1422 = vrcp.pop %v1417
    %v1423 = vmul.f32 1.0, %v1422
    %v1424 = vtanh.pop %v1405
    %v1425 = vmul.f32 %v1421, %v1243
    %v1426 = vmul.f32 %v1419, %v1424
    %v1427 = vadd.f32 %v1425, %v1426
    %v1428 = vtanh.pop %v1427
    %v1429 = vmul.f32 %v1423, %v1428
    %1430 = vst.msk [vmem:[#allocation3 + $0x40] sm:$0xff] %vm171, %v1429
    %1431 = vst.msk [vmem:[#allocation3 + $0x30] sm:$0xff] %vm693, %v1429
    %1433 = vrot.lane.b32.xlu0 %v1429, 64
    %v1434 = vpop.permute.xlu0 %1433
    %1436 = vst.msk [vmem:[#allocation3 + $0x48] sm:$0xff] %vm171, %v1434
    %1437 = vst.msk [vmem:[#allocation3 + $0x38] sm:$0xff] %vm693, %v1434
    %v1438 = vld [vmem:[#allocation2 + $0xa0] sm:$0xff]
    %v1439 = vld [vmem:[#allocation2 + $0xa8] sm:$0xff]
    %v1440 = vld [vmem:[#allocation2 + $0xb0] sm:$0xff]
    %v1441 = vld [vmem:[#allocation2 + $0xb8] sm:$0xff]
    %1442 = vmatprep.subr.mxu0 %v455
    %1443 = vmatpush1.msra.mxu0 %v454
    %1444 = vmatprep.subr.mxu0 %v459
    %1445 = vmatpush1.msra.mxu0 %v458
    %1446 = vmatprep.subr.mxu0 %v463
    %1447 = vmatpush1.msra.mxu0 %v462
    %1448 = vmatprep.subr.mxu0 %v467
    %1449 = vmatpush1.msra.mxu0 %v466
    %1450 = vmatprep.subr.mxu0 %v471
    %1451 = vmatpush1.msra.mxu0 %v470
    %1452 = vmatprep.subr.mxu0 %v475
    %1453 = vmatpush1.msra.mxu0 %v474
    %1454 = vmatprep.subr.mxu0 %v479
    %1455 = vmatpush1.msra.mxu0 %v478
    %1456 = vmatprep.subr.mxu0 %v483
    %1457 = vmatpush1.msra.mxu0 %v482
    %1458 = vmatprep.subr.mxu0 %v487
    %1459 = vmatpush1.msra.mxu0 %v486
    %1460 = vmatprep.subr.mxu0 %v491
    %1461 = vmatpush1.msra.mxu0 %v490
    %1462 = vmatprep.subr.mxu0 %v495
    %1463 = vmatpush1.msra.mxu0 %v494
    %1464 = vmatprep.subr.mxu0 %v499
    %1465 = vmatpush1.msra.mxu0 %v498
    %1466 = vmatprep.subr.mxu0 %v503
    %1467 = vmatpush1.msra.mxu0 %v502
    %1468 = vmatprep.subr.mxu0 %v507
    %1469 = vmatpush1.msra.mxu0 %v506
    %1470 = vmatprep.subr.mxu0 %v511
    %1471 = vmatpush1.msra.mxu0 %v510
    %1472 = vmatprep.subr.mxu0 %v515
    %1473 = vmatpush1.msra.mxu0 %v514
    %1474 = vmatprep.subr.mxu0 0.0
    %1475 = vmatpush1.msra.mxu0 0.0
    %1476 = vmatprep.subr.mxu0 0.0
    %1477 = vmatpush1.msra.mxu0 0.0
    %1478 = vmatprep.subr.mxu0 0.0
    %1479 = vmatpush1.msra.mxu0 0.0
    %1480 = vmatprep.subr.mxu0 0.0
    %1481 = vmatpush1.msra.mxu0 0.0
    %1482 = vmatprep.subr.mxu0 0.0
    %1483 = vmatpush1.msra.mxu0 0.0
    %1484 = vmatprep.subr.mxu0 0.0
    %1485 = vmatpush1.msra.mxu0 0.0
    %1486 = vmatprep.subr.mxu0 0.0
    %1487 = vmatpush1.msra.mxu0 0.0
    %1488 = vmatprep.subr.mxu0 0.0
    %1489 = vmatpush1.msra.mxu0 0.0
    %1490 = vmatprep.subr.mxu0 0.0
    %1491 = vmatpush1.msra.mxu0 0.0
    %1492 = vmatprep.subr.mxu0 0.0
    %1493 = vmatpush1.msra.mxu0 0.0
    %1494 = vmatprep.subr.mxu0 0.0
    %1495 = vmatpush1.msra.mxu0 0.0
    %1496 = vmatprep.subr.mxu0 0.0
    %1497 = vmatpush1.msra.mxu0 0.0
    %1498 = vmatprep.subr.mxu0 0.0
    %1499 = vmatpush1.msra.mxu0 0.0
    %1500 = vmatprep.subr.mxu0 0.0
    %1501 = vmatpush1.msra.mxu0 0.0
    %1502 = vmatprep.subr.mxu0 0.0
    %1503 = vmatpush1.msra.mxu0 0.0
    %1504 = vmatprep.subr.mxu0 0.0
    %1505 = vmatpush1.msra.mxu0 0.0
    %1506 = vmatprep.mubr.f32.mxu0 0.0
    %1507 = vmatmul.mubr.f32.gmra.mrb[0].mxu0 %v1429
    %v1508 = vpop.f32.mrb[0].mxu0
    %v1509 = vadd.f32 0.0, %v1508
    %v1510 = vpop.f32.mrb[0].mxu0
    %v1511 = vadd.f32 0.0, %v1510
    %1512 = vdwg.mxu0
    %1513 = vmatprep.subr.mxu0 %v457
    %1514 = vmatpush1.msra.mxu0 %v456
    %1515 = vmatprep.subr.mxu0 %v461
    %1516 = vmatpush1.msra.mxu0 %v460
    %1517 = vmatprep.subr.mxu0 %v465
    %1518 = vmatpush1.msra.mxu0 %v464
    %1519 = vmatprep.subr.mxu0 %v469
    %1520 = vmatpush1.msra.mxu0 %v468
    %1521 = vmatprep.subr.mxu0 %v473
    %1522 = vmatpush1.msra.mxu0 %v472
    %1523 = vmatprep.subr.mxu0 %v477
    %1524 = vmatpush1.msra.mxu0 %v476
    %1525 = vmatprep.subr.mxu0 %v481
    %1526 = vmatpush1.msra.mxu0 %v480
    %1527 = vmatprep.subr.mxu0 %v485
    %1528 = vmatpush1.msra.mxu0 %v484
    %1529 = vmatprep.subr.mxu0 %v489
    %1530 = vmatpush1.msra.mxu0 %v488
    %1531 = vmatprep.subr.mxu0 %v493
    %1532 = vmatpush1.msra.mxu0 %v492
    %1533 = vmatprep.subr.mxu0 %v497
    %1534 = vmatpush1.msra.mxu0 %v496
    %1535 = vmatprep.subr.mxu0 %v501
    %1536 = vmatpush1.msra.mxu0 %v500
    %1537 = vmatprep.subr.mxu0 %v505
    %1538 = vmatpush1.msra.mxu0 %v504
    %1539 = vmatprep.subr.mxu0 %v509
    %1540 = vmatpush1.msra.mxu0 %v508
    %1541 = vmatprep.subr.mxu0 %v513
    %1542 = vmatpush1.msra.mxu0 %v512
    %1543 = vmatprep.subr.mxu0 %v517
    %1544 = vmatpush1.msra.mxu0 %v516
    %1545 = vmatprep.subr.mxu0 0.0
    %1546 = vmatpush1.msra.mxu0 0.0
    %1547 = vmatprep.subr.mxu0 0.0
    %1548 = vmatpush1.msra.mxu0 0.0
    %1549 = vmatprep.subr.mxu0 0.0
    %1550 = vmatpush1.msra.mxu0 0.0
    %1551 = vmatprep.subr.mxu0 0.0
    %1552 = vmatpush1.msra.mxu0 0.0
    %1553 = vmatprep.subr.mxu0 0.0
    %1554 = vmatpush1.msra.mxu0 0.0
    %1555 = vmatprep.subr.mxu0 0.0
    %1556 = vmatpush1.msra.mxu0 0.0
    %1557 = vmatprep.subr.mxu0 0.0
    %1558 = vmatpush1.msra.mxu0 0.0
    %1559 = vmatprep.subr.mxu0 0.0
    %1560 = vmatpush1.msra.mxu0 0.0
    %1561 = vmatprep.subr.mxu0 0.0
    %1562 = vmatpush1.msra.mxu0 0.0
    %1563 = vmatprep.subr.mxu0 0.0
    %1564 = vmatpush1.msra.mxu0 0.0
    %1565 = vmatprep.subr.mxu0 0.0
    %1566 = vmatpush1.msra.mxu0 0.0
    %1567 = vmatprep.subr.mxu0 0.0
    %1568 = vmatpush1.msra.mxu0 0.0
    %1569 = vmatprep.subr.mxu0 0.0
    %1570 = vmatpush1.msra.mxu0 0.0
    %1571 = vmatprep.subr.mxu0 0.0
    %1572 = vmatpush1.msra.mxu0 0.0
    %1573 = vmatprep.subr.mxu0 0.0
    %1574 = vmatpush1.msra.mxu0 0.0
    %1575 = vmatprep.subr.mxu0 0.0
    %1576 = vmatpush1.msra.mxu0 0.0
    %1577 = vmatprep.mubr.f32.mxu0 0.0
    %1578 = vmatmul.mubr.f32.gmra.mrb[0].mxu0 %v1429
    %v1579 = vpop.f32.mrb[0].mxu0
    %v1580 = vadd.f32 0.0, %v1579
    %v1581 = vpop.f32.mrb[0].mxu0
    %v1582 = vadd.f32 0.0, %v1581
    %1583 = vdwg.mxu0
    %v1584 = vadd.f32 %v1438, %v1509
    %v1585 = vadd.f32 %v1439, %v1511
    %v1586 = vadd.f32 %v1440, %v1580
    %v1587 = vadd.f32 %v1441, %v1582
    %v1588 = vxor.u32 %v1584, 2147483648
    %v1589 = vxor.u32 %v1585, 2147483648
    %v1590 = vxor.u32 %v1586, 2147483648
    %v1591 = vmul.f32 %v1588, 1.442695
    %v1592 = vpow.pop %v1591
    %v1593 = vmul.f32 %v1589, 1.442695
    %v1594 = vpow.pop %v1593
    %v1595 = vmul.f32 %v1590, 1.442695
    %v1596 = vpow.pop %v1595
    %v1597 = vadd.f32 %v1592, 1.0
    %v1598 = vadd.f32 %v1594, 1.0
    %v1599 = vadd.f32 %v1596, 1.0
    %v1600 = vrcp.pop %v1597
    %v1601 = vmul.f32 1.0, %v1600
    %v1602 = vrcp.pop %v1598
    %v1603 = vmul.f32 1.0, %v1602
    %v1604 = vrcp.pop %v1599
    %v1605 = vmul.f32 1.0, %v1604
    %v1606 = vtanh.pop %v1587
    %v1607 = vmul.f32 %v1603, %v1427
    %v1608 = vmul.f32 %v1601, %v1606
    %v1609 = vadd.f32 %v1607, %v1608
    %v1610 = vtanh.pop %v1609
    %v1611 = vmul.f32 %v1605, %v1610
    %1612 = vst.msk [vmem:[#allocation3 + $0x50] sm:$0xff] %vm171, %v1611
    %1613 = vst.msk [vmem:[#allocation3 + $0x20] sm:$0xff] %vm693, %v1611
    %1615 = vrot.lane.b32.xlu0 %v1611, 64
    %v1616 = vpop.permute.xlu0 %1615
    %1618 = vst.msk [vmem:[#allocation3 + $0x58] sm:$0xff] %vm171, %v1616
    %1619 = vst.msk [vmem:[#allocation3 + $0x28] sm:$0xff] %vm693, %v1616
    %v1620 = vld [vmem:[#allocation2 + $0xc0] sm:$0xff]
    %v1621 = vld [vmem:[#allocation2 + $0xc8] sm:$0xff]
    %v1622 = vld [vmem:[#allocation2 + $0xd0] sm:$0xff]
    %v1623 = vld [vmem:[#allocation2 + $0xd8] sm:$0xff]
    %1624 = vmatprep.subr.mxu0 %v455
    %1625 = vmatpush1.msra.mxu0 %v454
    %1626 = vmatprep.subr.mxu0 %v459
    %1627 = vmatpush1.msra.mxu0 %v458
    %1628 = vmatprep.subr.mxu0 %v463
    %1629 = vmatpush1.msra.mxu0 %v462
    %1630 = vmatprep.subr.mxu0 %v467
    %1631 = vmatpush1.msra.mxu0 %v466
    %1632 = vmatprep.subr.mxu0 %v471
    %1633 = vmatpush1.msra.mxu0 %v470
    %1634 = vmatprep.subr.mxu0 %v475
    %1635 = vmatpush1.msra.mxu0 %v474
    %1636 = vmatprep.subr.mxu0 %v479
    %1637 = vmatpush1.msra.mxu0 %v478
    %1638 = vmatprep.subr.mxu0 %v483
    %1639 = vmatpush1.msra.mxu0 %v482
    %1640 = vmatprep.subr.mxu0 %v487
    %1641 = vmatpush1.msra.mxu0 %v486
    %1642 = vmatprep.subr.mxu0 %v491
    %1643 = vmatpush1.msra.mxu0 %v490
    %1644 = vmatprep.subr.mxu0 %v495
    %1645 = vmatpush1.msra.mxu0 %v494
    %1646 = vmatprep.subr.mxu0 %v499
    %1647 = vmatpush1.msra.mxu0 %v498
    %1648 = vmatprep.subr.mxu0 %v503
    %1649 = vmatpush1.msra.mxu0 %v502
    %1650 = vmatprep.subr.mxu0 %v507
    %1651 = vmatpush1.msra.mxu0 %v506
    %1652 = vmatprep.subr.mxu0 %v511
    %1653 = vmatpush1.msra.mxu0 %v510
    %1654 = vmatprep.subr.mxu0 %v515
    %1655 = vmatpush1.msra.mxu0 %v514
    %1656 = vmatprep.subr.mxu0 0.0
    %1657 = vmatpush1.msra.mxu0 0.0
    %1658 = vmatprep.subr.mxu0 0.0
    %1659 = vmatpush1.msra.mxu0 0.0
    %1660 = vmatprep.subr.mxu0 0.0
    %1661 = vmatpush1.msra.mxu0 0.0
    %1662 = vmatprep.subr.mxu0 0.0
    %1663 = vmatpush1.msra.mxu0 0.0
    %1664 = vmatprep.subr.mxu0 0.0
    %1665 = vmatpush1.msra.mxu0 0.0
    %1666 = vmatprep.subr.mxu0 0.0
    %1667 = vmatpush1.msra.mxu0 0.0
    %1668 = vmatprep.subr.mxu0 0.0
    %1669 = vmatpush1.msra.mxu0 0.0
    %1670 = vmatprep.subr.mxu0 0.0
    %1671 = vmatpush1.msra.mxu0 0.0
    %1672 = vmatprep.subr.mxu0 0.0
    %1673 = vmatpush1.msra.mxu0 0.0
    %1674 = vmatprep.subr.mxu0 0.0
    %1675 = vmatpush1.msra.mxu0 0.0
    %1676 = vmatprep.subr.mxu0 0.0
    %1677 = vmatpush1.msra.mxu0 0.0
    %1678 = vmatprep.subr.mxu0 0.0
    %1679 = vmatpush1.msra.mxu0 0.0
    %1680 = vmatprep.subr.mxu0 0.0
    %1681 = vmatpush1.msra.mxu0 0.0
    %1682 = vmatprep.subr.mxu0 0.0
    %1683 = vmatpush1.msra.mxu0 0.0
    %1684 = vmatprep.subr.mxu0 0.0
    %1685 = vmatpush1.msra.mxu0 0.0
    %1686 = vmatprep.subr.mxu0 0.0
    %1687 = vmatpush1.msra.mxu0 0.0
    %1688 = vmatprep.mubr.f32.mxu0 0.0
    %1689 = vmatmul.mubr.f32.gmra.mrb[0].mxu0 %v1611
    %v1690 = vpop.f32.mrb[0].mxu0
    %v1691 = vadd.f32 0.0, %v1690
    %v1692 = vpop.f32.mrb[0].mxu0
    %v1693 = vadd.f32 0.0, %v1692
    %1694 = vdwg.mxu0
    %1695 = vmatprep.subr.mxu0 %v457
    %1696 = vmatpush1.msra.mxu0 %v456
    %1697 = vmatprep.subr.mxu0 %v461
    %1698 = vmatpush1.msra.mxu0 %v460
    %1699 = vmatprep.subr.mxu0 %v465
    %1700 = vmatpush1.msra.mxu0 %v464
    %1701 = vmatprep.subr.mxu0 %v469
    %1702 = vmatpush1.msra.mxu0 %v468
    %1703 = vmatprep.subr.mxu0 %v473
    %1704 = vmatpush1.msra.mxu0 %v472
    %1705 = vmatprep.subr.mxu0 %v477
    %1706 = vmatpush1.msra.mxu0 %v476
    %1707 = vmatprep.subr.mxu0 %v481
    %1708 = vmatpush1.msra.mxu0 %v480
    %1709 = vmatprep.subr.mxu0 %v485
    %1710 = vmatpush1.msra.mxu0 %v484
    %1711 = vmatprep.subr.mxu0 %v489
    %1712 = vmatpush1.msra.mxu0 %v488
    %1713 = vmatprep.subr.mxu0 %v493
    %1714 = vmatpush1.msra.mxu0 %v492
    %1715 = vmatprep.subr.mxu0 %v497
    %1716 = vmatpush1.msra.mxu0 %v496
    %1717 = vmatprep.subr.mxu0 %v501
    %1718 = vmatpush1.msra.mxu0 %v500
    %1719 = vmatprep.subr.mxu0 %v505
    %1720 = vmatpush1.msra.mxu0 %v504
    %1721 = vmatprep.subr.mxu0 %v509
    %1722 = vmatpush1.msra.mxu0 %v508
    %1723 = vmatprep.subr.mxu0 %v513
    %1724 = vmatpush1.msra.mxu0 %v512
    %1725 = vmatprep.subr.mxu0 %v517
    %1726 = vmatpush1.msra.mxu0 %v516
    %1727 = vmatprep.subr.mxu0 0.0
    %1728 = vmatpush1.msra.mxu0 0.0
    %1729 = vmatprep.subr.mxu0 0.0
    %1730 = vmatpush1.msra.mxu0 0.0
    %1731 = vmatprep.subr.mxu0 0.0
    %1732 = vmatpush1.msra.mxu0 0.0
    %1733 = vmatprep.subr.mxu0 0.0
    %1734 = vmatpush1.msra.mxu0 0.0
    %1735 = vmatprep.subr.mxu0 0.0
    %1736 = vmatpush1.msra.mxu0 0.0
    %1737 = vmatprep.subr.mxu0 0.0
    %1738 = vmatpush1.msra.mxu0 0.0
    %1739 = vmatprep.subr.mxu0 0.0
    %1740 = vmatpush1.msra.mxu0 0.0
    %1741 = vmatprep.subr.mxu0 0.0
    %1742 = vmatpush1.msra.mxu0 0.0
    %1743 = vmatprep.subr.mxu0 0.0
    %1744 = vmatpush1.msra.mxu0 0.0
    %1745 = vmatprep.subr.mxu0 0.0
    %1746 = vmatpush1.msra.mxu0 0.0
    %1747 = vmatprep.subr.mxu0 0.0
    %1748 = vmatpush1.msra.mxu0 0.0
    %1749 = vmatprep.subr.mxu0 0.0
    %1750 = vmatpush1.msra.mxu0 0.0
    %1751 = vmatprep.subr.mxu0 0.0
    %1752 = vmatpush1.msra.mxu0 0.0
    %1753 = vmatprep.subr.mxu0 0.0
    %1754 = vmatpush1.msra.mxu0 0.0
    %1755 = vmatprep.subr.mxu0 0.0
    %1756 = vmatpush1.msra.mxu0 0.0
    %1757 = vmatprep.subr.mxu0 0.0
    %1758 = vmatpush1.msra.mxu0 0.0
    %1759 = vmatprep.mubr.f32.mxu0 0.0
    %1760 = vmatmul.mubr.f32.gmra.mrb[0].mxu0 %v1611
    %v1761 = vpop.f32.mrb[0].mxu0
    %v1762 = vadd.f32 0.0, %v1761
    %v1763 = vpop.f32.mrb[0].mxu0
    %v1764 = vadd.f32 0.0, %v1763
    %1765 = vdwg.mxu0
    %v1766 = vadd.f32 %v1620, %v1691
    %v1767 = vadd.f32 %v1621, %v1693
    %v1768 = vadd.f32 %v1622, %v1762
    %v1769 = vadd.f32 %v1623, %v1764
    %v1770 = vxor.u32 %v1766, 2147483648
    %v1771 = vxor.u32 %v1767, 2147483648
    %v1772 = vxor.u32 %v1768, 2147483648
    %v1773 = vmul.f32 %v1770, 1.442695
    %v1774 = vpow.pop %v1773
    %v1775 = vmul.f32 %v1771, 1.442695
    %v1776 = vpow.pop %v1775
    %v1777 = vmul.f32 %v1772, 1.442695
    %v1778 = vpow.pop %v1777
    %v1779 = vadd.f32 %v1774, 1.0
    %v1780 = vadd.f32 %v1776, 1.0
    %v1781 = vadd.f32 %v1778, 1.0
    %v1782 = vrcp.pop %v1779
    %v1783 = vmul.f32 1.0, %v1782
    %v1784 = vrcp.pop %v1780
    %v1785 = vmul.f32 1.0, %v1784
    %v1786 = vrcp.pop %v1781
    %v1787 = vmul.f32 1.0, %v1786
    %v1788 = vtanh.pop %v1769
    %v1789 = vmul.f32 %v1785, %v1609
    %v1790 = vmul.f32 %v1783, %v1788
    %v1791 = vadd.f32 %v1789, %v1790
    %v1792 = vtanh.pop %v1791
    %v1793 = vmul.f32 %v1787, %v1792
    %1794 = vst.msk [vmem:[#allocation3 + $0x60] sm:$0xff] %vm171, %v1793
    %1795 = vst.msk [vmem:[#allocation3 + $0x10] sm:$0xff] %vm693, %v1793
    %1797 = vrot.lane.b32.xlu0 %v1793, 64
    %v1798 = vpop.permute.xlu0 %1797
    %1800 = vst.msk [vmem:[#allocation3 + $0x68] sm:$0xff] %vm171, %v1798
    %1801 = vst.msk [vmem:[#allocation3 + $0x18] sm:$0xff] %vm693, %v1798
    %v1802 = vld [vmem:[#allocation2 + $0xe0] sm:$0xff]
    %v1803 = vld [vmem:[#allocation2 + $0xe8] sm:$0xff]
    %v1804 = vld [vmem:[#allocation2 + $0xf0] sm:$0xff]
    %v1805 = vld [vmem:[#allocation2 + $0xf8] sm:$0xff]
    %1806 = vmatprep.subr.mxu0 %v455
    %1807 = vmatpush1.msra.mxu0 %v454
    %1808 = vmatprep.subr.mxu0 %v459
    %1809 = vmatpush1.msra.mxu0 %v458
    %1810 = vmatprep.subr.mxu0 %v463
    %1811 = vmatpush1.msra.mxu0 %v462
    %1812 = vmatprep.subr.mxu0 %v467
    %1813 = vmatpush1.msra.mxu0 %v466
    %1814 = vmatprep.subr.mxu0 %v471
    %1815 = vmatpush1.msra.mxu0 %v470
    %1816 = vmatprep.subr.mxu0 %v475
    %1817 = vmatpush1.msra.mxu0 %v474
    %1818 = vmatprep.subr.mxu0 %v479
    %1819 = vmatpush1.msra.mxu0 %v478
    %1820 = vmatprep.subr.mxu0 %v483
    %1821 = vmatpush1.msra.mxu0 %v482
    %1822 = vmatprep.subr.mxu0 %v487
    %1823 = vmatpush1.msra.mxu0 %v486
    %1824 = vmatprep.subr.mxu0 %v491
    %1825 = vmatpush1.msra.mxu0 %v490
    %1826 = vmatprep.subr.mxu0 %v495
    %1827 = vmatpush1.msra.mxu0 %v494
    %1828 = vmatprep.subr.mxu0 %v499
    %1829 = vmatpush1.msra.mxu0 %v498
    %1830 = vmatprep.subr.mxu0 %v503
    %1831 = vmatpush1.msra.mxu0 %v502
    %1832 = vmatprep.subr.mxu0 %v507
    %1833 = vmatpush1.msra.mxu0 %v506
    %1834 = vmatprep.subr.mxu0 %v511
    %1835 = vmatpush1.msra.mxu0 %v510
    %1836 = vmatprep.subr.mxu0 %v515
    %1837 = vmatpush1.msra.mxu0 %v514
    %1838 = vmatprep.subr.mxu0 0.0
    %1839 = vmatpush1.msra.mxu0 0.0
    %1840 = vmatprep.subr.mxu0 0.0
    %1841 = vmatpush1.msra.mxu0 0.0
    %1842 = vmatprep.subr.mxu0 0.0
    %1843 = vmatpush1.msra.mxu0 0.0
    %1844 = vmatprep.subr.mxu0 0.0
    %1845 = vmatpush1.msra.mxu0 0.0
    %1846 = vmatprep.subr.mxu0 0.0
    %1847 = vmatpush1.msra.mxu0 0.0
    %1848 = vmatprep.subr.mxu0 0.0
    %1849 = vmatpush1.msra.mxu0 0.0
    %1850 = vmatprep.subr.mxu0 0.0
    %1851 = vmatpush1.msra.mxu0 0.0
    %1852 = vmatprep.subr.mxu0 0.0
    %1853 = vmatpush1.msra.mxu0 0.0
    %1854 = vmatprep.subr.mxu0 0.0
    %1855 = vmatpush1.msra.mxu0 0.0
    %1856 = vmatprep.subr.mxu0 0.0
    %1857 = vmatpush1.msra.mxu0 0.0
    %1858 = vmatprep.subr.mxu0 0.0
    %1859 = vmatpush1.msra.mxu0 0.0
    %1860 = vmatprep.subr.mxu0 0.0
    %1861 = vmatpush1.msra.mxu0 0.0
    %1862 = vmatprep.subr.mxu0 0.0
    %1863 = vmatpush1.msra.mxu0 0.0
    %1864 = vmatprep.subr.mxu0 0.0
    %1865 = vmatpush1.msra.mxu0 0.0
    %1866 = vmatprep.subr.mxu0 0.0
    %1867 = vmatpush1.msra.mxu0 0.0
    %1868 = vmatprep.subr.mxu0 0.0
    %1869 = vmatpush1.msra.mxu0 0.0
    %1870 = vmatprep.mubr.f32.mxu0 0.0
    %1871 = vmatmul.mubr.f32.gmra.mrb[0].mxu0 %v1793
    %v1872 = vpop.f32.mrb[0].mxu0
    %v1873 = vadd.f32 0.0, %v1872
    %v1874 = vpop.f32.mrb[0].mxu0
    %v1875 = vadd.f32 0.0, %v1874
    %1876 = vdwg.mxu0
    %1877 = vmatprep.subr.mxu0 %v457
    %1878 = vmatpush1.msra.mxu0 %v456
    %1879 = vmatprep.subr.mxu0 %v461
    %1880 = vmatpush1.msra.mxu0 %v460
    %1881 = vmatprep.subr.mxu0 %v465
    %1882 = vmatpush1.msra.mxu0 %v464
    %1883 = vmatprep.subr.mxu0 %v469
    %1884 = vmatpush1.msra.mxu0 %v468
    %1885 = vmatprep.subr.mxu0 %v473
    %1886 = vmatpush1.msra.mxu0 %v472
    %1887 = vmatprep.subr.mxu0 %v477
    %1888 = vmatpush1.msra.mxu0 %v476
    %1889 = vmatprep.subr.mxu0 %v481
    %1890 = vmatpush1.msra.mxu0 %v480
    %1891 = vmatprep.subr.mxu0 %v485
    %1892 = vmatpush1.msra.mxu0 %v484
    %1893 = vmatprep.subr.mxu0 %v489
    %1894 = vmatpush1.msra.mxu0 %v488
    %1895 = vmatprep.subr.mxu0 %v493
    %1896 = vmatpush1.msra.mxu0 %v492
    %1897 = vmatprep.subr.mxu0 %v497
    %1898 = vmatpush1.msra.mxu0 %v496
    %1899 = vmatprep.subr.mxu0 %v501
    %1900 = vmatpush1.msra.mxu0 %v500
    %1901 = vmatprep.subr.mxu0 %v505
    %1902 = vmatpush1.msra.mxu0 %v504
    %1903 = vmatprep.subr.mxu0 %v509
    %1904 = vmatpush1.msra.mxu0 %v508
    %1905 = vmatprep.subr.mxu0 %v513
    %1906 = vmatpush1.msra.mxu0 %v512
    %1907 = vmatprep.subr.mxu0 %v517
    %1908 = vmatpush1.msra.mxu0 %v516
    %1909 = vmatprep.subr.mxu0 0.0
    %1910 = vmatpush1.msra.mxu0 0.0
    %1911 = vmatprep.subr.mxu0 0.0
    %1912 = vmatpush1.msra.mxu0 0.0
    %1913 = vmatprep.subr.mxu0 0.0
    %1914 = vmatpush1.msra.mxu0 0.0
    %1915 = vmatprep.subr.mxu0 0.0
    %1916 = vmatpush1.msra.mxu0 0.0
    %1917 = vmatprep.subr.mxu0 0.0
    %1918 = vmatpush1.msra.mxu0 0.0
    %1919 = vmatprep.subr.mxu0 0.0
    %1920 = vmatpush1.msra.mxu0 0.0
    %1921 = vmatprep.subr.mxu0 0.0
    %1922 = vmatpush1.msra.mxu0 0.0
    %1923 = vmatprep.subr.mxu0 0.0
    %1924 = vmatpush1.msra.mxu0 0.0
    %1925 = vmatprep.subr.mxu0 0.0
    %1926 = vmatpush1.msra.mxu0 0.0
    %1927 = vmatprep.subr.mxu0 0.0
    %1928 = vmatpush1.msra.mxu0 0.0
    %1929 = vmatprep.subr.mxu0 0.0
    %1930 = vmatpush1.msra.mxu0 0.0
    %1931 = vmatprep.subr.mxu0 0.0
    %1932 = vmatpush1.msra.mxu0 0.0
    %1933 = vmatprep.subr.mxu0 0.0
    %1934 = vmatpush1.msra.mxu0 0.0
    %1935 = vmatprep.subr.mxu0 0.0
    %1936 = vmatpush1.msra.mxu0 0.0
    %1937 = vmatprep.subr.mxu0 0.0
    %1938 = vmatpush1.msra.mxu0 0.0
    %1939 = vmatprep.subr.mxu0 0.0
    %1940 = vmatpush1.msra.mxu0 0.0
    %1941 = vmatprep.mubr.f32.mxu0 0.0
    %1942 = vmatmul.mubr.f32.gmra.mrb[0].mxu0 %v1793
    %v1943 = vpop.f32.mrb[0].mxu0
    %v1944 = vadd.f32 0.0, %v1943
    %v1945 = vpop.f32.mrb[0].mxu0
    %v1946 = vadd.f32 0.0, %v1945
    %1947 = vdwg.mxu0
    %v1948 = vadd.f32 %v1802, %v1873
    %v1949 = vadd.f32 %v1803, %v1875
    %v1950 = vadd.f32 %v1804, %v1944
    %v1951 = vadd.f32 %v1805, %v1946
    %v1952 = vxor.u32 %v1948, 2147483648
    %v1953 = vxor.u32 %v1949, 2147483648
    %v1954 = vxor.u32 %v1950, 2147483648
    %v1955 = vmul.f32 %v1952, 1.442695
    %v1956 = vpow.pop %v1955
    %v1957 = vmul.f32 %v1953, 1.442695
    %v1958 = vpow.pop %v1957
    %v1959 = vmul.f32 %v1954, 1.442695
    %v1960 = vpow.pop %v1959
    %v1961 = vadd.f32 %v1956, 1.0
    %v1962 = vadd.f32 %v1958, 1.0
    %v1963 = vadd.f32 %v1960, 1.0
    %v1964 = vrcp.pop %v1961
    %v1965 = vmul.f32 1.0, %v1964
    %v1966 = vrcp.pop %v1962
    %v1967 = vmul.f32 1.0, %v1966
    %v1968 = vrcp.pop %v1963
    %v1969 = vmul.f32 1.0, %v1968
    %v1970 = vtanh.pop %v1951
    %v1971 = vmul.f32 %v1967, %v1791
    %v1972 = vmul.f32 %v1965, %v1970
    %v1973 = vadd.f32 %v1971, %v1972
    %v1974 = vtanh.pop %v1973
    %v1975 = vmul.f32 %v1969, %v1974
    %1976 = vst.msk [vmem:[#allocation3 + $0x70] sm:$0xff] %vm171, %v1975
    %1977 = vst.msk [vmem:[#allocation3] sm:$0xff] %vm693, %v1975
    %1979 = vrot.lane.b32.xlu0 %v1975, 64
    %v1980 = vpop.permute.xlu0 %1979
    %1982 = vst.msk [vmem:[#allocation3 + $0x78] sm:$0xff] %vm171, %v1980
    %1983 = vst.msk [vmem:[#allocation3 + $0x8] sm:$0xff] %vm693, %v1980
    %v1984 = vld [vmem:[#allocation3] sm:$0xff]
    %v1985 = vld [vmem:[#allocation3 + $0x8] sm:$0xff]
    %v1986 = vld [vmem:[#allocation3 + $0x10] sm:$0xff]
    %v1987 = vld [vmem:[#allocation3 + $0x18] sm:$0xff]
    %v1988 = vld [vmem:[#allocation3 + $0x20] sm:$0xff]
    %v1989 = vld [vmem:[#allocation3 + $0x28] sm:$0xff]
    %v1990 = vld [vmem:[#allocation3 + $0x30] sm:$0xff]
    %v1991 = vld [vmem:[#allocation3 + $0x38] sm:$0xff]
    %v1992 = vld [vmem:[#allocation3 + $0x40] sm:$0xff]
    %v1993 = vld [vmem:[#allocation3 + $0x48] sm:$0xff]
    %v1994 = vld [vmem:[#allocation3 + $0x50] sm:$0xff]
    %v1995 = vld [vmem:[#allocation3 + $0x58] sm:$0xff]
    %v1996 = vld [vmem:[#allocation3 + $0x60] sm:$0xff]
    %v1997 = vld [vmem:[#allocation3 + $0x68] sm:$0xff]
    %v1998 = vld [vmem:[#allocation3 + $0x70] sm:$0xff]
    %v1999 = vld [vmem:[#allocation3 + $0x78] sm:$0xff]
    %v2000 = vld [vmem:[#allocation8] sm:$0xff]
    %v2001 = vld [vmem:[#allocation8 + $0x8] sm:$0xff]
    %v2002 = vld [vmem:[#allocation8 + $0x10] sm:$0xff]
    %v2003 = vld [vmem:[#allocation8 + $0x18] sm:$0xff]
    %v2004 = vld [vmem:[#allocation8 + $0x20] sm:$0xff]
    %v2005 = vld [vmem:[#allocation8 + $0x28] sm:$0xff]
    %v2006 = vld [vmem:[#allocation8 + $0x30] sm:$0xff]
    %v2007 = vld [vmem:[#allocation8 + $0x38] sm:$0xff]
    %v2008 = vld [vmem:[#allocation8 + $0x40] sm:$0xff]
    %v2009 = vld [vmem:[#allocation8 + $0x48] sm:$0xff]
    %v2010 = vld [vmem:[#allocation8 + $0x50] sm:$0xff]
    %v2011 = vld [vmem:[#allocation8 + $0x58] sm:$0xff]
    %v2012 = vld [vmem:[#allocation8 + $0x60] sm:$0xff]
    %v2013 = vld [vmem:[#allocation8 + $0x68] sm:$0xff]
    %v2014 = vld [vmem:[#allocation8 + $0x70] sm:$0xff]
    %v2015 = vld [vmem:[#allocation8 + $0x78] sm:$0xff]
    %v2016 = vld [vmem:[#allocation8 + $0x80] sm:$0xff]
    %v2017 = vld [vmem:[#allocation8 + $0x88] sm:$0xff]
    %v2018 = vld [vmem:[#allocation8 + $0x90] sm:$0xff]
    %v2019 = vld [vmem:[#allocation8 + $0x98] sm:$0xff]
    %v2020 = vld [vmem:[#allocation8 + $0xa0] sm:$0xff]
    %v2021 = vld [vmem:[#allocation8 + $0xa8] sm:$0xff]
    %v2022 = vld [vmem:[#allocation8 + $0xb0] sm:$0xff]
    %v2023 = vld [vmem:[#allocation8 + $0xb8] sm:$0xff]
    %v2024 = vld [vmem:[#allocation8 + $0xc0] sm:$0xff]
    %v2025 = vld [vmem:[#allocation8 + $0xc8] sm:$0xff]
    %v2026 = vld [vmem:[#allocation8 + $0xd0] sm:$0xff]
    %v2027 = vld [vmem:[#allocation8 + $0xd8] sm:$0xff]
    %v2028 = vld [vmem:[#allocation8 + $0xe0] sm:$0xff]
    %v2029 = vld [vmem:[#allocation8 + $0xe8] sm:$0xff]
    %v2030 = vld [vmem:[#allocation8 + $0xf0] sm:$0xff]
    %v2031 = vld [vmem:[#allocation8 + $0xf8] sm:$0xff]
    %v2032 = vld [vmem:[#allocation8 + $0x100] sm:$0xff]
    %v2033 = vld [vmem:[#allocation8 + $0x108] sm:$0xff]
    %v2034 = vld [vmem:[#allocation8 + $0x110] sm:$0xff]
    %v2035 = vld [vmem:[#allocation8 + $0x118] sm:$0xff]
    %v2036 = vld [vmem:[#allocation8 + $0x120] sm:$0xff]
    %v2037 = vld [vmem:[#allocation8 + $0x128] sm:$0xff]
    %v2038 = vld [vmem:[#allocation8 + $0x130] sm:$0xff]
    %v2039 = vld [vmem:[#allocation8 + $0x138] sm:$0xff]
    %v2040 = vld [vmem:[#allocation8 + $0x140] sm:$0xff]
    %v2041 = vld [vmem:[#allocation8 + $0x148] sm:$0xff]
    %v2042 = vld [vmem:[#allocation8 + $0x150] sm:$0xff]
    %v2043 = vld [vmem:[#allocation8 + $0x158] sm:$0xff]
    %v2044 = vld [vmem:[#allocation8 + $0x160] sm:$0xff]
    %v2045 = vld [vmem:[#allocation8 + $0x168] sm:$0xff]
    %v2046 = vld [vmem:[#allocation8 + $0x170] sm:$0xff]
    %v2047 = vld [vmem:[#allocation8 + $0x178] sm:$0xff]
    %v2048 = vld [vmem:[#allocation8 + $0x180] sm:$0xff]
    %v2049 = vld [vmem:[#allocation8 + $0x188] sm:$0xff]
    %v2050 = vld [vmem:[#allocation8 + $0x190] sm:$0xff]
    %v2051 = vld [vmem:[#allocation8 + $0x198] sm:$0xff]
    %v2052 = vld [vmem:[#allocation8 + $0x1a0] sm:$0xff]
    %v2053 = vld [vmem:[#allocation8 + $0x1a8] sm:$0xff]
    %v2054 = vld [vmem:[#allocation8 + $0x1b0] sm:$0xff]
    %v2055 = vld [vmem:[#allocation8 + $0x1b8] sm:$0xff]
    %v2056 = vld [vmem:[#allocation8 + $0x1c0] sm:$0xff]
    %v2057 = vld [vmem:[#allocation8 + $0x1c8] sm:$0xff]
    %v2058 = vld [vmem:[#allocation8 + $0x1d0] sm:$0xff]
    %v2059 = vld [vmem:[#allocation8 + $0x1d8] sm:$0xff]
    %v2060 = vld [vmem:[#allocation8 + $0x1e0] sm:$0xff]
    %v2061 = vld [vmem:[#allocation8 + $0x1e8] sm:$0xff]
    %v2062 = vld [vmem:[#allocation8 + $0x1f0] sm:$0xff]
    %v2063 = vld [vmem:[#allocation8 + $0x1f8] sm:$0xff]
    %v2064 = vld [vmem:[#allocation8 + $0x200] sm:$0xff]
    %v2065 = vld [vmem:[#allocation8 + $0x208] sm:$0xff]
    %v2066 = vld [vmem:[#allocation8 + $0x210] sm:$0xff]
    %v2067 = vld [vmem:[#allocation8 + $0x218] sm:$0xff]
    %v2068 = vld [vmem:[#allocation8 + $0x220] sm:$0xff]
    %v2069 = vld [vmem:[#allocation8 + $0x228] sm:$0xff]
    %v2070 = vld [vmem:[#allocation8 + $0x230] sm:$0xff]
    %v2071 = vld [vmem:[#allocation8 + $0x238] sm:$0xff]
    %v2072 = vld [vmem:[#allocation8 + $0x240] sm:$0xff]
    %v2073 = vld [vmem:[#allocation8 + $0x248] sm:$0xff]
    %v2074 = vld [vmem:[#allocation8 + $0x250] sm:$0xff]
    %v2075 = vld [vmem:[#allocation8 + $0x258] sm:$0xff]
    %v2076 = vld [vmem:[#allocation8 + $0x260] sm:$0xff]
    %v2077 = vld [vmem:[#allocation8 + $0x268] sm:$0xff]
    %v2078 = vld [vmem:[#allocation8 + $0x270] sm:$0xff]
    %v2079 = vld [vmem:[#allocation8 + $0x278] sm:$0xff]
    %v2080 = vld [vmem:[#allocation8 + $0x280] sm:$0xff]
    %v2081 = vld [vmem:[#allocation8 + $0x288] sm:$0xff]
    %v2082 = vld [vmem:[#allocation8 + $0x290] sm:$0xff]
    %v2083 = vld [vmem:[#allocation8 + $0x298] sm:$0xff]
    %v2084 = vld [vmem:[#allocation8 + $0x2a0] sm:$0xff]
    %v2085 = vld [vmem:[#allocation8 + $0x2a8] sm:$0xff]
    %v2086 = vld [vmem:[#allocation8 + $0x2b0] sm:$0xff]
    %v2087 = vld [vmem:[#allocation8 + $0x2b8] sm:$0xff]
    %v2088 = vld [vmem:[#allocation8 + $0x2c0] sm:$0xff]
    %v2089 = vld [vmem:[#allocation8 + $0x2c8] sm:$0xff]
    %v2090 = vld [vmem:[#allocation8 + $0x2d0] sm:$0xff]
    %v2091 = vld [vmem:[#allocation8 + $0x2d8] sm:$0xff]
    %v2092 = vld [vmem:[#allocation8 + $0x2e0] sm:$0xff]
    %v2093 = vld [vmem:[#allocation8 + $0x2e8] sm:$0xff]
    %v2094 = vld [vmem:[#allocation8 + $0x2f0] sm:$0xff]
    %v2095 = vld [vmem:[#allocation8 + $0x2f8] sm:$0xff]
    %v2096 = vld [vmem:[#allocation8 + $0x300] sm:$0xff]
    %v2097 = vld [vmem:[#allocation8 + $0x308] sm:$0xff]
    %v2098 = vld [vmem:[#allocation8 + $0x310] sm:$0xff]
    %v2099 = vld [vmem:[#allocation8 + $0x318] sm:$0xff]
    %v2100 = vld [vmem:[#allocation8 + $0x320] sm:$0xff]
    %v2101 = vld [vmem:[#allocation8 + $0x328] sm:$0xff]
    %v2102 = vld [vmem:[#allocation8 + $0x330] sm:$0xff]
    %v2103 = vld [vmem:[#allocation8 + $0x338] sm:$0xff]
    %v2104 = vld [vmem:[#allocation8 + $0x340] sm:$0xff]
    %v2105 = vld [vmem:[#allocation8 + $0x348] sm:$0xff]
    %v2106 = vld [vmem:[#allocation8 + $0x350] sm:$0xff]
    %v2107 = vld [vmem:[#allocation8 + $0x358] sm:$0xff]
    %v2108 = vld [vmem:[#allocation8 + $0x360] sm:$0xff]
    %v2109 = vld [vmem:[#allocation8 + $0x368] sm:$0xff]
    %v2110 = vld [vmem:[#allocation8 + $0x370] sm:$0xff]
    %v2111 = vld [vmem:[#allocation8 + $0x378] sm:$0xff]
    %v2112 = vld [vmem:[#allocation8 + $0x380] sm:$0xff]
    %v2113 = vld [vmem:[#allocation8 + $0x388] sm:$0xff]
    %v2114 = vld [vmem:[#allocation8 + $0x390] sm:$0xff]
    %v2115 = vld [vmem:[#allocation8 + $0x398] sm:$0xff]
    %v2116 = vld [vmem:[#allocation8 + $0x3a0] sm:$0xff]
    %v2117 = vld [vmem:[#allocation8 + $0x3a8] sm:$0xff]
    %v2118 = vld [vmem:[#allocation8 + $0x3b0] sm:$0xff]
    %v2119 = vld [vmem:[#allocation8 + $0x3b8] sm:$0xff]
    %v2120 = vld [vmem:[#allocation8 + $0x3c0] sm:$0xff]
    %v2121 = vld [vmem:[#allocation8 + $0x3c8] sm:$0xff]
    %v2122 = vld [vmem:[#allocation8 + $0x3d0] sm:$0xff]
    %v2123 = vld [vmem:[#allocation8 + $0x3d8] sm:$0xff]
    %v2124 = vld [vmem:[#allocation8 + $0x3e0] sm:$0xff]
    %v2125 = vld [vmem:[#allocation8 + $0x3e8] sm:$0xff]
    %v2126 = vld [vmem:[#allocation8 + $0x3f0] sm:$0xff]
    %v2127 = vld [vmem:[#allocation8 + $0x3f8] sm:$0xff]
    %v2128 = vld [vmem:[%s6] sm:$0xf]
    %v2130 = vlaneseq
    %v2131 = vshrl.u32 %v2130, 7
    %v2132 = vsub.s32 0, %v2131
    %v2133 = vrot.slane %v2128, %v2132
    %v2134 = vlaneseq
    %v2135 = vshrl.u32 %v2134, 7
    %v2136 = vsub.s32 1, %v2135
    %v2137 = vrot.slane %v2128, %v2136
    %v2138 = vlaneseq
    %v2139 = vshrl.u32 %v2138, 7
    %v2140 = vsub.s32 2, %v2139
    %v2141 = vrot.slane %v2128, %v2140
    %v2142 = vlaneseq
    %v2143 = vshrl.u32 %v2142, 7
    %v2144 = vsub.s32 3, %v2143
    %v2145 = vrot.slane %v2128, %v2144
    %2150 = vmatprep.subr.mxu0 %v2001
    %2151 = vmatpush1.msra.mxu0 %v2000
    %2152 = vmatprep.subr.mxu0 %v2005
    %2153 = vmatpush1.msra.mxu0 %v2004
    %2154 = vmatprep.subr.mxu0 %v2009
    %2155 = vmatpush1.msra.mxu0 %v2008
    %2156 = vmatprep.subr.mxu0 %v2013
    %2157 = vmatpush1.msra.mxu0 %v2012
    %2158 = vmatprep.subr.mxu0 %v2017
    %2159 = vmatpush1.msra.mxu0 %v2016
    %2160 = vmatprep.subr.mxu0 %v2021
    %2161 = vmatpush1.msra.mxu0 %v2020
    %2162 = vmatprep.subr.mxu0 %v2025
    %2163 = vmatpush1.msra.mxu0 %v2024
    %2164 = vmatprep.subr.mxu0 %v2029
    %2165 = vmatpush1.msra.mxu0 %v2028
    %2166 = vmatprep.subr.mxu0 %v2033
    %2167 = vmatpush1.msra.mxu0 %v2032
    %2168 = vmatprep.subr.mxu0 %v2037
    %2169 = vmatpush1.msra.mxu0 %v2036
    %2170 = vmatprep.subr.mxu0 %v2041
    %2171 = vmatpush1.msra.mxu0 %v2040
    %2172 = vmatprep.subr.mxu0 %v2045
    %2173 = vmatpush1.msra.mxu0 %v2044
    %2174 = vmatprep.subr.mxu0 %v2049
    %2175 = vmatpush1.msra.mxu0 %v2048
    %2176 = vmatprep.subr.mxu0 %v2053
    %2177 = vmatpush1.msra.mxu0 %v2052
    %2178 = vmatprep.subr.mxu0 %v2057
    %2179 = vmatpush1.msra.mxu0 %v2056
    %2180 = vmatprep.subr.mxu0 %v2061
    %2181 = vmatpush1.msra.mxu0 %v2060
    %2182 = vmatprep.subr.mxu0 %v2065
    %2183 = vmatpush1.msra.mxu0 %v2064
    %2184 = vmatprep.subr.mxu0 %v2069
    %2185 = vmatpush1.msra.mxu0 %v2068
    %2186 = vmatprep.subr.mxu0 %v2073
    %2187 = vmatpush1.msra.mxu0 %v2072
    %2188 = vmatprep.subr.mxu0 %v2077
    %2189 = vmatpush1.msra.mxu0 %v2076
    %2190 = vmatprep.subr.mxu0 %v2081
    %2191 = vmatpush1.msra.mxu0 %v2080
    %2192 = vmatprep.subr.mxu0 %v2085
    %2193 = vmatpush1.msra.mxu0 %v2084
    %2194 = vmatprep.subr.mxu0 %v2089
    %2195 = vmatpush1.msra.mxu0 %v2088
    %2196 = vmatprep.subr.mxu0 %v2093
    %2197 = vmatpush1.msra.mxu0 %v2092
    %2198 = vmatprep.subr.mxu0 %v2097
    %2199 = vmatpush1.msra.mxu0 %v2096
    %2200 = vmatprep.subr.mxu0 %v2101
    %2201 = vmatpush1.msra.mxu0 %v2100
    %2202 = vmatprep.subr.mxu0 %v2105
    %2203 = vmatpush1.msra.mxu0 %v2104
    %2204 = vmatprep.subr.mxu0 %v2109
    %2205 = vmatpush1.msra.mxu0 %v2108
    %2206 = vmatprep.subr.mxu0 %v2113
    %2207 = vmatpush1.msra.mxu0 %v2112
    %2208 = vmatprep.subr.mxu0 %v2117
    %2209 = vmatpush1.msra.mxu0 %v2116
    %2210 = vmatprep.subr.mxu0 %v2121
    %2211 = vmatpush1.msra.mxu0 %v2120
    %2212 = vmatprep.subr.mxu0 %v2125
    %2213 = vmatpush1.msra.mxu0 %v2124
    %2214 = vmatprep.mubr.f32.mxu0 %v1985
    %2215 = vmatmul.mubr.f32.gmra.mrb[0].mxu0 %v1984
    %v2216 = vpop.f32.mrb[0].mxu0
    %v2217 = vadd.f32 %v2133, %v2216
    %v2218 = vpop.f32.mrb[0].mxu0
    %v2219 = vadd.f32 %v2137, %v2218
    %2220 = vmatprep.mubr.f32.mxu0 %v1987
    %2221 = vmatmul.mubr.f32.gmra.mrb[0].mxu0 %v1986
    %v2222 = vpop.f32.mrb[0].mxu0
    %v2223 = vadd.f32 %v2133, %v2222
    %v2224 = vpop.f32.mrb[0].mxu0
    %v2225 = vadd.f32 %v2137, %v2224
    %2226 = vmatprep.mubr.f32.mxu0 %v1989
    %2227 = vmatmul.mubr.f32.gmra.mrb[0].mxu0 %v1988
    %v2228 = vpop.f32.mrb[0].mxu0
    %v2229 = vadd.f32 %v2133, %v2228
    %v2230 = vpop.f32.mrb[0].mxu0
    %v2231 = vadd.f32 %v2137, %v2230
    %2232 = vmatprep.mubr.f32.mxu0 %v1991
    %2233 = vmatmul.mubr.f32.gmra.mrb[0].mxu0 %v1990
    %v2234 = vpop.f32.mrb[0].mxu0
    %v2235 = vadd.f32 %v2133, %v2234
    %v2236 = vpop.f32.mrb[0].mxu0
    %v2237 = vadd.f32 %v2137, %v2236
    %2238 = vmatprep.mubr.f32.mxu0 %v1993
    %2239 = vmatmul.mubr.f32.gmra.mrb[0].mxu0 %v1992
    %v2240 = vpop.f32.mrb[0].mxu0
    %v2241 = vadd.f32 %v2133, %v2240
    %v2242 = vpop.f32.mrb[0].mxu0
    %v2243 = vadd.f32 %v2137, %v2242
    %2244 = vmatprep.mubr.f32.mxu0 %v1995
    %2245 = vmatmul.mubr.f32.gmra.mrb[0].mxu0 %v1994
    %v2246 = vpop.f32.mrb[0].mxu0
    %v2247 = vadd.f32 %v2133, %v2246
    %v2248 = vpop.f32.mrb[0].mxu0
    %v2249 = vadd.f32 %v2137, %v2248
    %2250 = vmatprep.mubr.f32.mxu0 %v1997
    %2251 = vmatmul.mubr.f32.gmra.mrb[0].mxu0 %v1996
    %v2252 = vpop.f32.mrb[0].mxu0
    %v2253 = vadd.f32 %v2133, %v2252
    %v2254 = vpop.f32.mrb[0].mxu0
    %v2255 = vadd.f32 %v2137, %v2254
    %2256 = vmatprep.mubr.f32.mxu0 %v1999
    %2257 = vmatmul.mubr.f32.gmra.mrb[0].mxu0 %v1998
    %v2258 = vpop.f32.mrb[0].mxu0
    %v2259 = vadd.f32 %v2133, %v2258
    %v2260 = vpop.f32.mrb[0].mxu0
    %v2261 = vadd.f32 %v2137, %v2260
    %2262 = vdwg.mxu0
    %2263 = vmatprep.subr.mxu0 %v2003
    %2264 = vmatpush1.msra.mxu0 %v2002
    %2265 = vmatprep.subr.mxu0 %v2007
    %2266 = vmatpush1.msra.mxu0 %v2006
    %2267 = vmatprep.subr.mxu0 %v2011
    %2268 = vmatpush1.msra.mxu0 %v2010
    %2269 = vmatprep.subr.mxu0 %v2015
    %2270 = vmatpush1.msra.mxu0 %v2014
    %2271 = vmatprep.subr.mxu0 %v2019
    %2272 = vmatpush1.msra.mxu0 %v2018
    %2273 = vmatprep.subr.mxu0 %v2023
    %2274 = vmatpush1.msra.mxu0 %v2022
    %2275 = vmatprep.subr.mxu0 %v2027
    %2276 = vmatpush1.msra.mxu0 %v2026
    %2277 = vmatprep.subr.mxu0 %v2031
    %2278 = vmatpush1.msra.mxu0 %v2030
    %2279 = vmatprep.subr.mxu0 %v2035
    %2280 = vmatpush1.msra.mxu0 %v2034
    %2281 = vmatprep.subr.mxu0 %v2039
    %2282 = vmatpush1.msra.mxu0 %v2038
    %2283 = vmatprep.subr.mxu0 %v2043
    %2284 = vmatpush1.msra.mxu0 %v2042
    %2285 = vmatprep.subr.mxu0 %v2047
    %2286 = vmatpush1.msra.mxu0 %v2046
    %2287 = vmatprep.subr.mxu0 %v2051
    %2288 = vmatpush1.msra.mxu0 %v2050
    %2289 = vmatprep.subr.mxu0 %v2055
    %2290 = vmatpush1.msra.mxu0 %v2054
    %2291 = vmatprep.subr.mxu0 %v2059
    %2292 = vmatpush1.msra.mxu0 %v2058
    %2293 = vmatprep.subr.mxu0 %v2063
    %2294 = vmatpush1.msra.mxu0 %v2062
    %2295 = vmatprep.subr.mxu0 %v2067
    %2296 = vmatpush1.msra.mxu0 %v2066
    %2297 = vmatprep.subr.mxu0 %v2071
    %2298 = vmatpush1.msra.mxu0 %v2070
    %2299 = vmatprep.subr.mxu0 %v2075
    %2300 = vmatpush1.msra.mxu0 %v2074
    %2301 = vmatprep.subr.mxu0 %v2079
    %2302 = vmatpush1.msra.mxu0 %v2078
    %2303 = vmatprep.subr.mxu0 %v2083
    %2304 = vmatpush1.msra.mxu0 %v2082
    %2305 = vmatprep.subr.mxu0 %v2087
    %2306 = vmatpush1.msra.mxu0 %v2086
    %2307 = vmatprep.subr.mxu0 %v2091
    %2308 = vmatpush1.msra.mxu0 %v2090
    %2309 = vmatprep.subr.mxu0 %v2095
    %2310 = vmatpush1.msra.mxu0 %v2094
    %2311 = vmatprep.subr.mxu0 %v2099
    %2312 = vmatpush1.msra.mxu0 %v2098
    %2313 = vmatprep.subr.mxu0 %v2103
    %2314 = vmatpush1.msra.mxu0 %v2102
    %2315 = vmatprep.subr.mxu0 %v2107
    %2316 = vmatpush1.msra.mxu0 %v2106
    %2317 = vmatprep.subr.mxu0 %v2111
    %2318 = vmatpush1.msra.mxu0 %v2110
    %2319 = vmatprep.subr.mxu0 %v2115
    %2320 = vmatpush1.msra.mxu0 %v2114
    %2321 = vmatprep.subr.mxu0 %v2119
    %2322 = vmatpush1.msra.mxu0 %v2118
    %2323 = vmatprep.subr.mxu0 %v2123
    %2324 = vmatpush1.msra.mxu0 %v2122
    %2325 = vmatprep.subr.mxu0 %v2127
    %2326 = vmatpush1.msra.mxu0 %v2126
    %2327 = vmatprep.mubr.f32.mxu0 %v1985
    %2328 = vmatmul.mubr.f32.gmra.mrb[0].mxu0 %v1984
    %v2329 = vpop.f32.mrb[0].mxu0
    %v2330 = vadd.f32 %v2141, %v2329
    %v2331 = vpop.f32.mrb[0].mxu0
    %v2332 = vadd.f32 %v2145, %v2331
    %2333 = vmatprep.mubr.f32.mxu0 %v1987
    %2334 = vmatmul.mubr.f32.gmra.mrb[0].mxu0 %v1986
    %v2335 = vpop.f32.mrb[0].mxu0
    %v2336 = vadd.f32 %v2141, %v2335
    %v2337 = vpop.f32.mrb[0].mxu0
    %v2338 = vadd.f32 %v2145, %v2337
    %2339 = vmatprep.mubr.f32.mxu0 %v1989
    %2340 = vmatmul.mubr.f32.gmra.mrb[0].mxu0 %v1988
    %v2341 = vpop.f32.mrb[0].mxu0
    %v2342 = vadd.f32 %v2141, %v2341
    %v2343 = vpop.f32.mrb[0].mxu0
    %v2344 = vadd.f32 %v2145, %v2343
    %2345 = vmatprep.mubr.f32.mxu0 %v1991
    %2346 = vmatmul.mubr.f32.gmra.mrb[0].mxu0 %v1990
    %v2347 = vpop.f32.mrb[0].mxu0
    %v2348 = vadd.f32 %v2141, %v2347
    %v2349 = vpop.f32.mrb[0].mxu0
    %v2350 = vadd.f32 %v2145, %v2349
    %2351 = vmatprep.mubr.f32.mxu0 %v1993
    %2352 = vmatmul.mubr.f32.gmra.mrb[0].mxu0 %v1992
    %v2353 = vpop.f32.mrb[0].mxu0
    %v2354 = vadd.f32 %v2141, %v2353
    %v2355 = vpop.f32.mrb[0].mxu0
    %v2356 = vadd.f32 %v2145, %v2355
    %2357 = vmatprep.mubr.f32.mxu0 %v1995
    %2358 = vmatmul.mubr.f32.gmra.mrb[0].mxu0 %v1994
    %v2359 = vpop.f32.mrb[0].mxu0
    %v2360 = vadd.f32 %v2141, %v2359
    %v2361 = vpop.f32.mrb[0].mxu0
    %v2362 = vadd.f32 %v2145, %v2361
    %2363 = vmatprep.mubr.f32.mxu0 %v1997
    %2364 = vmatmul.mubr.f32.gmra.mrb[0].mxu0 %v1996
    %v2365 = vpop.f32.mrb[0].mxu0
    %v2366 = vadd.f32 %v2141, %v2365
    %v2367 = vpop.f32.mrb[0].mxu0
    %v2368 = vadd.f32 %v2145, %v2367
    %2369 = vmatprep.mubr.f32.mxu0 %v1999
    %2370 = vmatmul.mubr.f32.gmra.mrb[0].mxu0 %v1998
    %v2371 = vpop.f32.mrb[0].mxu0
    %v2372 = vadd.f32 %v2141, %v2371
    %v2373 = vpop.f32.mrb[0].mxu0
    %v2374 = vadd.f32 %v2145, %v2373
    %2375 = vdwg.mxu0
    %2376 = vst [vmem:[#allocation2] sm:$0xff] %v2217
    %2377 = vst [vmem:[#allocation2 + $0x8] sm:$0xff] %v2219
    %2378 = vst [vmem:[#allocation2 + $0x10] sm:$0xff] %v2330
    %2379 = vst [vmem:[#allocation2 + $0x18] sm:$0xff] %v2332
    %2380 = vst [vmem:[#allocation2 + $0x20] sm:$0xff] %v2223
    %2381 = vst [vmem:[#allocation2 + $0x28] sm:$0xff] %v2225
    %2382 = vst [vmem:[#allocation2 + $0x30] sm:$0xff] %v2336
    %2383 = vst [vmem:[#allocation2 + $0x38] sm:$0xff] %v2338
    %2384 = vst [vmem:[#allocation2 + $0x40] sm:$0xff] %v2229
    %2385 = vst [vmem:[#allocation2 + $0x48] sm:$0xff] %v2231
    %2386 = vst [vmem:[#allocation2 + $0x50] sm:$0xff] %v2342
    %2387 = vst [vmem:[#allocation2 + $0x58] sm:$0xff] %v2344
    %2388 = vst [vmem:[#allocation2 + $0x60] sm:$0xff] %v2235
    %2389 = vst [vmem:[#allocation2 + $0x68] sm:$0xff] %v2237
    %2390 = vst [vmem:[#allocation2 + $0x70] sm:$0xff] %v2348
    %2391 = vst [vmem:[#allocation2 + $0x78] sm:$0xff] %v2350
    %2392 = vst [vmem:[#allocation2 + $0x80] sm:$0xff] %v2241
    %2393 = vst [vmem:[#allocation2 + $0x88] sm:$0xff] %v2243
    %2394 = vst [vmem:[#allocation2 + $0x90] sm:$0xff] %v2354
    %2395 = vst [vmem:[#allocation2 + $0x98] sm:$0xff] %v2356
    %2396 = vst [vmem:[#allocation2 + $0xa0] sm:$0xff] %v2247
    %2397 = vst [vmem:[#allocation2 + $0xa8] sm:$0xff] %v2249
    %2398 = vst [vmem:[#allocation2 + $0xb0] sm:$0xff] %v2360
    %2399 = vst [vmem:[#allocation2 + $0xb8] sm:$0xff] %v2362
    %2400 = vst [vmem:[#allocation2 + $0xc0] sm:$0xff] %v2253
    %2401 = vst [vmem:[#allocation2 + $0xc8] sm:$0xff] %v2255
    %2402 = vst [vmem:[#allocation2 + $0xd0] sm:$0xff] %v2366
    %2403 = vst [vmem:[#allocation2 + $0xd8] sm:$0xff] %v2368
    %2404 = vst [vmem:[#allocation2 + $0xe0] sm:$0xff] %v2259
    %2405 = vst [vmem:[#allocation2 + $0xe8] sm:$0xff] %v2261
    %2406 = vst [vmem:[#allocation2 + $0xf0] sm:$0xff] %v2372
    %2407 = vst [vmem:[#allocation2 + $0xf8] sm:$0xff] %v2374
    %v2408 = vld [vmem:[#allocation9] sm:$0xff]
    %v2409 = vld [vmem:[#allocation9 + $0x8] sm:$0xff]
    %v2410 = vld [vmem:[#allocation9 + $0x10] sm:$0xff]
    %v2411 = vld [vmem:[#allocation9 + $0x18] sm:$0xff]
    %v2412 = vld [vmem:[#allocation9 + $0x20] sm:$0xff]
    %v2413 = vld [vmem:[#allocation9 + $0x28] sm:$0xff]
    %v2414 = vld [vmem:[#allocation9 + $0x30] sm:$0xff]
    %v2415 = vld [vmem:[#allocation9 + $0x38] sm:$0xff]
    %v2416 = vld [vmem:[#allocation9 + $0x40] sm:$0xff]
    %v2417 = vld [vmem:[#allocation9 + $0x48] sm:$0xff]
    %v2418 = vld [vmem:[#allocation9 + $0x50] sm:$0xff]
    %v2419 = vld [vmem:[#allocation9 + $0x58] sm:$0xff]
    %v2420 = vld [vmem:[#allocation9 + $0x60] sm:$0xff]
    %v2421 = vld [vmem:[#allocation9 + $0x68] sm:$0xff]
    %v2422 = vld [vmem:[#allocation9 + $0x70] sm:$0xff]
    %v2423 = vld [vmem:[#allocation9 + $0x78] sm:$0xff]
    %v2424 = vld [vmem:[#allocation9 + $0x80] sm:$0xff]
    %v2425 = vld [vmem:[#allocation9 + $0x88] sm:$0xff]
    %v2426 = vld [vmem:[#allocation9 + $0x90] sm:$0xff]
    %v2427 = vld [vmem:[#allocation9 + $0x98] sm:$0xff]
    %v2428 = vld [vmem:[#allocation9 + $0xa0] sm:$0xff]
    %v2429 = vld [vmem:[#allocation9 + $0xa8] sm:$0xff]
    %v2430 = vld [vmem:[#allocation9 + $0xb0] sm:$0xff]
    %v2431 = vld [vmem:[#allocation9 + $0xb8] sm:$0xff]
    %v2432 = vld [vmem:[#allocation9 + $0xc0] sm:$0xff]
    %v2433 = vld [vmem:[#allocation9 + $0xc8] sm:$0xff]
    %v2434 = vld [vmem:[#allocation9 + $0xd0] sm:$0xff]
    %v2435 = vld [vmem:[#allocation9 + $0xd8] sm:$0xff]
    %v2436 = vld [vmem:[#allocation9 + $0xe0] sm:$0xff]
    %v2437 = vld [vmem:[#allocation9 + $0xe8] sm:$0xff]
    %v2438 = vld [vmem:[#allocation9 + $0xf0] sm:$0xff]
    %v2439 = vld [vmem:[#allocation9 + $0xf8] sm:$0xff]
    %v2440 = vld [vmem:[#allocation9 + $0x100] sm:$0xff]
    %v2441 = vld [vmem:[#allocation9 + $0x108] sm:$0xff]
    %v2442 = vld [vmem:[#allocation9 + $0x110] sm:$0xff]
    %v2443 = vld [vmem:[#allocation9 + $0x118] sm:$0xff]
    %v2444 = vld [vmem:[#allocation9 + $0x120] sm:$0xff]
    %v2445 = vld [vmem:[#allocation9 + $0x128] sm:$0xff]
    %v2446 = vld [vmem:[#allocation9 + $0x130] sm:$0xff]
    %v2447 = vld [vmem:[#allocation9 + $0x138] sm:$0xff]
    %v2448 = vld [vmem:[#allocation9 + $0x140] sm:$0xff]
    %v2449 = vld [vmem:[#allocation9 + $0x148] sm:$0xff]
    %v2450 = vld [vmem:[#allocation9 + $0x150] sm:$0xff]
    %v2451 = vld [vmem:[#allocation9 + $0x158] sm:$0xff]
    %v2452 = vld [vmem:[#allocation9 + $0x160] sm:$0xff]
    %v2453 = vld [vmem:[#allocation9 + $0x168] sm:$0xff]
    %v2454 = vld [vmem:[#allocation9 + $0x170] sm:$0xff]
    %v2455 = vld [vmem:[#allocation9 + $0x178] sm:$0xff]
    %v2456 = vld [vmem:[#allocation9 + $0x180] sm:$0xff]
    %v2457 = vld [vmem:[#allocation9 + $0x188] sm:$0xff]
    %v2458 = vld [vmem:[#allocation9 + $0x190] sm:$0xff]
    %v2459 = vld [vmem:[#allocation9 + $0x198] sm:$0xff]
    %v2460 = vld [vmem:[#allocation9 + $0x1a0] sm:$0xff]
    %v2461 = vld [vmem:[#allocation9 + $0x1a8] sm:$0xff]
    %v2462 = vld [vmem:[#allocation9 + $0x1b0] sm:$0xff]
    %v2463 = vld [vmem:[#allocation9 + $0x1b8] sm:$0xff]
    %v2464 = vld [vmem:[#allocation9 + $0x1c0] sm:$0xff]
    %v2465 = vld [vmem:[#allocation9 + $0x1c8] sm:$0xff]
    %v2466 = vld [vmem:[#allocation9 + $0x1d0] sm:$0xff]
    %v2467 = vld [vmem:[#allocation9 + $0x1d8] sm:$0xff]
    %v2468 = vld [vmem:[#allocation9 + $0x1e0] sm:$0xff]
    %v2469 = vld [vmem:[#allocation9 + $0x1e8] sm:$0xff]
    %v2470 = vld [vmem:[#allocation9 + $0x1f0] sm:$0xff]
    %v2471 = vld [vmem:[#allocation9 + $0x1f8] sm:$0xff]
    %v2472 = vld [vmem:[#allocation2] sm:$0xff]
    %v2473 = vld [vmem:[#allocation2 + $0x8] sm:$0xff]
    %v2474 = vld [vmem:[#allocation2 + $0x10] sm:$0xff]
    %v2475 = vld [vmem:[#allocation2 + $0x18] sm:$0xff]
    %2476 = vmatprep.subr.mxu0 %v2409
    %2477 = vmatpush1.msra.mxu0 %v2408
    %2478 = vmatprep.subr.mxu0 %v2413
    %2479 = vmatpush1.msra.mxu0 %v2412
    %2480 = vmatprep.subr.mxu0 %v2417
    %2481 = vmatpush1.msra.mxu0 %v2416
    %2482 = vmatprep.subr.mxu0 %v2421
    %2483 = vmatpush1.msra.mxu0 %v2420
    %2484 = vmatprep.subr.mxu0 %v2425
    %2485 = vmatpush1.msra.mxu0 %v2424
    %2486 = vmatprep.subr.mxu0 %v2429
    %2487 = vmatpush1.msra.mxu0 %v2428
    %2488 = vmatprep.subr.mxu0 %v2433
    %2489 = vmatpush1.msra.mxu0 %v2432
    %2490 = vmatprep.subr.mxu0 %v2437
    %2491 = vmatpush1.msra.mxu0 %v2436
    %2492 = vmatprep.subr.mxu0 %v2441
    %2493 = vmatpush1.msra.mxu0 %v2440
    %2494 = vmatprep.subr.mxu0 %v2445
    %2495 = vmatpush1.msra.mxu0 %v2444
    %2496 = vmatprep.subr.mxu0 %v2449
    %2497 = vmatpush1.msra.mxu0 %v2448
    %2498 = vmatprep.subr.mxu0 %v2453
    %2499 = vmatpush1.msra.mxu0 %v2452
    %2500 = vmatprep.subr.mxu0 %v2457
    %2501 = vmatpush1.msra.mxu0 %v2456
    %2502 = vmatprep.subr.mxu0 %v2461
    %2503 = vmatpush1.msra.mxu0 %v2460
    %2504 = vmatprep.subr.mxu0 %v2465
    %2505 = vmatpush1.msra.mxu0 %v2464
    %2506 = vmatprep.subr.mxu0 %v2469
    %2507 = vmatpush1.msra.mxu0 %v2468
    %2508 = vmatprep.subr.mxu0 0.0
    %2509 = vmatpush1.msra.mxu0 0.0
    %2510 = vmatprep.subr.mxu0 0.0
    %2511 = vmatpush1.msra.mxu0 0.0
    %2512 = vmatprep.subr.mxu0 0.0
    %2513 = vmatpush1.msra.mxu0 0.0
    %2514 = vmatprep.subr.mxu0 0.0
    %2515 = vmatpush1.msra.mxu0 0.0
    %2516 = vmatprep.subr.mxu0 0.0
    %2517 = vmatpush1.msra.mxu0 0.0
    %2518 = vmatprep.subr.mxu0 0.0
    %2519 = vmatpush1.msra.mxu0 0.0
    %2520 = vmatprep.subr.mxu0 0.0
    %2521 = vmatpush1.msra.mxu0 0.0
    %2522 = vmatprep.subr.mxu0 0.0
    %2523 = vmatpush1.msra.mxu0 0.0
    %2524 = vmatprep.subr.mxu0 0.0
    %2525 = vmatpush1.msra.mxu0 0.0
    %2526 = vmatprep.subr.mxu0 0.0
    %2527 = vmatpush1.msra.mxu0 0.0
    %2528 = vmatprep.subr.mxu0 0.0
    %2529 = vmatpush1.msra.mxu0 0.0
    %2530 = vmatprep.subr.mxu0 0.0
    %2531 = vmatpush1.msra.mxu0 0.0
    %2532 = vmatprep.subr.mxu0 0.0
    %2533 = vmatpush1.msra.mxu0 0.0
    %2534 = vmatprep.subr.mxu0 0.0
    %2535 = vmatpush1.msra.mxu0 0.0
    %2536 = vmatprep.subr.mxu0 0.0
    %2537 = vmatpush1.msra.mxu0 0.0
    %2538 = vmatprep.subr.mxu0 0.0
    %2539 = vmatpush1.msra.mxu0 0.0
    %2540 = vmatprep.mubr.f32.mxu0 0.0
    %2541 = vmatmul.mubr.f32.gmra.mrb[0].mxu0 0.0
    %v2542 = vpop.f32.mrb[0].mxu0
    %v2543 = vadd.f32 0.0, %v2542
    %v2544 = vpop.f32.mrb[0].mxu0
    %v2545 = vadd.f32 0.0, %v2544
    %2546 = vdwg.mxu0
    %2547 = vmatprep.subr.mxu0 %v2411
    %2548 = vmatpush1.msra.mxu0 %v2410
    %2549 = vmatprep.subr.mxu0 %v2415
    %2550 = vmatpush1.msra.mxu0 %v2414
    %2551 = vmatprep.subr.mxu0 %v2419
    %2552 = vmatpush1.msra.mxu0 %v2418
    %2553 = vmatprep.subr.mxu0 %v2423
    %2554 = vmatpush1.msra.mxu0 %v2422
    %2555 = vmatprep.subr.mxu0 %v2427
    %2556 = vmatpush1.msra.mxu0 %v2426
    %2557 = vmatprep.subr.mxu0 %v2431
    %2558 = vmatpush1.msra.mxu0 %v2430
    %2559 = vmatprep.subr.mxu0 %v2435
    %2560 = vmatpush1.msra.mxu0 %v2434
    %2561 = vmatprep.subr.mxu0 %v2439
    %2562 = vmatpush1.msra.mxu0 %v2438
    %2563 = vmatprep.subr.mxu0 %v2443
    %2564 = vmatpush1.msra.mxu0 %v2442
    %2565 = vmatprep.subr.mxu0 %v2447
    %2566 = vmatpush1.msra.mxu0 %v2446
    %2567 = vmatprep.subr.mxu0 %v2451
    %2568 = vmatpush1.msra.mxu0 %v2450
    %2569 = vmatprep.subr.mxu0 %v2455
    %2570 = vmatpush1.msra.mxu0 %v2454
    %2571 = vmatprep.subr.mxu0 %v2459
    %2572 = vmatpush1.msra.mxu0 %v2458
    %2573 = vmatprep.subr.mxu0 %v2463
    %2574 = vmatpush1.msra.mxu0 %v2462
    %2575 = vmatprep.subr.mxu0 %v2467
    %2576 = vmatpush1.msra.mxu0 %v2466
    %2577 = vmatprep.subr.mxu0 %v2471
    %2578 = vmatpush1.msra.mxu0 %v2470
    %2579 = vmatprep.subr.mxu0 0.0
    %2580 = vmatpush1.msra.mxu0 0.0
    %2581 = vmatprep.subr.mxu0 0.0
    %2582 = vmatpush1.msra.mxu0 0.0
    %2583 = vmatprep.subr.mxu0 0.0
    %2584 = vmatpush1.msra.mxu0 0.0
    %2585 = vmatprep.subr.mxu0 0.0
    %2586 = vmatpush1.msra.mxu0 0.0
    %2587 = vmatprep.subr.mxu0 0.0
    %2588 = vmatpush1.msra.mxu0 0.0
    %2589 = vmatprep.subr.mxu0 0.0
    %2590 = vmatpush1.msra.mxu0 0.0
    %2591 = vmatprep.subr.mxu0 0.0
    %2592 = vmatpush1.msra.mxu0 0.0
    %2593 = vmatprep.subr.mxu0 0.0
    %2594 = vmatpush1.msra.mxu0 0.0
    %2595 = vmatprep.subr.mxu0 0.0
    %2596 = vmatpush1.msra.mxu0 0.0
    %2597 = vmatprep.subr.mxu0 0.0
    %2598 = vmatpush1.msra.mxu0 0.0
    %2599 = vmatprep.subr.mxu0 0.0
    %2600 = vmatpush1.msra.mxu0 0.0
    %2601 = vmatprep.subr.mxu0 0.0
    %2602 = vmatpush1.msra.mxu0 0.0
    %2603 = vmatprep.subr.mxu0 0.0
    %2604 = vmatpush1.msra.mxu0 0.0
    %2605 = vmatprep.subr.mxu0 0.0
    %2606 = vmatpush1.msra.mxu0 0.0
    %2607 = vmatprep.subr.mxu0 0.0
    %2608 = vmatpush1.msra.mxu0 0.0
    %2609 = vmatprep.subr.mxu0 0.0
    %2610 = vmatpush1.msra.mxu0 0.0
    %2611 = vmatprep.mubr.f32.mxu0 0.0
    %2612 = vmatmul.mubr.f32.gmra.mrb[0].mxu0 0.0
    %v2613 = vpop.f32.mrb[0].mxu0
    %v2614 = vadd.f32 0.0, %v2613
    %v2615 = vpop.f32.mrb[0].mxu0
    %v2616 = vadd.f32 0.0, %v2615
    %2617 = vdwg.mxu0
    %v2618 = vadd.f32 %v2472, %v2543
    %v2619 = vadd.f32 %v2473, %v2545
    %v2620 = vadd.f32 %v2474, %v2614
    %v2621 = vadd.f32 %v2475, %v2616
    %v2622 = vxor.u32 %v2618, 2147483648
    %v2623 = vxor.u32 %v2619, 2147483648
    %v2624 = vxor.u32 %v2620, 2147483648
    %v2625 = vmul.f32 %v2622, 1.442695
    %v2626 = vpow.pop %v2625
    %v2627 = vmul.f32 %v2623, 1.442695
    %v2628 = vpow.pop %v2627
    %v2629 = vmul.f32 %v2624, 1.442695
    %v2630 = vpow.pop %v2629
    %v2631 = vadd.f32 %v2626, 1.0
    %v2632 = vadd.f32 %v2628, 1.0
    %v2633 = vadd.f32 %v2630, 1.0
    %v2634 = vrcp.pop %v2631
    %v2635 = vmul.f32 1.0, %v2634
    %v2636 = vrcp.pop %v2632
    %v2637 = vmul.f32 1.0, %v2636
    %v2638 = vrcp.pop %v2633
    %v2639 = vmul.f32 1.0, %v2638
    %v2640 = vtanh.pop %v2621
    %v2641 = vmul.f32 %v2637, 0.0
    %v2642 = vmul.f32 %v2635, %v2640
    %v2643 = vadd.f32 %v2641, %v2642
    %v2644 = vtanh.pop %v2643
    %v2645 = vmul.f32 %v2639, %v2644
    %v2646 = vld [vmem:[#allocation2 + $0x20] sm:$0xff]
    %v2647 = vld [vmem:[#allocation2 + $0x28] sm:$0xff]
    %v2648 = vld [vmem:[#allocation2 + $0x30] sm:$0xff]
    %v2649 = vld [vmem:[#allocation2 + $0x38] sm:$0xff]
    %2650 = vmatprep.subr.mxu0 %v2409
    %2651 = vmatpush1.msra.mxu0 %v2408
    %2652 = vmatprep.subr.mxu0 %v2413
    %2653 = vmatpush1.msra.mxu0 %v2412
    %2654 = vmatprep.subr.mxu0 %v2417
    %2655 = vmatpush1.msra.mxu0 %v2416
    %2656 = vmatprep.subr.mxu0 %v2421
    %2657 = vmatpush1.msra.mxu0 %v2420
    %2658 = vmatprep.subr.mxu0 %v2425
    %2659 = vmatpush1.msra.mxu0 %v2424
    %2660 = vmatprep.subr.mxu0 %v2429
    %2661 = vmatpush1.msra.mxu0 %v2428
    %2662 = vmatprep.subr.mxu0 %v2433
    %2663 = vmatpush1.msra.mxu0 %v2432
    %2664 = vmatprep.subr.mxu0 %v2437
    %2665 = vmatpush1.msra.mxu0 %v2436
    %2666 = vmatprep.subr.mxu0 %v2441
    %2667 = vmatpush1.msra.mxu0 %v2440
    %2668 = vmatprep.subr.mxu0 %v2445
    %2669 = vmatpush1.msra.mxu0 %v2444
    %2670 = vmatprep.subr.mxu0 %v2449
    %2671 = vmatpush1.msra.mxu0 %v2448
    %2672 = vmatprep.subr.mxu0 %v2453
    %2673 = vmatpush1.msra.mxu0 %v2452
    %2674 = vmatprep.subr.mxu0 %v2457
    %2675 = vmatpush1.msra.mxu0 %v2456
    %2676 = vmatprep.subr.mxu0 %v2461
    %2677 = vmatpush1.msra.mxu0 %v2460
    %2678 = vmatprep.subr.mxu0 %v2465
    %2679 = vmatpush1.msra.mxu0 %v2464
    %2680 = vmatprep.subr.mxu0 %v2469
    %2681 = vmatpush1.msra.mxu0 %v2468
    %2682 = vmatprep.subr.mxu0 0.0
    %2683 = vmatpush1.msra.mxu0 0.0
    %2684 = vmatprep.subr.mxu0 0.0
    %2685 = vmatpush1.msra.mxu0 0.0
    %2686 = vmatprep.subr.mxu0 0.0
    %2687 = vmatpush1.msra.mxu0 0.0
    %2688 = vmatprep.subr.mxu0 0.0
    %2689 = vmatpush1.msra.mxu0 0.0
    %2690 = vmatprep.subr.mxu0 0.0
    %2691 = vmatpush1.msra.mxu0 0.0
    %2692 = vmatprep.subr.mxu0 0.0
    %2693 = vmatpush1.msra.mxu0 0.0
    %2694 = vmatprep.subr.mxu0 0.0
    %2695 = vmatpush1.msra.mxu0 0.0
    %2696 = vmatprep.subr.mxu0 0.0
    %2697 = vmatpush1.msra.mxu0 0.0
    %2698 = vmatprep.subr.mxu0 0.0
    %2699 = vmatpush1.msra.mxu0 0.0
    %2700 = vmatprep.subr.mxu0 0.0
    %2701 = vmatpush1.msra.mxu0 0.0
    %2702 = vmatprep.subr.mxu0 0.0
    %2703 = vmatpush1.msra.mxu0 0.0
    %2704 = vmatprep.subr.mxu0 0.0
    %2705 = vmatpush1.msra.mxu0 0.0
    %2706 = vmatprep.subr.mxu0 0.0
    %2707 = vmatpush1.msra.mxu0 0.0
    %2708 = vmatprep.subr.mxu0 0.0
    %2709 = vmatpush1.msra.mxu0 0.0
    %2710 = vmatprep.subr.mxu0 0.0
    %2711 = vmatpush1.msra.mxu0 0.0
    %2712 = vmatprep.subr.mxu0 0.0
    %2713 = vmatpush1.msra.mxu0 0.0
    %2714 = vmatprep.mubr.f32.mxu0 0.0
    %2715 = vmatmul.mubr.f32.gmra.mrb[0].mxu0 %v2645
    %v2716 = vpop.f32.mrb[0].mxu0
    %v2717 = vadd.f32 0.0, %v2716
    %v2718 = vpop.f32.mrb[0].mxu0
    %v2719 = vadd.f32 0.0, %v2718
    %2720 = vdwg.mxu0
    %2721 = vmatprep.subr.mxu0 %v2411
    %2722 = vmatpush1.msra.mxu0 %v2410
    %2723 = vmatprep.subr.mxu0 %v2415
    %2724 = vmatpush1.msra.mxu0 %v2414
    %2725 = vmatprep.subr.mxu0 %v2419
    %2726 = vmatpush1.msra.mxu0 %v2418
    %2727 = vmatprep.subr.mxu0 %v2423
    %2728 = vmatpush1.msra.mxu0 %v2422
    %2729 = vmatprep.subr.mxu0 %v2427
    %2730 = vmatpush1.msra.mxu0 %v2426
    %2731 = vmatprep.subr.mxu0 %v2431
    %2732 = vmatpush1.msra.mxu0 %v2430
    %2733 = vmatprep.subr.mxu0 %v2435
    %2734 = vmatpush1.msra.mxu0 %v2434
    %2735 = vmatprep.subr.mxu0 %v2439
    %2736 = vmatpush1.msra.mxu0 %v2438
    %2737 = vmatprep.subr.mxu0 %v2443
    %2738 = vmatpush1.msra.mxu0 %v2442
    %2739 = vmatprep.subr.mxu0 %v2447
    %2740 = vmatpush1.msra.mxu0 %v2446
    %2741 = vmatprep.subr.mxu0 %v2451
    %2742 = vmatpush1.msra.mxu0 %v2450
    %2743 = vmatprep.subr.mxu0 %v2455
    %2744 = vmatpush1.msra.mxu0 %v2454
    %2745 = vmatprep.subr.mxu0 %v2459
    %2746 = vmatpush1.msra.mxu0 %v2458
    %2747 = vmatprep.subr.mxu0 %v2463
    %2748 = vmatpush1.msra.mxu0 %v2462
    %2749 = vmatprep.subr.mxu0 %v2467
    %2750 = vmatpush1.msra.mxu0 %v2466
    %2751 = vmatprep.subr.mxu0 %v2471
    %2752 = vmatpush1.msra.mxu0 %v2470
    %2753 = vmatprep.subr.mxu0 0.0
    %2754 = vmatpush1.msra.mxu0 0.0
    %2755 = vmatprep.subr.mxu0 0.0
    %2756 = vmatpush1.msra.mxu0 0.0
    %2757 = vmatprep.subr.mxu0 0.0
    %2758 = vmatpush1.msra.mxu0 0.0
    %2759 = vmatprep.subr.mxu0 0.0
    %2760 = vmatpush1.msra.mxu0 0.0
    %2761 = vmatprep.subr.mxu0 0.0
    %2762 = vmatpush1.msra.mxu0 0.0
    %2763 = vmatprep.subr.mxu0 0.0
    %2764 = vmatpush1.msra.mxu0 0.0
    %2765 = vmatprep.subr.mxu0 0.0
    %2766 = vmatpush1.msra.mxu0 0.0
    %2767 = vmatprep.subr.mxu0 0.0
    %2768 = vmatpush1.msra.mxu0 0.0
    %2769 = vmatprep.subr.mxu0 0.0
    %2770 = vmatpush1.msra.mxu0 0.0
    %2771 = vmatprep.subr.mxu0 0.0
    %2772 = vmatpush1.msra.mxu0 0.0
    %2773 = vmatprep.subr.mxu0 0.0
    %2774 = vmatpush1.msra.mxu0 0.0
    %2775 = vmatprep.subr.mxu0 0.0
    %2776 = vmatpush1.msra.mxu0 0.0
    %2777 = vmatprep.subr.mxu0 0.0
    %2778 = vmatpush1.msra.mxu0 0.0
    %2779 = vmatprep.subr.mxu0 0.0
    %2780 = vmatpush1.msra.mxu0 0.0
    %2781 = vmatprep.subr.mxu0 0.0
    %2782 = vmatpush1.msra.mxu0 0.0
    %2783 = vmatprep.subr.mxu0 0.0
    %2784 = vmatpush1.msra.mxu0 0.0
    %2785 = vmatprep.mubr.f32.mxu0 0.0
    %2786 = vmatmul.mubr.f32.gmra.mrb[0].mxu0 %v2645
    %v2787 = vpop.f32.mrb[0].mxu0
    %v2788 = vadd.f32 0.0, %v2787
    %v2789 = vpop.f32.mrb[0].mxu0
    %v2790 = vadd.f32 0.0, %v2789
    %2791 = vdwg.mxu0
    %v2792 = vadd.f32 %v2646, %v2717
    %v2793 = vadd.f32 %v2647, %v2719
    %v2794 = vadd.f32 %v2648, %v2788
    %v2795 = vadd.f32 %v2649, %v2790
    %v2796 = vxor.u32 %v2792, 2147483648
    %v2797 = vxor.u32 %v2793, 2147483648
    %v2798 = vxor.u32 %v2794, 2147483648
    %v2799 = vmul.f32 %v2796, 1.442695
    %v2800 = vpow.pop %v2799
    %v2801 = vmul.f32 %v2797, 1.442695
    %v2802 = vpow.pop %v2801
    %v2803 = vmul.f32 %v2798, 1.442695
    %v2804 = vpow.pop %v2803
    %v2805 = vadd.f32 %v2800, 1.0
    %v2806 = vadd.f32 %v2802, 1.0
    %v2807 = vadd.f32 %v2804, 1.0
    %v2808 = vrcp.pop %v2805
    %v2809 = vmul.f32 1.0, %v2808
    %v2810 = vrcp.pop %v2806
    %v2811 = vmul.f32 1.0, %v2810
    %v2812 = vrcp.pop %v2807
    %v2813 = vmul.f32 1.0, %v2812
    %v2814 = vtanh.pop %v2795
    %v2815 = vmul.f32 %v2811, %v2643
    %v2816 = vmul.f32 %v2809, %v2814
    %v2817 = vadd.f32 %v2815, %v2816
    %v2818 = vtanh.pop %v2817
    %v2819 = vmul.f32 %v2813, %v2818
    %v2820 = vld [vmem:[#allocation2 + $0x40] sm:$0xff]
    %v2821 = vld [vmem:[#allocation2 + $0x48] sm:$0xff]
    %v2822 = vld [vmem:[#allocation2 + $0x50] sm:$0xff]
    %v2823 = vld [vmem:[#allocation2 + $0x58] sm:$0xff]
    %2824 = vmatprep.subr.mxu0 %v2409
    %2825 = vmatpush1.msra.mxu0 %v2408
    %2826 = vmatprep.subr.mxu0 %v2413
    %2827 = vmatpush1.msra.mxu0 %v2412
    %2828 = vmatprep.subr.mxu0 %v2417
    %2829 = vmatpush1.msra.mxu0 %v2416
    %2830 = vmatprep.subr.mxu0 %v2421
    %2831 = vmatpush1.msra.mxu0 %v2420
    %2832 = vmatprep.subr.mxu0 %v2425
    %2833 = vmatpush1.msra.mxu0 %v2424
    %2834 = vmatprep.subr.mxu0 %v2429
    %2835 = vmatpush1.msra.mxu0 %v2428
    %2836 = vmatprep.subr.mxu0 %v2433
    %2837 = vmatpush1.msra.mxu0 %v2432
    %2838 = vmatprep.subr.mxu0 %v2437
    %2839 = vmatpush1.msra.mxu0 %v2436
    %2840 = vmatprep.subr.mxu0 %v2441
    %2841 = vmatpush1.msra.mxu0 %v2440
    %2842 = vmatprep.subr.mxu0 %v2445
    %2843 = vmatpush1.msra.mxu0 %v2444
    %2844 = vmatprep.subr.mxu0 %v2449
    %2845 = vmatpush1.msra.mxu0 %v2448
    %2846 = vmatprep.subr.mxu0 %v2453
    %2847 = vmatpush1.msra.mxu0 %v2452
    %2848 = vmatprep.subr.mxu0 %v2457
    %2849 = vmatpush1.msra.mxu0 %v2456
    %2850 = vmatprep.subr.mxu0 %v2461
    %2851 = vmatpush1.msra.mxu0 %v2460
    %2852 = vmatprep.subr.mxu0 %v2465
    %2853 = vmatpush1.msra.mxu0 %v2464
    %2854 = vmatprep.subr.mxu0 %v2469
    %2855 = vmatpush1.msra.mxu0 %v2468
    %2856 = vmatprep.subr.mxu0 0.0
    %2857 = vmatpush1.msra.mxu0 0.0
    %2858 = vmatprep.subr.mxu0 0.0
    %2859 = vmatpush1.msra.mxu0 0.0
    %2860 = vmatprep.subr.mxu0 0.0
    %2861 = vmatpush1.msra.mxu0 0.0
    %2862 = vmatprep.subr.mxu0 0.0
    %2863 = vmatpush1.msra.mxu0 0.0
    %2864 = vmatprep.subr.mxu0 0.0
    %2865 = vmatpush1.msra.mxu0 0.0
    %2866 = vmatprep.subr.mxu0 0.0
    %2867 = vmatpush1.msra.mxu0 0.0
    %2868 = vmatprep.subr.mxu0 0.0
    %2869 = vmatpush1.msra.mxu0 0.0
    %2870 = vmatprep.subr.mxu0 0.0
    %2871 = vmatpush1.msra.mxu0 0.0
    %2872 = vmatprep.subr.mxu0 0.0
    %2873 = vmatpush1.msra.mxu0 0.0
    %2874 = vmatprep.subr.mxu0 0.0
    %2875 = vmatpush1.msra.mxu0 0.0
    %2876 = vmatprep.subr.mxu0 0.0
    %2877 = vmatpush1.msra.mxu0 0.0
    %2878 = vmatprep.subr.mxu0 0.0
    %2879 = vmatpush1.msra.mxu0 0.0
    %2880 = vmatprep.subr.mxu0 0.0
    %2881 = vmatpush1.msra.mxu0 0.0
    %2882 = vmatprep.subr.mxu0 0.0
    %2883 = vmatpush1.msra.mxu0 0.0
    %2884 = vmatprep.subr.mxu0 0.0
    %2885 = vmatpush1.msra.mxu0 0.0
    %2886 = vmatprep.subr.mxu0 0.0
    %2887 = vmatpush1.msra.mxu0 0.0
    %2888 = vmatprep.mubr.f32.mxu0 0.0
    %2889 = vmatmul.mubr.f32.gmra.mrb[0].mxu0 %v2819
    %v2890 = vpop.f32.mrb[0].mxu0
    %v2891 = vadd.f32 0.0, %v2890
    %v2892 = vpop.f32.mrb[0].mxu0
    %v2893 = vadd.f32 0.0, %v2892
    %2894 = vdwg.mxu0
    %2895 = vmatprep.subr.mxu0 %v2411
    %2896 = vmatpush1.msra.mxu0 %v2410
    %2897 = vmatprep.subr.mxu0 %v2415
    %2898 = vmatpush1.msra.mxu0 %v2414
    %2899 = vmatprep.subr.mxu0 %v2419
    %2900 = vmatpush1.msra.mxu0 %v2418
    %2901 = vmatprep.subr.mxu0 %v2423
    %2902 = vmatpush1.msra.mxu0 %v2422
    %2903 = vmatprep.subr.mxu0 %v2427
    %2904 = vmatpush1.msra.mxu0 %v2426
    %2905 = vmatprep.subr.mxu0 %v2431
    %2906 = vmatpush1.msra.mxu0 %v2430
    %2907 = vmatprep.subr.mxu0 %v2435
    %2908 = vmatpush1.msra.mxu0 %v2434
    %2909 = vmatprep.subr.mxu0 %v2439
    %2910 = vmatpush1.msra.mxu0 %v2438
    %2911 = vmatprep.subr.mxu0 %v2443
    %2912 = vmatpush1.msra.mxu0 %v2442
    %2913 = vmatprep.subr.mxu0 %v2447
    %2914 = vmatpush1.msra.mxu0 %v2446
    %2915 = vmatprep.subr.mxu0 %v2451
    %2916 = vmatpush1.msra.mxu0 %v2450
    %2917 = vmatprep.subr.mxu0 %v2455
    %2918 = vmatpush1.msra.mxu0 %v2454
    %2919 = vmatprep.subr.mxu0 %v2459
    %2920 = vmatpush1.msra.mxu0 %v2458
    %2921 = vmatprep.subr.mxu0 %v2463
    %2922 = vmatpush1.msra.mxu0 %v2462
    %2923 = vmatprep.subr.mxu0 %v2467
    %2924 = vmatpush1.msra.mxu0 %v2466
    %2925 = vmatprep.subr.mxu0 %v2471
    %2926 = vmatpush1.msra.mxu0 %v2470
    %2927 = vmatprep.subr.mxu0 0.0
    %2928 = vmatpush1.msra.mxu0 0.0
    %2929 = vmatprep.subr.mxu0 0.0
    %2930 = vmatpush1.msra.mxu0 0.0
    %2931 = vmatprep.subr.mxu0 0.0
    %2932 = vmatpush1.msra.mxu0 0.0
    %2933 = vmatprep.subr.mxu0 0.0
    %2934 = vmatpush1.msra.mxu0 0.0
    %2935 = vmatprep.subr.mxu0 0.0
    %2936 = vmatpush1.msra.mxu0 0.0
    %2937 = vmatprep.subr.mxu0 0.0
    %2938 = vmatpush1.msra.mxu0 0.0
    %2939 = vmatprep.subr.mxu0 0.0
    %2940 = vmatpush1.msra.mxu0 0.0
    %2941 = vmatprep.subr.mxu0 0.0
    %2942 = vmatpush1.msra.mxu0 0.0
    %2943 = vmatprep.subr.mxu0 0.0
    %2944 = vmatpush1.msra.mxu0 0.0
    %2945 = vmatprep.subr.mxu0 0.0
    %2946 = vmatpush1.msra.mxu0 0.0
    %2947 = vmatprep.subr.mxu0 0.0
    %2948 = vmatpush1.msra.mxu0 0.0
    %2949 = vmatprep.subr.mxu0 0.0
    %2950 = vmatpush1.msra.mxu0 0.0
    %2951 = vmatprep.subr.mxu0 0.0
    %2952 = vmatpush1.msra.mxu0 0.0
    %2953 = vmatprep.subr.mxu0 0.0
    %2954 = vmatpush1.msra.mxu0 0.0
    %2955 = vmatprep.subr.mxu0 0.0
    %2956 = vmatpush1.msra.mxu0 0.0
    %2957 = vmatprep.subr.mxu0 0.0
    %2958 = vmatpush1.msra.mxu0 0.0
    %2959 = vmatprep.mubr.f32.mxu0 0.0
    %2960 = vmatmul.mubr.f32.gmra.mrb[0].mxu0 %v2819
    %v2961 = vpop.f32.mrb[0].mxu0
    %v2962 = vadd.f32 0.0, %v2961
    %v2963 = vpop.f32.mrb[0].mxu0
    %v2964 = vadd.f32 0.0, %v2963
    %2965 = vdwg.mxu0
    %v2966 = vadd.f32 %v2820, %v2891
    %v2967 = vadd.f32 %v2821, %v2893
    %v2968 = vadd.f32 %v2822, %v2962
    %v2969 = vadd.f32 %v2823, %v2964
    %v2970 = vxor.u32 %v2966, 2147483648
    %v2971 = vxor.u32 %v2967, 2147483648
    %v2972 = vxor.u32 %v2968, 2147483648
    %v2973 = vmul.f32 %v2970, 1.442695
    %v2974 = vpow.pop %v2973
    %v2975 = vmul.f32 %v2971, 1.442695
    %v2976 = vpow.pop %v2975
    %v2977 = vmul.f32 %v2972, 1.442695
    %v2978 = vpow.pop %v2977
    %v2979 = vadd.f32 %v2974, 1.0
    %v2980 = vadd.f32 %v2976, 1.0
    %v2981 = vadd.f32 %v2978, 1.0
    %v2982 = vrcp.pop %v2979
    %v2983 = vmul.f32 1.0, %v2982
    %v2984 = vrcp.pop %v2980
    %v2985 = vmul.f32 1.0, %v2984
    %v2986 = vrcp.pop %v2981
    %v2987 = vmul.f32 1.0, %v2986
    %v2988 = vtanh.pop %v2969
    %v2989 = vmul.f32 %v2985, %v2817
    %v2990 = vmul.f32 %v2983, %v2988
    %v2991 = vadd.f32 %v2989, %v2990
    %v2992 = vtanh.pop %v2991
    %v2993 = vmul.f32 %v2987, %v2992
    %v2994 = vld [vmem:[#allocation2 + $0x60] sm:$0xff]
    %v2995 = vld [vmem:[#allocation2 + $0x68] sm:$0xff]
    %v2996 = vld [vmem:[#allocation2 + $0x70] sm:$0xff]
    %v2997 = vld [vmem:[#allocation2 + $0x78] sm:$0xff]
    %2998 = vmatprep.subr.mxu0 %v2409
    %2999 = vmatpush1.msra.mxu0 %v2408
    %3000 = vmatprep.subr.mxu0 %v2413
    %3001 = vmatpush1.msra.mxu0 %v2412
    %3002 = vmatprep.subr.mxu0 %v2417
    %3003 = vmatpush1.msra.mxu0 %v2416
    %3004 = vmatprep.subr.mxu0 %v2421
    %3005 = vmatpush1.msra.mxu0 %v2420
    %3006 = vmatprep.subr.mxu0 %v2425
    %3007 = vmatpush1.msra.mxu0 %v2424
    %3008 = vmatprep.subr.mxu0 %v2429
    %3009 = vmatpush1.msra.mxu0 %v2428
    %3010 = vmatprep.subr.mxu0 %v2433
    %3011 = vmatpush1.msra.mxu0 %v2432
    %3012 = vmatprep.subr.mxu0 %v2437
    %3013 = vmatpush1.msra.mxu0 %v2436
    %3014 = vmatprep.subr.mxu0 %v2441
    %3015 = vmatpush1.msra.mxu0 %v2440
    %3016 = vmatprep.subr.mxu0 %v2445
    %3017 = vmatpush1.msra.mxu0 %v2444
    %3018 = vmatprep.subr.mxu0 %v2449
    %3019 = vmatpush1.msra.mxu0 %v2448
    %3020 = vmatprep.subr.mxu0 %v2453
    %3021 = vmatpush1.msra.mxu0 %v2452
    %3022 = vmatprep.subr.mxu0 %v2457
    %3023 = vmatpush1.msra.mxu0 %v2456
    %3024 = vmatprep.subr.mxu0 %v2461
    %3025 = vmatpush1.msra.mxu0 %v2460
    %3026 = vmatprep.subr.mxu0 %v2465
    %3027 = vmatpush1.msra.mxu0 %v2464
    %3028 = vmatprep.subr.mxu0 %v2469
    %3029 = vmatpush1.msra.mxu0 %v2468
    %3030 = vmatprep.subr.mxu0 0.0
    %3031 = vmatpush1.msra.mxu0 0.0
    %3032 = vmatprep.subr.mxu0 0.0
    %3033 = vmatpush1.msra.mxu0 0.0
    %3034 = vmatprep.subr.mxu0 0.0
    %3035 = vmatpush1.msra.mxu0 0.0
    %3036 = vmatprep.subr.mxu0 0.0
    %3037 = vmatpush1.msra.mxu0 0.0
    %3038 = vmatprep.subr.mxu0 0.0
    %3039 = vmatpush1.msra.mxu0 0.0
    %3040 = vmatprep.subr.mxu0 0.0
    %3041 = vmatpush1.msra.mxu0 0.0
    %3042 = vmatprep.subr.mxu0 0.0
    %3043 = vmatpush1.msra.mxu0 0.0
    %3044 = vmatprep.subr.mxu0 0.0
    %3045 = vmatpush1.msra.mxu0 0.0
    %3046 = vmatprep.subr.mxu0 0.0
    %3047 = vmatpush1.msra.mxu0 0.0
    %3048 = vmatprep.subr.mxu0 0.0
    %3049 = vmatpush1.msra.mxu0 0.0
    %3050 = vmatprep.subr.mxu0 0.0
    %3051 = vmatpush1.msra.mxu0 0.0
    %3052 = vmatprep.subr.mxu0 0.0
    %3053 = vmatpush1.msra.mxu0 0.0
    %3054 = vmatprep.subr.mxu0 0.0
    %3055 = vmatpush1.msra.mxu0 0.0
    %3056 = vmatprep.subr.mxu0 0.0
    %3057 = vmatpush1.msra.mxu0 0.0
    %3058 = vmatprep.subr.mxu0 0.0
    %3059 = vmatpush1.msra.mxu0 0.0
    %3060 = vmatprep.subr.mxu0 0.0
    %3061 = vmatpush1.msra.mxu0 0.0
    %3062 = vmatprep.mubr.f32.mxu0 0.0
    %3063 = vmatmul.mubr.f32.gmra.mrb[0].mxu0 %v2993
    %v3064 = vpop.f32.mrb[0].mxu0
    %v3065 = vadd.f32 0.0, %v3064
    %v3066 = vpop.f32.mrb[0].mxu0
    %v3067 = vadd.f32 0.0, %v3066
    %3068 = vdwg.mxu0
    %3069 = vmatprep.subr.mxu0 %v2411
    %3070 = vmatpush1.msra.mxu0 %v2410
    %3071 = vmatprep.subr.mxu0 %v2415
    %3072 = vmatpush1.msra.mxu0 %v2414
    %3073 = vmatprep.subr.mxu0 %v2419
    %3074 = vmatpush1.msra.mxu0 %v2418
    %3075 = vmatprep.subr.mxu0 %v2423
    %3076 = vmatpush1.msra.mxu0 %v2422
    %3077 = vmatprep.subr.mxu0 %v2427
    %3078 = vmatpush1.msra.mxu0 %v2426
    %3079 = vmatprep.subr.mxu0 %v2431
    %3080 = vmatpush1.msra.mxu0 %v2430
    %3081 = vmatprep.subr.mxu0 %v2435
    %3082 = vmatpush1.msra.mxu0 %v2434
    %3083 = vmatprep.subr.mxu0 %v2439
    %3084 = vmatpush1.msra.mxu0 %v2438
    %3085 = vmatprep.subr.mxu0 %v2443
    %3086 = vmatpush1.msra.mxu0 %v2442
    %3087 = vmatprep.subr.mxu0 %v2447
    %3088 = vmatpush1.msra.mxu0 %v2446
    %3089 = vmatprep.subr.mxu0 %v2451
    %3090 = vmatpush1.msra.mxu0 %v2450
    %3091 = vmatprep.subr.mxu0 %v2455
    %3092 = vmatpush1.msra.mxu0 %v2454
    %3093 = vmatprep.subr.mxu0 %v2459
    %3094 = vmatpush1.msra.mxu0 %v2458
    %3095 = vmatprep.subr.mxu0 %v2463
    %3096 = vmatpush1.msra.mxu0 %v2462
    %3097 = vmatprep.subr.mxu0 %v2467
    %3098 = vmatpush1.msra.mxu0 %v2466
    %3099 = vmatprep.subr.mxu0 %v2471
    %3100 = vmatpush1.msra.mxu0 %v2470
    %3101 = vmatprep.subr.mxu0 0.0
    %3102 = vmatpush1.msra.mxu0 0.0
    %3103 = vmatprep.subr.mxu0 0.0
    %3104 = vmatpush1.msra.mxu0 0.0
    %3105 = vmatprep.subr.mxu0 0.0
    %3106 = vmatpush1.msra.mxu0 0.0
    %3107 = vmatprep.subr.mxu0 0.0
    %3108 = vmatpush1.msra.mxu0 0.0
    %3109 = vmatprep.subr.mxu0 0.0
    %3110 = vmatpush1.msra.mxu0 0.0
    %3111 = vmatprep.subr.mxu0 0.0
    %3112 = vmatpush1.msra.mxu0 0.0
    %3113 = vmatprep.subr.mxu0 0.0
    %3114 = vmatpush1.msra.mxu0 0.0
    %3115 = vmatprep.subr.mxu0 0.0
    %3116 = vmatpush1.msra.mxu0 0.0
    %3117 = vmatprep.subr.mxu0 0.0
    %3118 = vmatpush1.msra.mxu0 0.0
    %3119 = vmatprep.subr.mxu0 0.0
    %3120 = vmatpush1.msra.mxu0 0.0
    %3121 = vmatprep.subr.mxu0 0.0
    %3122 = vmatpush1.msra.mxu0 0.0
    %3123 = vmatprep.subr.mxu0 0.0
    %3124 = vmatpush1.msra.mxu0 0.0
    %3125 = vmatprep.subr.mxu0 0.0
    %3126 = vmatpush1.msra.mxu0 0.0
    %3127 = vmatprep.subr.mxu0 0.0
    %3128 = vmatpush1.msra.mxu0 0.0
    %3129 = vmatprep.subr.mxu0 0.0
    %3130 = vmatpush1.msra.mxu0 0.0
    %3131 = vmatprep.subr.mxu0 0.0
    %3132 = vmatpush1.msra.mxu0 0.0
    %3133 = vmatprep.mubr.f32.mxu0 0.0
    %3134 = vmatmul.mubr.f32.gmra.mrb[0].mxu0 %v2993
    %v3135 = vpop.f32.mrb[0].mxu0
    %v3136 = vadd.f32 0.0, %v3135
    %v3137 = vpop.f32.mrb[0].mxu0
    %v3138 = vadd.f32 0.0, %v3137
    %3139 = vdwg.mxu0
    %v3140 = vadd.f32 %v2994, %v3065
    %v3141 = vadd.f32 %v2995, %v3067
    %v3142 = vadd.f32 %v2996, %v3136
    %v3143 = vadd.f32 %v2997, %v3138
    %v3144 = vxor.u32 %v3140, 2147483648
    %v3145 = vxor.u32 %v3141, 2147483648
    %v3146 = vxor.u32 %v3142, 2147483648
    %v3147 = vmul.f32 %v3144, 1.442695
    %v3148 = vpow.pop %v3147
    %v3149 = vmul.f32 %v3145, 1.442695
    %v3150 = vpow.pop %v3149
    %v3151 = vmul.f32 %v3146, 1.442695
    %v3152 = vpow.pop %v3151
    %v3153 = vadd.f32 %v3148, 1.0
    %v3154 = vadd.f32 %v3150, 1.0
    %v3155 = vadd.f32 %v3152, 1.0
    %v3156 = vrcp.pop %v3153
    %v3157 = vmul.f32 1.0, %v3156
    %v3158 = vrcp.pop %v3154
    %v3159 = vmul.f32 1.0, %v3158
    %v3160 = vrcp.pop %v3155
    %v3161 = vmul.f32 1.0, %v3160
    %v3162 = vtanh.pop %v3143
    %v3163 = vmul.f32 %v3159, %v2991
    %v3164 = vmul.f32 %v3157, %v3162
    %v3165 = vadd.f32 %v3163, %v3164
    %v3166 = vtanh.pop %v3165
    %v3167 = vmul.f32 %v3161, %v3166
    %v3168 = vld [vmem:[#allocation2 + $0x80] sm:$0xff]
    %v3169 = vld [vmem:[#allocation2 + $0x88] sm:$0xff]
    %v3170 = vld [vmem:[#allocation2 + $0x90] sm:$0xff]
    %v3171 = vld [vmem:[#allocation2 + $0x98] sm:$0xff]
    %3172 = vmatprep.subr.mxu0 %v2409
    %3173 = vmatpush1.msra.mxu0 %v2408
    %3174 = vmatprep.subr.mxu0 %v2413
    %3175 = vmatpush1.msra.mxu0 %v2412
    %3176 = vmatprep.subr.mxu0 %v2417
    %3177 = vmatpush1.msra.mxu0 %v2416
    %3178 = vmatprep.subr.mxu0 %v2421
    %3179 = vmatpush1.msra.mxu0 %v2420
    %3180 = vmatprep.subr.mxu0 %v2425
    %3181 = vmatpush1.msra.mxu0 %v2424
    %3182 = vmatprep.subr.mxu0 %v2429
    %3183 = vmatpush1.msra.mxu0 %v2428
    %3184 = vmatprep.subr.mxu0 %v2433
    %3185 = vmatpush1.msra.mxu0 %v2432
    %3186 = vmatprep.subr.mxu0 %v2437
    %3187 = vmatpush1.msra.mxu0 %v2436
    %3188 = vmatprep.subr.mxu0 %v2441
    %3189 = vmatpush1.msra.mxu0 %v2440
    %3190 = vmatprep.subr.mxu0 %v2445
    %3191 = vmatpush1.msra.mxu0 %v2444
    %3192 = vmatprep.subr.mxu0 %v2449
    %3193 = vmatpush1.msra.mxu0 %v2448
    %3194 = vmatprep.subr.mxu0 %v2453
    %3195 = vmatpush1.msra.mxu0 %v2452
    %3196 = vmatprep.subr.mxu0 %v2457
    %3197 = vmatpush1.msra.mxu0 %v2456
    %3198 = vmatprep.subr.mxu0 %v2461
    %3199 = vmatpush1.msra.mxu0 %v2460
    %3200 = vmatprep.subr.mxu0 %v2465
    %3201 = vmatpush1.msra.mxu0 %v2464
    %3202 = vmatprep.subr.mxu0 %v2469
    %3203 = vmatpush1.msra.mxu0 %v2468
    %3204 = vmatprep.subr.mxu0 0.0
    %3205 = vmatpush1.msra.mxu0 0.0
    %3206 = vmatprep.subr.mxu0 0.0
    %3207 = vmatpush1.msra.mxu0 0.0
    %3208 = vmatprep.subr.mxu0 0.0
    %3209 = vmatpush1.msra.mxu0 0.0
    %3210 = vmatprep.subr.mxu0 0.0
    %3211 = vmatpush1.msra.mxu0 0.0
    %3212 = vmatprep.subr.mxu0 0.0
    %3213 = vmatpush1.msra.mxu0 0.0
    %3214 = vmatprep.subr.mxu0 0.0
    %3215 = vmatpush1.msra.mxu0 0.0
    %3216 = vmatprep.subr.mxu0 0.0
    %3217 = vmatpush1.msra.mxu0 0.0
    %3218 = vmatprep.subr.mxu0 0.0
    %3219 = vmatpush1.msra.mxu0 0.0
    %3220 = vmatprep.subr.mxu0 0.0
    %3221 = vmatpush1.msra.mxu0 0.0
    %3222 = vmatprep.subr.mxu0 0.0
    %3223 = vmatpush1.msra.mxu0 0.0
    %3224 = vmatprep.subr.mxu0 0.0
    %3225 = vmatpush1.msra.mxu0 0.0
    %3226 = vmatprep.subr.mxu0 0.0
    %3227 = vmatpush1.msra.mxu0 0.0
    %3228 = vmatprep.subr.mxu0 0.0
    %3229 = vmatpush1.msra.mxu0 0.0
    %3230 = vmatprep.subr.mxu0 0.0
    %3231 = vmatpush1.msra.mxu0 0.0
    %3232 = vmatprep.subr.mxu0 0.0
    %3233 = vmatpush1.msra.mxu0 0.0
    %3234 = vmatprep.subr.mxu0 0.0
    %3235 = vmatpush1.msra.mxu0 0.0
    %3236 = vmatprep.mubr.f32.mxu0 0.0
    %3237 = vmatmul.mubr.f32.gmra.mrb[0].mxu0 %v3167
    %v3238 = vpop.f32.mrb[0].mxu0
    %v3239 = vadd.f32 0.0, %v3238
    %v3240 = vpop.f32.mrb[0].mxu0
    %v3241 = vadd.f32 0.0, %v3240
    %3242 = vdwg.mxu0
    %3243 = vmatprep.subr.mxu0 %v2411
    %3244 = vmatpush1.msra.mxu0 %v2410
    %3245 = vmatprep.subr.mxu0 %v2415
    %3246 = vmatpush1.msra.mxu0 %v2414
    %3247 = vmatprep.subr.mxu0 %v2419
    %3248 = vmatpush1.msra.mxu0 %v2418
    %3249 = vmatprep.subr.mxu0 %v2423
    %3250 = vmatpush1.msra.mxu0 %v2422
    %3251 = vmatprep.subr.mxu0 %v2427
    %3252 = vmatpush1.msra.mxu0 %v2426
    %3253 = vmatprep.subr.mxu0 %v2431
    %3254 = vmatpush1.msra.mxu0 %v2430
    %3255 = vmatprep.subr.mxu0 %v2435
    %3256 = vmatpush1.msra.mxu0 %v2434
    %3257 = vmatprep.subr.mxu0 %v2439
    %3258 = vmatpush1.msra.mxu0 %v2438
    %3259 = vmatprep.subr.mxu0 %v2443
    %3260 = vmatpush1.msra.mxu0 %v2442
    %3261 = vmatprep.subr.mxu0 %v2447
    %3262 = vmatpush1.msra.mxu0 %v2446
    %3263 = vmatprep.subr.mxu0 %v2451
    %3264 = vmatpush1.msra.mxu0 %v2450
    %3265 = vmatprep.subr.mxu0 %v2455
    %3266 = vmatpush1.msra.mxu0 %v2454
    %3267 = vmatprep.subr.mxu0 %v2459
    %3268 = vmatpush1.msra.mxu0 %v2458
    %3269 = vmatprep.subr.mxu0 %v2463
    %3270 = vmatpush1.msra.mxu0 %v2462
    %3271 = vmatprep.subr.mxu0 %v2467
    %3272 = vmatpush1.msra.mxu0 %v2466
    %3273 = vmatprep.subr.mxu0 %v2471
    %3274 = vmatpush1.msra.mxu0 %v2470
    %3275 = vmatprep.subr.mxu0 0.0
    %3276 = vmatpush1.msra.mxu0 0.0
    %3277 = vmatprep.subr.mxu0 0.0
    %3278 = vmatpush1.msra.mxu0 0.0
    %3279 = vmatprep.subr.mxu0 0.0
    %3280 = vmatpush1.msra.mxu0 0.0
    %3281 = vmatprep.subr.mxu0 0.0
    %3282 = vmatpush1.msra.mxu0 0.0
    %3283 = vmatprep.subr.mxu0 0.0
    %3284 = vmatpush1.msra.mxu0 0.0
    %3285 = vmatprep.subr.mxu0 0.0
    %3286 = vmatpush1.msra.mxu0 0.0
    %3287 = vmatprep.subr.mxu0 0.0
    %3288 = vmatpush1.msra.mxu0 0.0
    %3289 = vmatprep.subr.mxu0 0.0
    %3290 = vmatpush1.msra.mxu0 0.0
    %3291 = vmatprep.subr.mxu0 0.0
    %3292 = vmatpush1.msra.mxu0 0.0
    %3293 = vmatprep.subr.mxu0 0.0
    %3294 = vmatpush1.msra.mxu0 0.0
    %3295 = vmatprep.subr.mxu0 0.0
    %3296 = vmatpush1.msra.mxu0 0.0
    %3297 = vmatprep.subr.mxu0 0.0
    %3298 = vmatpush1.msra.mxu0 0.0
    %3299 = vmatprep.subr.mxu0 0.0
    %3300 = vmatpush1.msra.mxu0 0.0
    %3301 = vmatprep.subr.mxu0 0.0
    %3302 = vmatpush1.msra.mxu0 0.0
    %3303 = vmatprep.subr.mxu0 0.0
    %3304 = vmatpush1.msra.mxu0 0.0
    %3305 = vmatprep.subr.mxu0 0.0
    %3306 = vmatpush1.msra.mxu0 0.0
    %3307 = vmatprep.mubr.f32.mxu0 0.0
    %3308 = vmatmul.mubr.f32.gmra.mrb[0].mxu0 %v3167
    %v3309 = vpop.f32.mrb[0].mxu0
    %v3310 = vadd.f32 0.0, %v3309
    %v3311 = vpop.f32.mrb[0].mxu0
    %v3312 = vadd.f32 0.0, %v3311
    %3313 = vdwg.mxu0
    %v3314 = vadd.f32 %v3168, %v3239
    %v3315 = vadd.f32 %v3169, %v3241
    %v3316 = vadd.f32 %v3170, %v3310
    %v3317 = vadd.f32 %v3171, %v3312
    %v3318 = vxor.u32 %v3314, 2147483648
    %v3319 = vxor.u32 %v3315, 2147483648
    %v3320 = vxor.u32 %v3316, 2147483648
    %v3321 = vmul.f32 %v3318, 1.442695
    %v3322 = vpow.pop %v3321
    %v3323 = vmul.f32 %v3319, 1.442695
    %v3324 = vpow.pop %v3323
    %v3325 = vmul.f32 %v3320, 1.442695
    %v3326 = vpow.pop %v3325
    %v3327 = vadd.f32 %v3322, 1.0
    %v3328 = vadd.f32 %v3324, 1.0
    %v3329 = vadd.f32 %v3326, 1.0
    %v3330 = vrcp.pop %v3327
    %v3331 = vmul.f32 1.0, %v3330
    %v3332 = vrcp.pop %v3328
    %v3333 = vmul.f32 1.0, %v3332
    %v3334 = vrcp.pop %v3329
    %v3335 = vmul.f32 1.0, %v3334
    %v3336 = vtanh.pop %v3317
    %v3337 = vmul.f32 %v3333, %v3165
    %v3338 = vmul.f32 %v3331, %v3336
    %v3339 = vadd.f32 %v3337, %v3338
    %v3340 = vtanh.pop %v3339
    %v3341 = vmul.f32 %v3335, %v3340
    %v3342 = vld [vmem:[#allocation2 + $0xa0] sm:$0xff]
    %v3343 = vld [vmem:[#allocation2 + $0xa8] sm:$0xff]
    %v3344 = vld [vmem:[#allocation2 + $0xb0] sm:$0xff]
    %v3345 = vld [vmem:[#allocation2 + $0xb8] sm:$0xff]
    %3346 = vmatprep.subr.mxu0 %v2409
    %3347 = vmatpush1.msra.mxu0 %v2408
    %3348 = vmatprep.subr.mxu0 %v2413
    %3349 = vmatpush1.msra.mxu0 %v2412
    %3350 = vmatprep.subr.mxu0 %v2417
    %3351 = vmatpush1.msra.mxu0 %v2416
    %3352 = vmatprep.subr.mxu0 %v2421
    %3353 = vmatpush1.msra.mxu0 %v2420
    %3354 = vmatprep.subr.mxu0 %v2425
    %3355 = vmatpush1.msra.mxu0 %v2424
    %3356 = vmatprep.subr.mxu0 %v2429
    %3357 = vmatpush1.msra.mxu0 %v2428
    %3358 = vmatprep.subr.mxu0 %v2433
    %3359 = vmatpush1.msra.mxu0 %v2432
    %3360 = vmatprep.subr.mxu0 %v2437
    %3361 = vmatpush1.msra.mxu0 %v2436
    %3362 = vmatprep.subr.mxu0 %v2441
    %3363 = vmatpush1.msra.mxu0 %v2440
    %3364 = vmatprep.subr.mxu0 %v2445
    %3365 = vmatpush1.msra.mxu0 %v2444
    %3366 = vmatprep.subr.mxu0 %v2449
    %3367 = vmatpush1.msra.mxu0 %v2448
    %3368 = vmatprep.subr.mxu0 %v2453
    %3369 = vmatpush1.msra.mxu0 %v2452
    %3370 = vmatprep.subr.mxu0 %v2457
    %3371 = vmatpush1.msra.mxu0 %v2456
    %3372 = vmatprep.subr.mxu0 %v2461
    %3373 = vmatpush1.msra.mxu0 %v2460
    %3374 = vmatprep.subr.mxu0 %v2465
    %3375 = vmatpush1.msra.mxu0 %v2464
    %3376 = vmatprep.subr.mxu0 %v2469
    %3377 = vmatpush1.msra.mxu0 %v2468
    %3378 = vmatprep.subr.mxu0 0.0
    %3379 = vmatpush1.msra.mxu0 0.0
    %3380 = vmatprep.subr.mxu0 0.0
    %3381 = vmatpush1.msra.mxu0 0.0
    %3382 = vmatprep.subr.mxu0 0.0
    %3383 = vmatpush1.msra.mxu0 0.0
    %3384 = vmatprep.subr.mxu0 0.0
    %3385 = vmatpush1.msra.mxu0 0.0
    %3386 = vmatprep.subr.mxu0 0.0
    %3387 = vmatpush1.msra.mxu0 0.0
    %3388 = vmatprep.subr.mxu0 0.0
    %3389 = vmatpush1.msra.mxu0 0.0
    %3390 = vmatprep.subr.mxu0 0.0
    %3391 = vmatpush1.msra.mxu0 0.0
    %3392 = vmatprep.subr.mxu0 0.0
    %3393 = vmatpush1.msra.mxu0 0.0
    %3394 = vmatprep.subr.mxu0 0.0
    %3395 = vmatpush1.msra.mxu0 0.0
    %3396 = vmatprep.subr.mxu0 0.0
    %3397 = vmatpush1.msra.mxu0 0.0
    %3398 = vmatprep.subr.mxu0 0.0
    %3399 = vmatpush1.msra.mxu0 0.0
    %3400 = vmatprep.subr.mxu0 0.0
    %3401 = vmatpush1.msra.mxu0 0.0
    %3402 = vmatprep.subr.mxu0 0.0
    %3403 = vmatpush1.msra.mxu0 0.0
    %3404 = vmatprep.subr.mxu0 0.0
    %3405 = vmatpush1.msra.mxu0 0.0
    %3406 = vmatprep.subr.mxu0 0.0
    %3407 = vmatpush1.msra.mxu0 0.0
    %3408 = vmatprep.subr.mxu0 0.0
    %3409 = vmatpush1.msra.mxu0 0.0
    %3410 = vmatprep.mubr.f32.mxu0 0.0
    %3411 = vmatmul.mubr.f32.gmra.mrb[0].mxu0 %v3341
    %v3412 = vpop.f32.mrb[0].mxu0
    %v3413 = vadd.f32 0.0, %v3412
    %v3414 = vpop.f32.mrb[0].mxu0
    %v3415 = vadd.f32 0.0, %v3414
    %3416 = vdwg.mxu0
    %3417 = vmatprep.subr.mxu0 %v2411
    %3418 = vmatpush1.msra.mxu0 %v2410
    %3419 = vmatprep.subr.mxu0 %v2415
    %3420 = vmatpush1.msra.mxu0 %v2414
    %3421 = vmatprep.subr.mxu0 %v2419
    %3422 = vmatpush1.msra.mxu0 %v2418
    %3423 = vmatprep.subr.mxu0 %v2423
    %3424 = vmatpush1.msra.mxu0 %v2422
    %3425 = vmatprep.subr.mxu0 %v2427
    %3426 = vmatpush1.msra.mxu0 %v2426
    %3427 = vmatprep.subr.mxu0 %v2431
    %3428 = vmatpush1.msra.mxu0 %v2430
    %3429 = vmatprep.subr.mxu0 %v2435
    %3430 = vmatpush1.msra.mxu0 %v2434
    %3431 = vmatprep.subr.mxu0 %v2439
    %3432 = vmatpush1.msra.mxu0 %v2438
    %3433 = vmatprep.subr.mxu0 %v2443
    %3434 = vmatpush1.msra.mxu0 %v2442
    %3435 = vmatprep.subr.mxu0 %v2447
    %3436 = vmatpush1.msra.mxu0 %v2446
    %3437 = vmatprep.subr.mxu0 %v2451
    %3438 = vmatpush1.msra.mxu0 %v2450
    %3439 = vmatprep.subr.mxu0 %v2455
    %3440 = vmatpush1.msra.mxu0 %v2454
    %3441 = vmatprep.subr.mxu0 %v2459
    %3442 = vmatpush1.msra.mxu0 %v2458
    %3443 = vmatprep.subr.mxu0 %v2463
    %3444 = vmatpush1.msra.mxu0 %v2462
    %3445 = vmatprep.subr.mxu0 %v2467
    %3446 = vmatpush1.msra.mxu0 %v2466
    %3447 = vmatprep.subr.mxu0 %v2471
    %3448 = vmatpush1.msra.mxu0 %v2470
    %3449 = vmatprep.subr.mxu0 0.0
    %3450 = vmatpush1.msra.mxu0 0.0
    %3451 = vmatprep.subr.mxu0 0.0
    %3452 = vmatpush1.msra.mxu0 0.0
    %3453 = vmatprep.subr.mxu0 0.0
    %3454 = vmatpush1.msra.mxu0 0.0
    %3455 = vmatprep.subr.mxu0 0.0
    %3456 = vmatpush1.msra.mxu0 0.0
    %3457 = vmatprep.subr.mxu0 0.0
    %3458 = vmatpush1.msra.mxu0 0.0
    %3459 = vmatprep.subr.mxu0 0.0
    %3460 = vmatpush1.msra.mxu0 0.0
    %3461 = vmatprep.subr.mxu0 0.0
    %3462 = vmatpush1.msra.mxu0 0.0
    %3463 = vmatprep.subr.mxu0 0.0
    %3464 = vmatpush1.msra.mxu0 0.0
    %3465 = vmatprep.subr.mxu0 0.0
    %3466 = vmatpush1.msra.mxu0 0.0
    %3467 = vmatprep.subr.mxu0 0.0
    %3468 = vmatpush1.msra.mxu0 0.0
    %3469 = vmatprep.subr.mxu0 0.0
    %3470 = vmatpush1.msra.mxu0 0.0
    %3471 = vmatprep.subr.mxu0 0.0
    %3472 = vmatpush1.msra.mxu0 0.0
    %3473 = vmatprep.subr.mxu0 0.0
    %3474 = vmatpush1.msra.mxu0 0.0
    %3475 = vmatprep.subr.mxu0 0.0
    %3476 = vmatpush1.msra.mxu0 0.0
    %3477 = vmatprep.subr.mxu0 0.0
    %3478 = vmatpush1.msra.mxu0 0.0
    %3479 = vmatprep.subr.mxu0 0.0
    %3480 = vmatpush1.msra.mxu0 0.0
    %3481 = vmatprep.mubr.f32.mxu0 0.0
    %3482 = vmatmul.mubr.f32.gmra.mrb[0].mxu0 %v3341
    %v3483 = vpop.f32.mrb[0].mxu0
    %v3484 = vadd.f32 0.0, %v3483
    %v3485 = vpop.f32.mrb[0].mxu0
    %v3486 = vadd.f32 0.0, %v3485
    %3487 = vdwg.mxu0
    %v3488 = vadd.f32 %v3342, %v3413
    %v3489 = vadd.f32 %v3343, %v3415
    %v3490 = vadd.f32 %v3344, %v3484
    %v3491 = vadd.f32 %v3345, %v3486
    %v3492 = vxor.u32 %v3488, 2147483648
    %v3493 = vxor.u32 %v3489, 2147483648
    %v3494 = vxor.u32 %v3490, 2147483648
    %v3495 = vmul.f32 %v3492, 1.442695
    %v3496 = vpow.pop %v3495
    %v3497 = vmul.f32 %v3493, 1.442695
    %v3498 = vpow.pop %v3497
    %v3499 = vmul.f32 %v3494, 1.442695
    %v3500 = vpow.pop %v3499
    %v3501 = vadd.f32 %v3496, 1.0
    %v3502 = vadd.f32 %v3498, 1.0
    %v3503 = vadd.f32 %v3500, 1.0
    %v3504 = vrcp.pop %v3501
    %v3505 = vmul.f32 1.0, %v3504
    %v3506 = vrcp.pop %v3502
    %v3507 = vmul.f32 1.0, %v3506
    %v3508 = vrcp.pop %v3503
    %v3509 = vmul.f32 1.0, %v3508
    %v3510 = vtanh.pop %v3491
    %v3511 = vmul.f32 %v3507, %v3339
    %v3512 = vmul.f32 %v3505, %v3510
    %v3513 = vadd.f32 %v3511, %v3512
    %v3514 = vtanh.pop %v3513
    %v3515 = vmul.f32 %v3509, %v3514
    %v3516 = vld [vmem:[#allocation2 + $0xc0] sm:$0xff]
    %v3517 = vld [vmem:[#allocation2 + $0xc8] sm:$0xff]
    %v3518 = vld [vmem:[#allocation2 + $0xd0] sm:$0xff]
    %v3519 = vld [vmem:[#allocation2 + $0xd8] sm:$0xff]
    %3520 = vmatprep.subr.mxu0 %v2409
    %3521 = vmatpush1.msra.mxu0 %v2408
    %3522 = vmatprep.subr.mxu0 %v2413
    %3523 = vmatpush1.msra.mxu0 %v2412
    %3524 = vmatprep.subr.mxu0 %v2417
    %3525 = vmatpush1.msra.mxu0 %v2416
    %3526 = vmatprep.subr.mxu0 %v2421
    %3527 = vmatpush1.msra.mxu0 %v2420
    %3528 = vmatprep.subr.mxu0 %v2425
    %3529 = vmatpush1.msra.mxu0 %v2424
    %3530 = vmatprep.subr.mxu0 %v2429
    %3531 = vmatpush1.msra.mxu0 %v2428
    %3532 = vmatprep.subr.mxu0 %v2433
    %3533 = vmatpush1.msra.mxu0 %v2432
    %3534 = vmatprep.subr.mxu0 %v2437
    %3535 = vmatpush1.msra.mxu0 %v2436
    %3536 = vmatprep.subr.mxu0 %v2441
    %3537 = vmatpush1.msra.mxu0 %v2440
    %3538 = vmatprep.subr.mxu0 %v2445
    %3539 = vmatpush1.msra.mxu0 %v2444
    %3540 = vmatprep.subr.mxu0 %v2449
    %3541 = vmatpush1.msra.mxu0 %v2448
    %3542 = vmatprep.subr.mxu0 %v2453
    %3543 = vmatpush1.msra.mxu0 %v2452
    %3544 = vmatprep.subr.mxu0 %v2457
    %3545 = vmatpush1.msra.mxu0 %v2456
    %3546 = vmatprep.subr.mxu0 %v2461
    %3547 = vmatpush1.msra.mxu0 %v2460
    %3548 = vmatprep.subr.mxu0 %v2465
    %3549 = vmatpush1.msra.mxu0 %v2464
    %3550 = vmatprep.subr.mxu0 %v2469
    %3551 = vmatpush1.msra.mxu0 %v2468
    %3552 = vmatprep.subr.mxu0 0.0
    %3553 = vmatpush1.msra.mxu0 0.0
    %3554 = vmatprep.subr.mxu0 0.0
    %3555 = vmatpush1.msra.mxu0 0.0
    %3556 = vmatprep.subr.mxu0 0.0
    %3557 = vmatpush1.msra.mxu0 0.0
    %3558 = vmatprep.subr.mxu0 0.0
    %3559 = vmatpush1.msra.mxu0 0.0
    %3560 = vmatprep.subr.mxu0 0.0
    %3561 = vmatpush1.msra.mxu0 0.0
    %3562 = vmatprep.subr.mxu0 0.0
    %3563 = vmatpush1.msra.mxu0 0.0
    %3564 = vmatprep.subr.mxu0 0.0
    %3565 = vmatpush1.msra.mxu0 0.0
    %3566 = vmatprep.subr.mxu0 0.0
    %3567 = vmatpush1.msra.mxu0 0.0
    %3568 = vmatprep.subr.mxu0 0.0
    %3569 = vmatpush1.msra.mxu0 0.0
    %3570 = vmatprep.subr.mxu0 0.0
    %3571 = vmatpush1.msra.mxu0 0.0
    %3572 = vmatprep.subr.mxu0 0.0
    %3573 = vmatpush1.msra.mxu0 0.0
    %3574 = vmatprep.subr.mxu0 0.0
    %3575 = vmatpush1.msra.mxu0 0.0
    %3576 = vmatprep.subr.mxu0 0.0
    %3577 = vmatpush1.msra.mxu0 0.0
    %3578 = vmatprep.subr.mxu0 0.0
    %3579 = vmatpush1.msra.mxu0 0.0
    %3580 = vmatprep.subr.mxu0 0.0
    %3581 = vmatpush1.msra.mxu0 0.0
    %3582 = vmatprep.subr.mxu0 0.0
    %3583 = vmatpush1.msra.mxu0 0.0
    %3584 = vmatprep.mubr.f32.mxu0 0.0
    %3585 = vmatmul.mubr.f32.gmra.mrb[0].mxu0 %v3515
    %v3586 = vpop.f32.mrb[0].mxu0
    %v3587 = vadd.f32 0.0, %v3586
    %v3588 = vpop.f32.mrb[0].mxu0
    %v3589 = vadd.f32 0.0, %v3588
    %3590 = vdwg.mxu0
    %3591 = vmatprep.subr.mxu0 %v2411
    %3592 = vmatpush1.msra.mxu0 %v2410
    %3593 = vmatprep.subr.mxu0 %v2415
    %3594 = vmatpush1.msra.mxu0 %v2414
    %3595 = vmatprep.subr.mxu0 %v2419
    %3596 = vmatpush1.msra.mxu0 %v2418
    %3597 = vmatprep.subr.mxu0 %v2423
    %3598 = vmatpush1.msra.mxu0 %v2422
    %3599 = vmatprep.subr.mxu0 %v2427
    %3600 = vmatpush1.msra.mxu0 %v2426
    %3601 = vmatprep.subr.mxu0 %v2431
    %3602 = vmatpush1.msra.mxu0 %v2430
    %3603 = vmatprep.subr.mxu0 %v2435
    %3604 = vmatpush1.msra.mxu0 %v2434
    %3605 = vmatprep.subr.mxu0 %v2439
    %3606 = vmatpush1.msra.mxu0 %v2438
    %3607 = vmatprep.subr.mxu0 %v2443
    %3608 = vmatpush1.msra.mxu0 %v2442
    %3609 = vmatprep.subr.mxu0 %v2447
    %3610 = vmatpush1.msra.mxu0 %v2446
    %3611 = vmatprep.subr.mxu0 %v2451
    %3612 = vmatpush1.msra.mxu0 %v2450
    %3613 = vmatprep.subr.mxu0 %v2455
    %3614 = vmatpush1.msra.mxu0 %v2454
    %3615 = vmatprep.subr.mxu0 %v2459
    %3616 = vmatpush1.msra.mxu0 %v2458
    %3617 = vmatprep.subr.mxu0 %v2463
    %3618 = vmatpush1.msra.mxu0 %v2462
    %3619 = vmatprep.subr.mxu0 %v2467
    %3620 = vmatpush1.msra.mxu0 %v2466
    %3621 = vmatprep.subr.mxu0 %v2471
    %3622 = vmatpush1.msra.mxu0 %v2470
    %3623 = vmatprep.subr.mxu0 0.0
    %3624 = vmatpush1.msra.mxu0 0.0
    %3625 = vmatprep.subr.mxu0 0.0
    %3626 = vmatpush1.msra.mxu0 0.0
    %3627 = vmatprep.subr.mxu0 0.0
    %3628 = vmatpush1.msra.mxu0 0.0
    %3629 = vmatprep.subr.mxu0 0.0
    %3630 = vmatpush1.msra.mxu0 0.0
    %3631 = vmatprep.subr.mxu0 0.0
    %3632 = vmatpush1.msra.mxu0 0.0
    %3633 = vmatprep.subr.mxu0 0.0
    %3634 = vmatpush1.msra.mxu0 0.0
    %3635 = vmatprep.subr.mxu0 0.0
    %3636 = vmatpush1.msra.mxu0 0.0
    %3637 = vmatprep.subr.mxu0 0.0
    %3638 = vmatpush1.msra.mxu0 0.0
    %3639 = vmatprep.subr.mxu0 0.0
    %3640 = vmatpush1.msra.mxu0 0.0
    %3641 = vmatprep.subr.mxu0 0.0
    %3642 = vmatpush1.msra.mxu0 0.0
    %3643 = vmatprep.subr.mxu0 0.0
    %3644 = vmatpush1.msra.mxu0 0.0
    %3645 = vmatprep.subr.mxu0 0.0
    %3646 = vmatpush1.msra.mxu0 0.0
    %3647 = vmatprep.subr.mxu0 0.0
    %3648 = vmatpush1.msra.mxu0 0.0
    %3649 = vmatprep.subr.mxu0 0.0
    %3650 = vmatpush1.msra.mxu0 0.0
    %3651 = vmatprep.subr.mxu0 0.0
    %3652 = vmatpush1.msra.mxu0 0.0
    %3653 = vmatprep.subr.mxu0 0.0
    %3654 = vmatpush1.msra.mxu0 0.0
    %3655 = vmatprep.mubr.f32.mxu0 0.0
    %3656 = vmatmul.mubr.f32.gmra.mrb[0].mxu0 %v3515
    %v3657 = vpop.f32.mrb[0].mxu0
    %v3658 = vadd.f32 0.0, %v3657
    %v3659 = vpop.f32.mrb[0].mxu0
    %v3660 = vadd.f32 0.0, %v3659
    %3661 = vdwg.mxu0
    %v3662 = vadd.f32 %v3516, %v3587
    %v3663 = vadd.f32 %v3517, %v3589
    %v3664 = vadd.f32 %v3518, %v3658
    %v3665 = vadd.f32 %v3519, %v3660
    %v3666 = vxor.u32 %v3662, 2147483648
    %v3667 = vxor.u32 %v3663, 2147483648
    %v3668 = vxor.u32 %v3664, 2147483648
    %v3669 = vmul.f32 %v3666, 1.442695
    %v3670 = vpow.pop %v3669
    %v3671 = vmul.f32 %v3667, 1.442695
    %v3672 = vpow.pop %v3671
    %v3673 = vmul.f32 %v3668, 1.442695
    %v3674 = vpow.pop %v3673
    %v3675 = vadd.f32 %v3670, 1.0
    %v3676 = vadd.f32 %v3672, 1.0
    %v3677 = vadd.f32 %v3674, 1.0
    %v3678 = vrcp.pop %v3675
    %v3679 = vmul.f32 1.0, %v3678
    %v3680 = vrcp.pop %v3676
    %v3681 = vmul.f32 1.0, %v3680
    %v3682 = vrcp.pop %v3677
    %v3683 = vmul.f32 1.0, %v3682
    %v3684 = vtanh.pop %v3665
    %v3685 = vmul.f32 %v3681, %v3513
    %v3686 = vmul.f32 %v3679, %v3684
    %v3687 = vadd.f32 %v3685, %v3686
    %v3688 = vtanh.pop %v3687
    %v3689 = vmul.f32 %v3683, %v3688
    %v3690 = vld [vmem:[#allocation2 + $0xe0] sm:$0xff]
    %v3691 = vld [vmem:[#allocation2 + $0xe8] sm:$0xff]
    %v3692 = vld [vmem:[#allocation2 + $0xf0] sm:$0xff]
    %v3693 = vld [vmem:[#allocation2 + $0xf8] sm:$0xff]
    %3694 = vmatprep.subr.mxu0 %v2409
    %3695 = vmatpush1.msra.mxu0 %v2408
    %3696 = vmatprep.subr.mxu0 %v2413
    %3697 = vmatpush1.msra.mxu0 %v2412
    %3698 = vmatprep.subr.mxu0 %v2417
    %3699 = vmatpush1.msra.mxu0 %v2416
    %3700 = vmatprep.subr.mxu0 %v2421
    %3701 = vmatpush1.msra.mxu0 %v2420
    %3702 = vmatprep.subr.mxu0 %v2425
    %3703 = vmatpush1.msra.mxu0 %v2424
    %3704 = vmatprep.subr.mxu0 %v2429
    %3705 = vmatpush1.msra.mxu0 %v2428
    %3706 = vmatprep.subr.mxu0 %v2433
    %3707 = vmatpush1.msra.mxu0 %v2432
    %3708 = vmatprep.subr.mxu0 %v2437
    %3709 = vmatpush1.msra.mxu0 %v2436
    %3710 = vmatprep.subr.mxu0 %v2441
    %3711 = vmatpush1.msra.mxu0 %v2440
    %3712 = vmatprep.subr.mxu0 %v2445
    %3713 = vmatpush1.msra.mxu0 %v2444
    %3714 = vmatprep.subr.mxu0 %v2449
    %3715 = vmatpush1.msra.mxu0 %v2448
    %3716 = vmatprep.subr.mxu0 %v2453
    %3717 = vmatpush1.msra.mxu0 %v2452
    %3718 = vmatprep.subr.mxu0 %v2457
    %3719 = vmatpush1.msra.mxu0 %v2456
    %3720 = vmatprep.subr.mxu0 %v2461
    %3721 = vmatpush1.msra.mxu0 %v2460
    %3722 = vmatprep.subr.mxu0 %v2465
    %3723 = vmatpush1.msra.mxu0 %v2464
    %3724 = vmatprep.subr.mxu0 %v2469
    %3725 = vmatpush1.msra.mxu0 %v2468
    %3726 = vmatprep.subr.mxu0 0.0
    %3727 = vmatpush1.msra.mxu0 0.0
    %3728 = vmatprep.subr.mxu0 0.0
    %3729 = vmatpush1.msra.mxu0 0.0
    %3730 = vmatprep.subr.mxu0 0.0
    %3731 = vmatpush1.msra.mxu0 0.0
    %3732 = vmatprep.subr.mxu0 0.0
    %3733 = vmatpush1.msra.mxu0 0.0
    %3734 = vmatprep.subr.mxu0 0.0
    %3735 = vmatpush1.msra.mxu0 0.0
    %3736 = vmatprep.subr.mxu0 0.0
    %3737 = vmatpush1.msra.mxu0 0.0
    %3738 = vmatprep.subr.mxu0 0.0
    %3739 = vmatpush1.msra.mxu0 0.0
    %3740 = vmatprep.subr.mxu0 0.0
    %3741 = vmatpush1.msra.mxu0 0.0
    %3742 = vmatprep.subr.mxu0 0.0
    %3743 = vmatpush1.msra.mxu0 0.0
    %3744 = vmatprep.subr.mxu0 0.0
    %3745 = vmatpush1.msra.mxu0 0.0
    %3746 = vmatprep.subr.mxu0 0.0
    %3747 = vmatpush1.msra.mxu0 0.0
    %3748 = vmatprep.subr.mxu0 0.0
    %3749 = vmatpush1.msra.mxu0 0.0
    %3750 = vmatprep.subr.mxu0 0.0
    %3751 = vmatpush1.msra.mxu0 0.0
    %3752 = vmatprep.subr.mxu0 0.0
    %3753 = vmatpush1.msra.mxu0 0.0
    %3754 = vmatprep.subr.mxu0 0.0
    %3755 = vmatpush1.msra.mxu0 0.0
    %3756 = vmatprep.subr.mxu0 0.0
    %3757 = vmatpush1.msra.mxu0 0.0
    %3758 = vmatprep.mubr.f32.mxu0 0.0
    %3759 = vmatmul.mubr.f32.gmra.mrb[0].mxu0 %v3689
    %v3760 = vpop.f32.mrb[0].mxu0
    %v3761 = vadd.f32 0.0, %v3760
    %v3762 = vpop.f32.mrb[0].mxu0
    %v3763 = vadd.f32 0.0, %v3762
    %3764 = vdwg.mxu0
    %3765 = vmatprep.subr.mxu0 %v2411
    %3766 = vmatpush1.msra.mxu0 %v2410
    %3767 = vmatprep.subr.mxu0 %v2415
    %3768 = vmatpush1.msra.mxu0 %v2414
    %3769 = vmatprep.subr.mxu0 %v2419
    %3770 = vmatpush1.msra.mxu0 %v2418
    %3771 = vmatprep.subr.mxu0 %v2423
    %3772 = vmatpush1.msra.mxu0 %v2422
    %3773 = vmatprep.subr.mxu0 %v2427
    %3774 = vmatpush1.msra.mxu0 %v2426
    %3775 = vmatprep.subr.mxu0 %v2431
    %3776 = vmatpush1.msra.mxu0 %v2430
    %3777 = vmatprep.subr.mxu0 %v2435
    %3778 = vmatpush1.msra.mxu0 %v2434
    %3779 = vmatprep.subr.mxu0 %v2439
    %3780 = vmatpush1.msra.mxu0 %v2438
    %3781 = vmatprep.subr.mxu0 %v2443
    %3782 = vmatpush1.msra.mxu0 %v2442
    %3783 = vmatprep.subr.mxu0 %v2447
    %3784 = vmatpush1.msra.mxu0 %v2446
    %3785 = vmatprep.subr.mxu0 %v2451
    %3786 = vmatpush1.msra.mxu0 %v2450
    %3787 = vmatprep.subr.mxu0 %v2455
    %3788 = vmatpush1.msra.mxu0 %v2454
    %3789 = vmatprep.subr.mxu0 %v2459
    %3790 = vmatpush1.msra.mxu0 %v2458
    %3791 = vmatprep.subr.mxu0 %v2463
    %3792 = vmatpush1.msra.mxu0 %v2462
    %3793 = vmatprep.subr.mxu0 %v2467
    %3794 = vmatpush1.msra.mxu0 %v2466
    %3795 = vmatprep.subr.mxu0 %v2471
    %3796 = vmatpush1.msra.mxu0 %v2470
    %3797 = vmatprep.subr.mxu0 0.0
    %3798 = vmatpush1.msra.mxu0 0.0
    %3799 = vmatprep.subr.mxu0 0.0
    %3800 = vmatpush1.msra.mxu0 0.0
    %3801 = vmatprep.subr.mxu0 0.0
    %3802 = vmatpush1.msra.mxu0 0.0
    %3803 = vmatprep.subr.mxu0 0.0
    %3804 = vmatpush1.msra.mxu0 0.0
    %3805 = vmatprep.subr.mxu0 0.0
    %3806 = vmatpush1.msra.mxu0 0.0
    %3807 = vmatprep.subr.mxu0 0.0
    %3808 = vmatpush1.msra.mxu0 0.0
    %3809 = vmatprep.subr.mxu0 0.0
    %3810 = vmatpush1.msra.mxu0 0.0
    %3811 = vmatprep.subr.mxu0 0.0
    %3812 = vmatpush1.msra.mxu0 0.0
    %3813 = vmatprep.subr.mxu0 0.0
    %3814 = vmatpush1.msra.mxu0 0.0
    %3815 = vmatprep.subr.mxu0 0.0
    %3816 = vmatpush1.msra.mxu0 0.0
    %3817 = vmatprep.subr.mxu0 0.0
    %3818 = vmatpush1.msra.mxu0 0.0
    %3819 = vmatprep.subr.mxu0 0.0
    %3820 = vmatpush1.msra.mxu0 0.0
    %3821 = vmatprep.subr.mxu0 0.0
    %3822 = vmatpush1.msra.mxu0 0.0
    %3823 = vmatprep.subr.mxu0 0.0
    %3824 = vmatpush1.msra.mxu0 0.0
    %3825 = vmatprep.subr.mxu0 0.0
    %3826 = vmatpush1.msra.mxu0 0.0
    %3827 = vmatprep.subr.mxu0 0.0
    %3828 = vmatpush1.msra.mxu0 0.0
    %3829 = vmatprep.mubr.f32.mxu0 0.0
    %3830 = vmatmul.mubr.f32.gmra.mrb[0].mxu0 %v3689
    %v3831 = vpop.f32.mrb[0].mxu0
    %v3832 = vadd.f32 0.0, %v3831
    %v3833 = vpop.f32.mrb[0].mxu0
    %v3834 = vadd.f32 0.0, %v3833
    %3835 = vdwg.mxu0
    %v3836 = vadd.f32 %v3690, %v3761
    %v3837 = vadd.f32 %v3691, %v3763
    %v3838 = vadd.f32 %v3692, %v3832
    %v3839 = vadd.f32 %v3693, %v3834
    %v3840 = vxor.u32 %v3836, 2147483648
    %v3841 = vxor.u32 %v3837, 2147483648
    %v3842 = vxor.u32 %v3838, 2147483648
    %v3843 = vmul.f32 %v3840, 1.442695
    %v3844 = vpow.pop %v3843
    %v3845 = vmul.f32 %v3841, 1.442695
    %v3846 = vpow.pop %v3845
    %v3847 = vmul.f32 %v3842, 1.442695
    %v3848 = vpow.pop %v3847
    %v3849 = vadd.f32 %v3844, 1.0
    %v3850 = vadd.f32 %v3846, 1.0
    %v3851 = vadd.f32 %v3848, 1.0
    %v3852 = vrcp.pop %v3849
    %v3853 = vmul.f32 1.0, %v3852
    %v3854 = vrcp.pop %v3850
    %v3855 = vmul.f32 1.0, %v3854
    %v3856 = vrcp.pop %v3851
    %v3857 = vmul.f32 1.0, %v3856
    %v3858 = vtanh.pop %v3839
    %v3859 = vmul.f32 %v3855, %v3687
    %v3860 = vmul.f32 %v3853, %v3858
    %v3861 = vadd.f32 %v3859, %v3860
    %v3862 = vtanh.pop %v3861
    %v3863 = vmul.f32 %v3857, %v3862
    %3865 = vrot.lane.b32.xlu0 %v3863, 96
    %v3866 = vpop.permute.xlu0 %3865
    %3869 = vrot.lane.b32.xlu0 %v3167, 32
    %v3870 = vpop.permute.xlu0 %3869
    %vm3872 = vcmask 261120
    %v3873 = vsel %vm3872, %v3863, %v3866
    %v3874 = vsel %vm171, %v3873, %v3870
    %vm3875 = vcmask 785408
    %v3876 = vsel %vm3875, %v3874, %v3167
    %v3877 = vld [vmem:[%s7] sm:$0xff]
    %v3878 = vld [vmem:[%s7 + $0x8] sm:$0xff]
    %v3879 = vld [vmem:[%s7 + $0x10] sm:$0xff]
    %v3880 = vld [vmem:[%s7 + $0x18] sm:$0xff]
    %v3881 = vld [vmem:[%s7 + $0x20] sm:$0xff]
    %v3882 = vld [vmem:[%s7 + $0x28] sm:$0xff]
    %v3883 = vld [vmem:[%s7 + $0x30] sm:$0xff]
    %v3884 = vld [vmem:[%s7 + $0x38] sm:$0xff]
    %v3885 = vld [vmem:[%s7 + $0x40] sm:$0xff]
    %v3886 = vld [vmem:[%s7 + $0x48] sm:$0xff]
    %v3887 = vld [vmem:[%s7 + $0x50] sm:$0xff]
    %v3888 = vld [vmem:[%s7 + $0x58] sm:$0xff]
    %v3889 = vld [vmem:[%s7 + $0x60] sm:$0xff]
    %v3890 = vld [vmem:[%s7 + $0x68] sm:$0xff]
    %v3891 = vld [vmem:[%s7 + $0x70] sm:$0xff]
    %v3892 = vld [vmem:[%s7 + $0x78] sm:$0xff]
    %v3893 = vld [vmem:[%s8] sm:$0x1]
    %v3895 = vlaneseq
    %v3896 = vshrl.u32 %v3895, 7
    %v3897 = vsub.s32 0, %v3896
    %v3898 = vrot.slane %v3893, %v3897
    %3900 = vmatprep.subr.mxu0 0.0
    %3901 = vmatpush1.msra.mxu0 %v3877
    %3902 = vmatprep.subr.mxu0 0.0
    %3903 = vmatpush1.msra.mxu0 %v3878
    %3904 = vmatprep.subr.mxu0 0.0
    %3905 = vmatpush1.msra.mxu0 %v3879
    %3906 = vmatprep.subr.mxu0 0.0
    %3907 = vmatpush1.msra.mxu0 %v3880
    %3908 = vmatprep.subr.mxu0 0.0
    %3909 = vmatpush1.msra.mxu0 %v3881
    %3910 = vmatprep.subr.mxu0 0.0
    %3911 = vmatpush1.msra.mxu0 %v3882
    %3912 = vmatprep.subr.mxu0 0.0
    %3913 = vmatpush1.msra.mxu0 %v3883
    %3914 = vmatprep.subr.mxu0 0.0
    %3915 = vmatpush1.msra.mxu0 %v3884
    %3916 = vmatprep.subr.mxu0 0.0
    %3917 = vmatpush1.msra.mxu0 %v3885
    %3918 = vmatprep.subr.mxu0 0.0
    %3919 = vmatpush1.msra.mxu0 %v3886
    %3920 = vmatprep.subr.mxu0 0.0
    %3921 = vmatpush1.msra.mxu0 %v3887
    %3922 = vmatprep.subr.mxu0 0.0
    %3923 = vmatpush1.msra.mxu0 %v3888
    %3924 = vmatprep.subr.mxu0 0.0
    %3925 = vmatpush1.msra.mxu0 %v3889
    %3926 = vmatprep.subr.mxu0 0.0
    %3927 = vmatpush1.msra.mxu0 %v3890
    %3928 = vmatprep.subr.mxu0 0.0
    %3929 = vmatpush1.msra.mxu0 %v3891
    %3930 = vmatprep.subr.mxu0 0.0
    %3931 = vmatpush1.msra.mxu0 %v3892
    %3932 = vmatprep.subr.mxu0 0.0
    %3933 = vmatpush1.msra.mxu0 0.0
    %3934 = vmatprep.subr.mxu0 0.0
    %3935 = vmatpush1.msra.mxu0 0.0
    %3936 = vmatprep.subr.mxu0 0.0
    %3937 = vmatpush1.msra.mxu0 0.0
    %3938 = vmatprep.subr.mxu0 0.0
    %3939 = vmatpush1.msra.mxu0 0.0
    %3940 = vmatprep.subr.mxu0 0.0
    %3941 = vmatpush1.msra.mxu0 0.0
    %3942 = vmatprep.subr.mxu0 0.0
    %3943 = vmatpush1.msra.mxu0 0.0
    %3944 = vmatprep.subr.mxu0 0.0
    %3945 = vmatpush1.msra.mxu0 0.0
    %3946 = vmatprep.subr.mxu0 0.0
    %3947 = vmatpush1.msra.mxu0 0.0
    %3948 = vmatprep.subr.mxu0 0.0
    %3949 = vmatpush1.msra.mxu0 0.0
    %3950 = vmatprep.subr.mxu0 0.0
    %3951 = vmatpush1.msra.mxu0 0.0
    %3952 = vmatprep.subr.mxu0 0.0
    %3953 = vmatpush1.msra.mxu0 0.0
    %3954 = vmatprep.subr.mxu0 0.0
    %3955 = vmatpush1.msra.mxu0 0.0
    %3956 = vmatprep.subr.mxu0 0.0
    %3957 = vmatpush1.msra.mxu0 0.0
    %3958 = vmatprep.subr.mxu0 0.0
    %3959 = vmatpush1.msra.mxu0 0.0
    %3960 = vmatprep.subr.mxu0 0.0
    %3961 = vmatpush1.msra.mxu0 0.0
    %3962 = vmatprep.subr.mxu0 0.0
    %3963 = vmatpush1.msra.mxu0 0.0
    %3964 = vmatprep.mubr.f32.mxu0 0.0
    %3965 = vmatmul.mubr.f32.gmra.mrb[0].mxu0 %v3876
    %v3966 = vpop.f32.mrb[0].mxu0
    %v3967 = vadd.f32 %v3898, %v3966
    %v3968 = vpop.f32.mrb[0].mxu0
    %3969 = vdwg.mxu0
    %v3970 = vmax.f32 %v3967, 0.0
    %v3971 = vld [vmem:[%s9] sm:$0xff]
    %v3972 = vld [vmem:[%s9 + $0x8] sm:$0xff]
    %v3973 = vld [vmem:[%s9 + $0x10] sm:$0xff]
    %v3974 = vld [vmem:[%s9 + $0x18] sm:$0xff]
    %v3975 = vld [vmem:[%s10] sm:$0x1]
    %v3977 = vlaneseq
    %v3978 = vshrl.u32 %v3977, 7
    %v3979 = vsub.s32 0, %v3978
    %v3980 = vrot.slane %v3975, %v3979
    %v3983 = vsel %vm3872, %v3970, 0
    %3985 = vmatprep.subr.mxu0 0.0
    %3986 = vmatpush1.msra.mxu0 %v3971
    %3987 = vmatprep.subr.mxu0 0.0
    %3988 = vmatpush1.msra.mxu0 %v3972
    %3989 = vmatprep.subr.mxu0 0.0
    %3990 = vmatpush1.msra.mxu0 %v3973
    %3991 = vmatprep.subr.mxu0 0.0
    %3992 = vmatpush1.msra.mxu0 %v3974
    %3993 = vmatprep.subr.mxu0 0.0
    %3994 = vmatpush1.msra.mxu0 0.0
    %3995 = vmatprep.subr.mxu0 0.0
    %3996 = vmatpush1.msra.mxu0 0.0
    %3997 = vmatprep.subr.mxu0 0.0
    %3998 = vmatpush1.msra.mxu0 0.0
    %3999 = vmatprep.subr.mxu0 0.0
    %4000 = vmatpush1.msra.mxu0 0.0
    %4001 = vmatprep.subr.mxu0 0.0
    %4002 = vmatpush1.msra.mxu0 0.0
    %4003 = vmatprep.subr.mxu0 0.0
    %4004 = vmatpush1.msra.mxu0 0.0
    %4005 = vmatprep.subr.mxu0 0.0
    %4006 = vmatpush1.msra.mxu0 0.0
    %4007 = vmatprep.subr.mxu0 0.0
    %4008 = vmatpush1.msra.mxu0 0.0
    %4009 = vmatprep.subr.mxu0 0.0
    %4010 = vmatpush1.msra.mxu0 0.0
    %4011 = vmatprep.subr.mxu0 0.0
    %4012 = vmatpush1.msra.mxu0 0.0
    %4013 = vmatprep.subr.mxu0 0.0
    %4014 = vmatpush1.msra.mxu0 0.0
    %4015 = vmatprep.subr.mxu0 0.0
    %4016 = vmatpush1.msra.mxu0 0.0
    %4017 = vmatprep.subr.mxu0 0.0
    %4018 = vmatpush1.msra.mxu0 0.0
    %4019 = vmatprep.subr.mxu0 0.0
    %4020 = vmatpush1.msra.mxu0 0.0
    %4021 = vmatprep.subr.mxu0 0.0
    %4022 = vmatpush1.msra.mxu0 0.0
    %4023 = vmatprep.subr.mxu0 0.0
    %4024 = vmatpush1.msra.mxu0 0.0
    %4025 = vmatprep.subr.mxu0 0.0
    %4026 = vmatpush1.msra.mxu0 0.0
    %4027 = vmatprep.subr.mxu0 0.0
    %4028 = vmatpush1.msra.mxu0 0.0
    %4029 = vmatprep.subr.mxu0 0.0
    %4030 = vmatpush1.msra.mxu0 0.0
    %4031 = vmatprep.subr.mxu0 0.0
    %4032 = vmatpush1.msra.mxu0 0.0
    %4033 = vmatprep.subr.mxu0 0.0
    %4034 = vmatpush1.msra.mxu0 0.0
    %4035 = vmatprep.subr.mxu0 0.0
    %4036 = vmatpush1.msra.mxu0 0.0
    %4037 = vmatprep.subr.mxu0 0.0
    %4038 = vmatpush1.msra.mxu0 0.0
    %4039 = vmatprep.subr.mxu0 0.0
    %4040 = vmatpush1.msra.mxu0 0.0
    %4041 = vmatprep.subr.mxu0 0.0
    %4042 = vmatpush1.msra.mxu0 0.0
    %4043 = vmatprep.subr.mxu0 0.0
    %4044 = vmatpush1.msra.mxu0 0.0
    %4045 = vmatprep.subr.mxu0 0.0
    %4046 = vmatpush1.msra.mxu0 0.0
    %4047 = vmatprep.subr.mxu0 0.0
    %4048 = vmatpush1.msra.mxu0 0.0
    %4049 = vmatprep.mubr.f32.mxu0 0.0
    %4050 = vmatmul.mubr.f32.gmra.mrb[0].mxu0 %v3983
    %v4051 = vpop.f32.mrb[0].mxu0
    %v4052 = vadd.f32 %v3980, %v4051
    %v4053 = vpop.f32.mrb[0].mxu0
    %4054 = vdwg.mxu0
    %vm4055 = vcmask 23552
    %4056 = vst.msk [vmem:[%s11] sm:$0xff] %vm4055, %v4052
    // Predicated region
    $region62: #{tpu_custom_call.1} parent=1 // pred_check
      _
    $region63: #{tpu_custom_call.1} parent=1 // pred_check_branch
      %4058 = sbr.rel (0) target = $region65
    $region64: #{tpu_custom_call.1} parent=1 // pred_region
      _
    $region65: #{tpu_custom_call.1} parent=1 // pred_fallthru
      _
    // Predicated region
    $region66: #{tpu_custom_call.1} parent=1 // pred_check
      _
    $region67: #{tpu_custom_call.1} parent=1 // pred_check_branch
      %4060 = sbr.rel (0) target = $region69
    $region68: #{tpu_custom_call.1} parent=1 // pred_region
      _
    $region69: #{tpu_custom_call.1} parent=1 // pred_fallthru
      _
    %4061 = vsyncpa [#allocation5], 1
    %4062 = vsyncpa [#allocation7], 1
    %4063 = vsyncpa [#allocation10], 1

</llo_original>
